<compile_context>
chip_gen: v7x
topology: tpu7x:2x2x1
jax: 0.10.0
libtpu: 0.0.40
codegen_flags: <defaults>
</compile_context>

<pallas_src>
import jax
import jax.numpy as jnp
from jax.experimental import pallas as pl
from jax.experimental.pallas import tpu as pltpu


def _round_up(x, m):
    return (x + m - 1) // m * m


def ssod_kernel(x_ref,
                stem_w_ref, stem_b_ref,
                head1_w_ref, head1_b_ref,
                rw2_ref, rb2_ref, rw3_ref, rb3_ref, rw4_ref, rb4_ref,
                cw2_ref, cb2_ref, cw3_ref, cb3_ref,
                bbox_ref, cls_ref):
    f32 = jnp.float32
    bf16 = jnp.bfloat16

    # ---- backbone stand-in: GAP as a sum (1/HW folded into stem_w) --------
    x = x_ref[...].astype(f32)              # (bt, C, S, 128)
    partial = jnp.sum(x, axis=2)            # mostly VPU vreg adds -> (bt, C, 128)
    pooled = jnp.sum(partial, axis=-1)      # one 128-wide lane reduce -> (bt, C)

    def dense(h, w_ref, b_ref):
        # bf16 x bf16 on the MXU with f32 accumulation; bias add in f32.
        return (jnp.dot(h.astype(bf16), w_ref[...],
                        preferred_element_type=f32)
                + b_ref[...].astype(f32))

    feats = jnp.maximum(dense(pooled, stem_w_ref, stem_b_ref), 0.0)  # (bt, F)

    # ---- fused first layer of both heads: F -> (128 | 512) ----------------
    h1 = jnp.maximum(dense(feats, head1_w_ref, head1_b_ref), 0.0)    # (bt, 640)
    r = h1[:, :128]                          # regressor branch (lane-aligned)
    c = h1[:, 128:]                          # classifier branch

    # ---- regressor tail: 128 -> 64 -> 32 -> 4(padded to 128), Sigmoid -----
    r = jnp.maximum(dense(r, rw2_ref, rb2_ref), 0.0)
    r = jnp.maximum(dense(r, rw3_ref, rb3_ref), 0.0)
    bbox_ref[...] = jax.nn.sigmoid(dense(r, rw4_ref, rb4_ref)).astype(bbox_ref.dtype)

    # ---- classifier tail: 512 -> 512 -> numClasses (padded to 128) --------
    # TODO(synk): nn.Dropout is identity at inference; training-mode dropout
    # (random masking) is not implemented here.
    c = jnp.maximum(dense(c, cw2_ref, cb2_ref), 0.0)
    cls_ref[...] = dense(c, cw3_ref, cb3_ref).astype(cls_ref.dtype)


def init_params(key, in_channels, in_features, num_classes):
    """Deterministic f32 params.  Weights stored (in, out); biases (1, out)."""
    def lin(k, fan_in, fan_out):
        kw, kb = jax.random.split(k)
        scale = 1.0 / jnp.sqrt(jnp.float32(fan_in))
        w = jax.random.uniform(kw, (fan_in, fan_out), jnp.float32, -scale, scale)
        b = jax.random.uniform(kb, (1, fan_out), jnp.float32, -scale, scale)
        return w, b

    keys = jax.random.split(key, 8)
    p = {}
    p["stem_w"], p["stem_b"] = lin(keys[0], in_channels, in_features)
    # regressor: in_features -> 128 -> 64 -> 32 -> 4
    p["rw1"], p["rb1"] = lin(keys[1], in_features, 128)
    p["rw2"], p["rb2"] = lin(keys[2], 128, 64)
    p["rw3"], p["rb3"] = lin(keys[3], 64, 32)
    p["rw4"], p["rb4"] = lin(keys[4], 32, 4)
    # classifier: in_features -> 512 -> 512 -> num_classes
    p["cw1"], p["cb1"] = lin(keys[5], in_features, 512)
    p["cw2"], p["cb2"] = lin(keys[6], 512, 512)
    p["cw3"], p["cb3"] = lin(keys[7], 512, num_classes)
    return p


def _prepare_params(params, hw, num_classes):
    """Fold 1/HW into stem_w, fuse head-1 weights, pad final layers to 128
    lanes, and cast weights to bf16 (biases stay f32)."""
    bf16 = jnp.bfloat16
    nc_pad = _round_up(num_classes, 128)

    prep = {
        "stem_w": (params["stem_w"] / hw).astype(bf16),
        "stem_b": params["stem_b"],
        "head1_w": jnp.concatenate([params["rw1"], params["cw1"]], axis=1).astype(bf16),
        "head1_b": jnp.concatenate([params["rb1"], params["cb1"]], axis=1),
        "rw2": params["rw2"].astype(bf16), "rb2": params["rb2"],
        "rw3": params["rw3"].astype(bf16), "rb3": params["rb3"],
        # pad 4 -> 128 output lanes (zero weights/bias; extra lanes discarded)
        "rw4": jnp.pad(params["rw4"], ((0, 0), (0, 128 - 4))).astype(bf16),
        "rb4": jnp.pad(params["rb4"], ((0, 0), (0, 128 - 4))),
        "cw2": params["cw2"].astype(bf16), "cb2": params["cb2"],
        "cw3": jnp.pad(params["cw3"], ((0, 0), (0, nc_pad - num_classes))).astype(bf16),
        "cb3": jnp.pad(params["cb3"], ((0, 0), (0, nc_pad - num_classes))),
    }
    return prep, nc_pad


def ssod_forward(x_nchw, params, *, batch_tile=128):
    B, C, H, W = x_nchw.shape
    hw = H * W
    num_classes = params["cw3"].shape[1]

    prep, nc_pad = _prepare_params(params, hw, num_classes)

    # ---- spatial layout: pad HW to a multiple of 128 and split (S, 128) ---
    hw_pad = _round_up(hw, 128)
    x = x_nchw.reshape(B, C, hw)
    if hw_pad != hw:
        x = jnp.pad(x, ((0, 0), (0, 0), (0, hw_pad - hw)))  # zeros: sum unchanged
    s = hw_pad // 128
    x = x.reshape(B, C, s, 128)

    # ---- batch tiling: multiple of 8, shrunk to keep 2x x-tile in budget --
    bt = _round_up(min(batch_tile, _round_up(B, 8)), 8)
    while bt > 8 and 2 * bt * C * hw_pad * 4 > 32 * 1024 * 1024:
        bt //= 2
    b_pad = _round_up(B, bt)
    if b_pad != B:
        x = jnp.pad(x, ((0, b_pad - B), (0, 0), (0, 0), (0, 0)))
    grid = (b_pad // bt,)

    weight_order = ("stem_w", "stem_b", "head1_w", "head1_b",
                    "rw2", "rb2", "rw3", "rb3", "rw4", "rb4",
                    "cw2", "cb2", "cw3", "cb3")
    weights = tuple(prep[k] for k in weight_order)

    def _resident_spec(arr):
        nd = arr.ndim
        return pl.BlockSpec(arr.shape, lambda i, _nd=nd: (0,) * _nd)

    in_specs = ([pl.BlockSpec((bt, C, s, 128), lambda i: (i, 0, 0, 0))]
                + [_resident_spec(w) for w in weights])
    out_specs = (pl.BlockSpec((bt, 128), lambda i: (i, 0)),
                 pl.BlockSpec((bt, nc_pad), lambda i: (i, 0)))

    # rough VMEM budget hint (double-buffered tiles + resident weights)
    vmem_est = (2 * bt * C * hw_pad * 4
                + 2 * sum(int(w.size) * w.dtype.itemsize for w in weights)
                + 2 * bt * (128 + nc_pad) * 4)
    vmem_limit = int(min(48 << 20, max(32 << 20, 4 * vmem_est)))

    bbox_slab, cls_slab = pl.pallas_call(
        ssod_kernel,
        out_shape=(jax.ShapeDtypeStruct((b_pad, 128), jnp.float32),
                   jax.ShapeDtypeStruct((b_pad, nc_pad), jnp.float32)),
        grid_spec=pltpu.PrefetchScalarGridSpec(
            num_scalar_prefetch=0,
            grid=grid,
            in_specs=in_specs,
            out_specs=out_specs),
        compiler_params=pltpu.CompilerParams(
            dimension_semantics=("parallel",),
            vmem_limit_bytes=vmem_limit),
    )(x, *weights)

    bboxes = bbox_slab[:B, :4]
    class_logits = cls_slab[:B, :num_classes]
    return bboxes, class_logits


def ssod_forward_ref(x_nchw, params):
    """Pure-JAX f32 reference of the same forward (original module semantics)."""
    B, C, H, W = x_nchw.shape
    pooled = jnp.mean(x_nchw.reshape(B, C, H * W), axis=-1)
    feats = jnp.maximum(pooled @ params["stem_w"] + params["stem_b"], 0.0)
    r = jnp.maximum(feats @ params["rw1"] + params["rb1"], 0.0)
    r = jnp.maximum(r @ params["rw2"] + params["rb2"], 0.0)
    r = jnp.maximum(r @ params["rw3"] + params["rb3"], 0.0)
    bboxes = jax.nn.sigmoid(r @ params["rw4"] + params["rb4"])
    c = jnp.maximum(feats @ params["cw1"] + params["cb1"], 0.0)
    c = jnp.maximum(c @ params["cw2"] + params["cb2"], 0.0)
    logits = c @ params["cw3"] + params["cb3"]
    return bboxes, logits


if __name__ == "__main__":
    B, C, H, W = 10, 4, 16, 16         # small NCHW input (exercises batch padding)
    IN_FEATURES = 256                  # baseModel.fc.in_features
    NUM_CLASSES = 16

    key = jax.random.PRNGKey(0)
    kx, kp = jax.random.split(key)
    x = jax.random.normal(kx, (B, C, H, W), dtype=jnp.float32)
    params = init_params(kp, C, IN_FEATURES, NUM_CLASSES)

    # batch_tile=8 -> two grid steps: exercises streaming x tiles + resident weights
    bboxes, class_logits = ssod_forward(x, params, batch_tile=8)
    jax.block_until_ready((bboxes, class_logits))

    # sanity-check against pure-JAX f32 reference (weights run in bf16 in-kernel)
    bb_ref, cl_ref = ssod_forward_ref(x, params)
    assert bboxes.shape == (B, 4) and class_logits.shape == (B, NUM_CLASSES)
    assert jnp.allclose(bboxes, bb_ref, atol=2e-2, rtol=2e-2)
    assert jnp.allclose(class_logits, cl_ref, atol=5e-2, rtol=5e-2)

    print("KERNEL_OK")
</pallas_src>

<mosaic_0001>
module attributes {stable_mosaic.version = 11 : i64} {
  func.func @ssod_kernel(%arg0: i32, %arg1: memref<8x4x2x128xf32, #tpu.memory_space<vmem>>, %arg2: memref<4x256xbf16, #tpu.memory_space<vmem>>, %arg3: memref<1x256xf32, #tpu.memory_space<vmem>>, %arg4: memref<256x640xbf16, #tpu.memory_space<vmem>>, %arg5: memref<1x640xf32, #tpu.memory_space<vmem>>, %arg6: memref<128x64xbf16, #tpu.memory_space<vmem>>, %arg7: memref<1x64xf32, #tpu.memory_space<vmem>>, %arg8: memref<64x32xbf16, #tpu.memory_space<vmem>>, %arg9: memref<1x32xf32, #tpu.memory_space<vmem>>, %arg10: memref<32x128xbf16, #tpu.memory_space<vmem>>, %arg11: memref<1x128xf32, #tpu.memory_space<vmem>>, %arg12: memref<512x512xbf16, #tpu.memory_space<vmem>>, %arg13: memref<1x512xf32, #tpu.memory_space<vmem>>, %arg14: memref<512x128xbf16, #tpu.memory_space<vmem>>, %arg15: memref<1x128xf32, #tpu.memory_space<vmem>>, %arg16: memref<8x128xf32, #tpu.memory_space<vmem>>, %arg17: memref<8x128xf32, #tpu.memory_space<vmem>>) attributes {dimension_semantics = [#tpu.dimension_semantics<parallel>], iteration_bounds = array<i64: 2>, scalar_prefetch = 0 : i64, scratch_operands = 0 : i64, tpu.core_type = #tpu.core_type<tc>, window_params = [{transform_indices = @transform_0, window_bounds = array<i64: 8, 4, 2, 128>}, {pipeline_mode = #tpu.pipeline_mode<synchronous>, transform_indices = @transform_1, window_bounds = array<i64: 4, 256>}, {pipeline_mode = #tpu.pipeline_mode<synchronous>, transform_indices = @transform_2, window_bounds = array<i64: 1, 256>}, {pipeline_mode = #tpu.pipeline_mode<synchronous>, transform_indices = @transform_3, window_bounds = array<i64: 256, 640>}, {pipeline_mode = #tpu.pipeline_mode<synchronous>, transform_indices = @transform_4, window_bounds = array<i64: 1, 640>}, {pipeline_mode = #tpu.pipeline_mode<synchronous>, transform_indices = @transform_5, window_bounds = array<i64: 128, 64>}, {pipeline_mode = #tpu.pipeline_mode<synchronous>, transform_indices = @transform_6, window_bounds = array<i64: 1, 64>}, {pipeline_mode = #tpu.pipeline_mode<synchronous>, transform_indices = @transform_7, window_bounds = array<i64: 64, 32>}, {pipeline_mode = #tpu.pipeline_mode<synchronous>, transform_indices = @transform_8, window_bounds = array<i64: 1, 32>}, {pipeline_mode = #tpu.pipeline_mode<synchronous>, transform_indices = @transform_9, window_bounds = array<i64: 32, 128>}, {pipeline_mode = #tpu.pipeline_mode<synchronous>, transform_indices = @transform_10, window_bounds = array<i64: 1, 128>}, {pipeline_mode = #tpu.pipeline_mode<synchronous>, transform_indices = @transform_11, window_bounds = array<i64: 512, 512>}, {pipeline_mode = #tpu.pipeline_mode<synchronous>, transform_indices = @transform_12, window_bounds = array<i64: 1, 512>}, {pipeline_mode = #tpu.pipeline_mode<synchronous>, transform_indices = @transform_13, window_bounds = array<i64: 512, 128>}, {pipeline_mode = #tpu.pipeline_mode<synchronous>, transform_indices = @transform_14, window_bounds = array<i64: 1, 128>}, {transform_indices = @transform_15, window_bounds = array<i64: 8, 128>}, {transform_indices = @transform_16, window_bounds = array<i64: 8, 128>}]} {
    %c0 = arith.constant 0 : index
    %c0_0 = arith.constant 0 : index
    %c0_1 = arith.constant 0 : index
    %c0_2 = arith.constant 0 : index
    %0 = vector.load %arg1[%c0, %c0_0, %c0_1, %c0_2] : memref<8x4x2x128xf32, #tpu.memory_space<vmem>>, vector<8x4x2x128xf32>
    %cst = arith.constant dense<0.000000e+00> : vector<8x4x128xf32>
    %1 = vector.multi_reduction <add>, %0, %cst [2] : vector<8x4x2x128xf32> to vector<8x4x128xf32>
    %cst_3 = arith.constant dense<0.000000e+00> : vector<8x4xf32>
    %2 = vector.multi_reduction <add>, %1, %cst_3 [2] : vector<8x4x128xf32> to vector<8x4xf32>
    %3 = arith.truncf %2 : vector<8x4xf32> to vector<8x4xbf16>
    %c0_4 = arith.constant 0 : index
    %c0_5 = arith.constant 0 : index
    %4 = vector.load %arg2[%c0_4, %c0_5] : memref<4x256xbf16, #tpu.memory_space<vmem>>, vector<4x256xbf16>
    %cst_6 = arith.constant dense<0.000000e+00> : vector<8x256xf32>
    %5 = tpu.matmul %3, %4, %cst_6 {dimension_numbers = #tpu.dot_dimension_numbers<[1], [0], [0], [1], [0, 0, 1, 1], [], []>} : vector<8x4xbf16>, vector<4x256xbf16>, vector<8x256xf32> -> vector<8x256xf32>
    %c0_7 = arith.constant 0 : index
    %c0_8 = arith.constant 0 : index
    %6 = vector.load %arg3[%c0_7, %c0_8] : memref<1x256xf32, #tpu.memory_space<vmem>>, vector<1x256xf32>
    %7 = vector.broadcast %6 : vector<1x256xf32> to vector<8x256xf32>
    %8 = arith.addf %5, %7 : vector<8x256xf32>
    %cst_9 = arith.constant 0.000000e+00 : f32
    %9 = vector.broadcast %cst_9 : f32 to vector<8x256xf32>
    %10 = arith.maximumf %8, %9 : vector<8x256xf32>
    %11 = arith.truncf %10 : vector<8x256xf32> to vector<8x256xbf16>
    %c0_10 = arith.constant 0 : index
    %c0_11 = arith.constant 0 : index
    %12 = vector.load %arg4[%c0_10, %c0_11] : memref<256x640xbf16, #tpu.memory_space<vmem>>, vector<256x640xbf16>
    %cst_12 = arith.constant dense<0.000000e+00> : vector<8x640xf32>
    %13 = tpu.matmul %11, %12, %cst_12 {dimension_numbers = #tpu.dot_dimension_numbers<[1], [0], [0], [1], [0, 0, 1, 1], [], []>} : vector<8x256xbf16>, vector<256x640xbf16>, vector<8x640xf32> -> vector<8x640xf32>
    %c0_13 = arith.constant 0 : index
    %c0_14 = arith.constant 0 : index
    %14 = vector.load %arg5[%c0_13, %c0_14] : memref<1x640xf32, #tpu.memory_space<vmem>>, vector<1x640xf32>
    %15 = vector.broadcast %14 : vector<1x640xf32> to vector<8x640xf32>
    %16 = arith.addf %13, %15 : vector<8x640xf32>
    %cst_15 = arith.constant 0.000000e+00 : f32
    %17 = vector.broadcast %cst_15 : f32 to vector<8x640xf32>
    %18 = arith.maximumf %16, %17 : vector<8x640xf32>
    %19 = vector.extract_strided_slice %18 {offsets = [0, 0], sizes = [8, 128], strides = [1, 1]} : vector<8x640xf32> to vector<8x128xf32>
    %20 = vector.extract_strided_slice %18 {offsets = [0, 128], sizes = [8, 512], strides = [1, 1]} : vector<8x640xf32> to vector<8x512xf32>
    %21 = arith.truncf %19 : vector<8x128xf32> to vector<8x128xbf16>
    %c0_16 = arith.constant 0 : index
    %c0_17 = arith.constant 0 : index
    %22 = vector.load %arg6[%c0_16, %c0_17] : memref<128x64xbf16, #tpu.memory_space<vmem>>, vector<128x64xbf16>
    %cst_18 = arith.constant dense<0.000000e+00> : vector<8x64xf32>
    %23 = tpu.matmul %21, %22, %cst_18 {dimension_numbers = #tpu.dot_dimension_numbers<[1], [0], [0], [1], [0, 0, 1, 1], [], []>} : vector<8x128xbf16>, vector<128x64xbf16>, vector<8x64xf32> -> vector<8x64xf32>
    %c0_19 = arith.constant 0 : index
    %c0_20 = arith.constant 0 : index
    %24 = vector.load %arg7[%c0_19, %c0_20] : memref<1x64xf32, #tpu.memory_space<vmem>>, vector<1x64xf32>
    %25 = vector.broadcast %24 : vector<1x64xf32> to vector<8x64xf32>
    %26 = arith.addf %23, %25 : vector<8x64xf32>
    %cst_21 = arith.constant 0.000000e+00 : f32
    %27 = vector.broadcast %cst_21 : f32 to vector<8x64xf32>
    %28 = arith.maximumf %26, %27 : vector<8x64xf32>
    %29 = arith.truncf %28 : vector<8x64xf32> to vector<8x64xbf16>
    %c0_22 = arith.constant 0 : index
    %c0_23 = arith.constant 0 : index
    %30 = vector.load %arg8[%c0_22, %c0_23] : memref<64x32xbf16, #tpu.memory_space<vmem>>, vector<64x32xbf16>
    %cst_24 = arith.constant dense<0.000000e+00> : vector<8x32xf32>
    %31 = tpu.matmul %29, %30, %cst_24 {dimension_numbers = #tpu.dot_dimension_numbers<[1], [0], [0], [1], [0, 0, 1, 1], [], []>} : vector<8x64xbf16>, vector<64x32xbf16>, vector<8x32xf32> -> vector<8x32xf32>
    %c0_25 = arith.constant 0 : index
    %c0_26 = arith.constant 0 : index
    %32 = vector.load %arg9[%c0_25, %c0_26] : memref<1x32xf32, #tpu.memory_space<vmem>>, vector<1x32xf32>
    %33 = vector.broadcast %32 : vector<1x32xf32> to vector<8x32xf32>
    %34 = arith.addf %31, %33 : vector<8x32xf32>
    %cst_27 = arith.constant 0.000000e+00 : f32
    %35 = vector.broadcast %cst_27 : f32 to vector<8x32xf32>
    %36 = arith.maximumf %34, %35 : vector<8x32xf32>
    %37 = arith.truncf %36 : vector<8x32xf32> to vector<8x32xbf16>
    %c0_28 = arith.constant 0 : index
    %c0_29 = arith.constant 0 : index
    %38 = vector.load %arg10[%c0_28, %c0_29] : memref<32x128xbf16, #tpu.memory_space<vmem>>, vector<32x128xbf16>
    %cst_30 = arith.constant dense<0.000000e+00> : vector<8x128xf32>
    %39 = tpu.matmul %37, %38, %cst_30 {dimension_numbers = #tpu.dot_dimension_numbers<[1], [0], [0], [1], [0, 0, 1, 1], [], []>} : vector<8x32xbf16>, vector<32x128xbf16>, vector<8x128xf32> -> vector<8x128xf32>
    %c0_31 = arith.constant 0 : index
    %c0_32 = arith.constant 0 : index
    %40 = vector.load %arg11[%c0_31, %c0_32] : memref<1x128xf32, #tpu.memory_space<vmem>>, vector<1x128xf32>
    %41 = vector.broadcast %40 : vector<1x128xf32> to vector<8x128xf32>
    %42 = arith.addf %39, %41 : vector<8x128xf32>
    %43 = arith.negf %42 : vector<8x128xf32>
    %44 = math.exp %43 : vector<8x128xf32>
    %cst_33 = arith.constant 1.000000e+00 : f32
    %45 = vector.broadcast %cst_33 : f32 to vector<8x128xf32>
    %46 = arith.addf %45, %44 : vector<8x128xf32>
    %47 = arith.divf %45, %46 : vector<8x128xf32>
    %c0_34 = arith.constant 0 : index
    %c0_35 = arith.constant 0 : index
    %48 = vector.load %arg16[%c0_34, %c0_35] : memref<8x128xf32, #tpu.memory_space<vmem>>, vector<8x128xf32>
    tpu.vector_store %arg16[%c0_34, %c0_35], %47 {strides = array<i32>} : memref<8x128xf32, #tpu.memory_space<vmem>>, vector<8x128xf32>,
    %49 = arith.truncf %20 : vector<8x512xf32> to vector<8x512xbf16>
    %c0_36 = arith.constant 0 : index
    %c0_37 = arith.constant 0 : index
    %50 = vector.load %arg12[%c0_36, %c0_37] : memref<512x512xbf16, #tpu.memory_space<vmem>>, vector<512x512xbf16>
    %cst_38 = arith.constant dense<0.000000e+00> : vector<8x512xf32>
    %51 = tpu.matmul %49, %50, %cst_38 {dimension_numbers = #tpu.dot_dimension_numbers<[1], [0], [0], [1], [0, 0, 1, 1], [], []>} : vector<8x512xbf16>, vector<512x512xbf16>, vector<8x512xf32> -> vector<8x512xf32>
    %c0_39 = arith.constant 0 : index
    %c0_40 = arith.constant 0 : index
    %52 = vector.load %arg13[%c0_39, %c0_40] : memref<1x512xf32, #tpu.memory_space<vmem>>, vector<1x512xf32>
    %53 = vector.broadcast %52 : vector<1x512xf32> to vector<8x512xf32>
    %54 = arith.addf %51, %53 : vector<8x512xf32>
    %cst_41 = arith.constant 0.000000e+00 : f32
    %55 = vector.broadcast %cst_41 : f32 to vector<8x512xf32>
    %56 = arith.maximumf %54, %55 : vector<8x512xf32>
    %57 = arith.truncf %56 : vector<8x512xf32> to vector<8x512xbf16>
    %c0_42 = arith.constant 0 : index
    %c0_43 = arith.constant 0 : index
    %58 = vector.load %arg14[%c0_42, %c0_43] : memref<512x128xbf16, #tpu.memory_space<vmem>>, vector<512x128xbf16>
    %cst_44 = arith.constant dense<0.000000e+00> : vector<8x128xf32>
    %59 = tpu.matmul %57, %58, %cst_44 {dimension_numbers = #tpu.dot_dimension_numbers<[1], [0], [0], [1], [0, 0, 1, 1], [], []>} : vector<8x512xbf16>, vector<512x128xbf16>, vector<8x128xf32> -> vector<8x128xf32>
    %c0_45 = arith.constant 0 : index
    %c0_46 = arith.constant 0 : index
    %60 = vector.load %arg15[%c0_45, %c0_46] : memref<1x128xf32, #tpu.memory_space<vmem>>, vector<1x128xf32>
    %61 = vector.broadcast %60 : vector<1x128xf32> to vector<8x128xf32>
    %62 = arith.addf %59, %61 : vector<8x128xf32>
    %c0_47 = arith.constant 0 : index
    %c0_48 = arith.constant 0 : index
    %63 = vector.load %arg17[%c0_47, %c0_48] : memref<8x128xf32, #tpu.memory_space<vmem>>, vector<8x128xf32>
    tpu.vector_store %arg17[%c0_47, %c0_48], %62 {strides = array<i32>} : memref<8x128xf32, #tpu.memory_space<vmem>>, vector<8x128xf32>,
    return
  }
  func.func @transform_0(%arg0: i32) -> (i32, i32, i32, i32) {
    %c0_i32 = arith.constant 0 : i32
    %c0_i32_0 = arith.constant 0 : i32
    %c0_i32_1 = arith.constant 0 : i32
    %c0_i32_2 = arith.constant 0 : i32
    return %arg0, %c0_i32, %c0_i32_0, %c0_i32_1 : i32, i32, i32, i32
  }
  func.func @transform_1(%arg0: i32) -> (i32, i32) {
    %c0_i32 = arith.constant 0 : i32
    %c0_i32_0 = arith.constant 0 : i32
    %c0_i32_1 = arith.constant 0 : i32
    return %c0_i32, %c0_i32_0 : i32, i32
  }
  func.func @transform_2(%arg0: i32) -> (i32, i32) {
    %c0_i32 = arith.constant 0 : i32
    %c0_i32_0 = arith.constant 0 : i32
    %c0_i32_1 = arith.constant 0 : i32
    return %c0_i32, %c0_i32_0 : i32, i32
  }
  func.func @transform_3(%arg0: i32) -> (i32, i32) {
    %c0_i32 = arith.constant 0 : i32
    %c0_i32_0 = arith.constant 0 : i32
    %c0_i32_1 = arith.constant 0 : i32
    return %c0_i32, %c0_i32_0 : i32, i32
  }
  func.func @transform_4(%arg0: i32) -> (i32, i32) {
    %c0_i32 = arith.constant 0 : i32
    %c0_i32_0 = arith.constant 0 : i32
    %c0_i32_1 = arith.constant 0 : i32
    return %c0_i32, %c0_i32_0 : i32, i32
  }
  func.func @transform_5(%arg0: i32) -> (i32, i32) {
    %c0_i32 = arith.constant 0 : i32
    %c0_i32_0 = arith.constant 0 : i32
    %c0_i32_1 = arith.constant 0 : i32
    return %c0_i32, %c0_i32_0 : i32, i32
  }
  func.func @transform_6(%arg0: i32) -> (i32, i32) {
    %c0_i32 = arith.constant 0 : i32
    %c0_i32_0 = arith.constant 0 : i32
    %c0_i32_1 = arith.constant 0 : i32
    return %c0_i32, %c0_i32_0 : i32, i32
  }
  func.func @transform_7(%arg0: i32) -> (i32, i32) {
    %c0_i32 = arith.constant 0 : i32
    %c0_i32_0 = arith.constant 0 : i32
    %c0_i32_1 = arith.constant 0 : i32
    return %c0_i32, %c0_i32_0 : i32, i32
  }
  func.func @transform_8(%arg0: i32) -> (i32, i32) {
    %c0_i32 = arith.constant 0 : i32
    %c0_i32_0 = arith.constant 0 : i32
    %c0_i32_1 = arith.constant 0 : i32
    return %c0_i32, %c0_i32_0 : i32, i32
  }
  func.func @transform_9(%arg0: i32) -> (i32, i32) {
    %c0_i32 = arith.constant 0 : i32
    %c0_i32_0 = arith.constant 0 : i32
    %c0_i32_1 = arith.constant 0 : i32
    return %c0_i32, %c0_i32_0 : i32, i32
  }
  func.func @transform_10(%arg0: i32) -> (i32, i32) {
    %c0_i32 = arith.constant 0 : i32
    %c0_i32_0 = arith.constant 0 : i32
    %c0_i32_1 = arith.constant 0 : i32
    return %c0_i32, %c0_i32_0 : i32, i32
  }
  func.func @transform_11(%arg0: i32) -> (i32, i32) {
    %c0_i32 = arith.constant 0 : i32
    %c0_i32_0 = arith.constant 0 : i32
    %c0_i32_1 = arith.constant 0 : i32
    return %c0_i32, %c0_i32_0 : i32, i32
  }
  func.func @transform_12(%arg0: i32) -> (i32, i32) {
    %c0_i32 = arith.constant 0 : i32
    %c0_i32_0 = arith.constant 0 : i32
    %c0_i32_1 = arith.constant 0 : i32
    return %c0_i32, %c0_i32_0 : i32, i32
  }
  func.func @transform_13(%arg0: i32) -> (i32, i32) {
    %c0_i32 = arith.constant 0 : i32
    %c0_i32_0 = arith.constant 0 : i32
    %c0_i32_1 = arith.constant 0 : i32
    return %c0_i32, %c0_i32_0 : i32, i32
  }
  func.func @transform_14(%arg0: i32) -> (i32, i32) {
    %c0_i32 = arith.constant 0 : i32
    %c0_i32_0 = arith.constant 0 : i32
    %c0_i32_1 = arith.constant 0 : i32
    return %c0_i32, %c0_i32_0 : i32, i32
  }
  func.func @transform_15(%arg0: i32) -> (i32, i32) {
    %c0_i32 = arith.constant 0 : i32
    %c0_i32_0 = arith.constant 0 : i32
    return %arg0, %c0_i32 : i32, i32
  }
  func.func @transform_16(%arg0: i32) -> (i32, i32) {
    %c0_i32 = arith.constant 0 : i32
    %c0_i32_0 = arith.constant 0 : i32
    return %arg0, %c0_i32 : i32, i32
  }
}

</mosaic_0001>

<llo_original>
// kernel: tpu_custom_call.1
$region0: #{tpu_custom_call.1}
  #allocation0 [shape = 'u32[]', space=smem, size = 0x4, offset = 0x4, fixed_abs, tag = 'smem constant byte address 0x4 - core index']
  #allocation1 [shape = 'u32[144,128]{1,0:T(1,128)}', space=vmem, size = 0x12000, scoped, tag = 'internal scratch']
  %s0 = inlined_call_operand.vmem [shape: f32[16,4,2,128], index: 0, kind: input, shape index: {}]
  %s1 = inlined_call_operand.hbm [shape: bf16[4,256], index: 1, kind: input, shape index: {}]
  %s2 = inlined_call_operand.hbm [shape: f32[1,256], index: 2, kind: input, shape index: {}]
  %s3 = inlined_call_operand.hbm [shape: bf16[256,640], index: 3, kind: input, shape index: {}]
  %s4 = inlined_call_operand.hbm [shape: f32[1,640], index: 4, kind: input, shape index: {}]
  %s5 = inlined_call_operand.vmem [shape: bf16[128,64], index: 5, kind: input, shape index: {}]
  %s6 = inlined_call_operand.vmem [shape: f32[1,64], index: 6, kind: input, shape index: {}]
  %s7 = inlined_call_operand.vmem [shape: bf16[64,32], index: 7, kind: input, shape index: {}]
  %s8 = inlined_call_operand.hbm [shape: f32[1,32], index: 8, kind: input, shape index: {}]
  %s9 = inlined_call_operand.vmem [shape: bf16[32,128], index: 9, kind: input, shape index: {}]
  %s10 = inlined_call_operand.hbm [shape: f32[1,128], index: 10, kind: input, shape index: {}]
  %s11 = inlined_call_operand.hbm [shape: bf16[512,512], index: 11, kind: input, shape index: {}]
  %s12 = inlined_call_operand.vmem [shape: f32[1,512], index: 12, kind: input, shape index: {}]
  %s13 = inlined_call_operand.hbm [shape: bf16[512,128], index: 13, kind: input, shape index: {}]
  %s14 = inlined_call_operand.vmem [shape: f32[1,128], index: 14, kind: input, shape index: {}]
  %s15 = inlined_call_operand.hbm [shape: f32[16,128], index: 15, kind: output, shape index: {0}]
  %s16 = inlined_call_operand.hbm [shape: f32[16,128], index: 16, kind: output, shape index: {1}]
  %17 = xla_tuple %s15, %s16
  %s18 = sld [smem:[#allocation0]]
  $region133: #{tpu_custom_call.1} parent=0
    _
  %s20 = ssub.s32 1, %s18
  %s21 = scalar_select 0, %s20, %s18
  $region1: #{tpu_custom_call.1} parent=0
    #allocation2 [shape = 'u8[2048]{0}', space=vmem, size = 0x800, scoped, tag = 'input window, operand 1, single buffered']
    #allocation3 [shape = 's32[2]{0}', space=sflag, size = 0x8, scoped, tag = 'scoped memory for tpu_custom_call.1']
    #allocation4 [shape = 's32[2]{0}', space=sflag, size = 0x8, scoped, tag = 'scoped memory for tpu_custom_call.1']
    #allocation5 [shape = 'u8[1024]{0}', space=vmem, size = 0x400, scoped, tag = 'input window, operand 2, single buffered']
    #allocation6 [shape = 's32[1]{0}', space=sflag, size = 0x4, scoped, tag = 'scoped memory for tpu_custom_call.1']
    #allocation7 [shape = 'u8[327680]{0}', space=vmem, size = 0x50000, scoped, tag = 'input window, operand 3, single buffered']
    #allocation8 [shape = 'u8[2560]{0}', space=vmem, size = 0xc00, scoped, tag = 'input window, operand 4, single buffered']
    #allocation9 [shape = 's32[1]{0}', space=sflag, size = 0x4, scoped, tag = 'scoped memory for tpu_custom_call.1']
    #allocation10 [shape = 'u8[512]{0}', space=vmem, size = 0x400, scoped, tag = 'input window, operand 8, single buffered']
    #allocation11 [shape = 'u8[512]{0}', space=vmem, size = 0x400, scoped, tag = 'input window, operand 10, single buffered']
    #allocation12 [shape = 's32[1]{0}', space=sflag, size = 0x4, scoped, tag = 'scoped memory for tpu_custom_call.1']
    #allocation13 [shape = 'u8[524288]{0}', space=vmem, size = 0x80000, scoped, tag = 'input window, operand 11, single buffered']
    #allocation14 [shape = 'u8[131072]{0}', space=vmem, size = 0x20000, scoped, tag = 'input window, operand 13, single buffered']
    #allocation15 [shape = 's32[1]{0}', space=sflag, size = 0x4, scoped, tag = 'scoped memory for tpu_custom_call.1']
    #allocation16 [shape = 'u8[8192]{0}', space=vmem, size = 0x2000, scoped, tag = 'output window, operand 0']
    #allocation17 [shape = 'u8[8192]{0}', space=vmem, size = 0x2000, scoped, tag = 'output window, operand 1']
    #allocation18 [shape = 's32[2]{0}', space=sflag, size = 0x8, scoped, tag = 'scoped memory for tpu_custom_call.1']
    %22 = vsyncpa [#allocation3], 0
    %23 = vsyncpa [#allocation6], 0
    %24 = vsyncpa [#allocation9], 0
    %25 = vsyncpa [#allocation12], 0
    %26 = vsyncpa [#allocation15], 0
    %27 = vsyncpa [#allocation4], 0
    %s28 = scalar_lea.sflag [#allocation4], 1
    %29 = vsyncpa %s28, 0
    %30 = vsyncpa [#allocation18], 0
    %s31 = scalar_lea.sflag [#allocation18], 1
    %32 = vsyncpa %s31, 0
    loop: start=0, step=1, limit=4
    $region2: #{tpu_custom_call.1} parent=1 // loop_pre_header
      _
    $region3: #{tpu_custom_call.1} parent=1 // loop_header
      %s34 = sphi 0, %s38
      %p35 = scmp.ge.s32.totalorder %s34, 4
      %s44 = sphi 0, %s46
      %s47 = sphi 0, %s44
      %s48 = sphi 0, %s47
      %s64 = sphi 0, %s48
      %s68 = sphi 0, %s68
      %s70 = sphi 0, %s68
      %s71 = sphi 0, %s70
      %s85 = sphi 0, %s71
      %s89 = sphi 0, %s89
      %s91 = sphi 0, %s89
      %s92 = sphi 0, %s91
      %s106 = sphi 0, %s92
      %s110 = sphi 0, %s110
      %s112 = sphi 0, %s110
      %s113 = sphi 0, %s112
      %s127 = sphi 0, %s113
      %s131 = sphi 0, %s131
      %s133 = sphi 0, %s131
      %s134 = sphi 0, %s133
      %s148 = sphi 0, %s134
      %s152 = sphi 0, %s152
      %s154 = sphi 0, %s152
      %s155 = sphi 0, %s154
      %s169 = sphi 0, %s155
      %s173 = sphi 0, %s173
      %s175 = sphi 0, %s173
      %s176 = sphi 0, %s175
      %s190 = sphi 0, %s176
      %s194 = sphi 0, %s194
      %s196 = sphi 0, %s194
      %s197 = sphi 0, %s196
      %s211 = sphi 0, %s197
      %s215 = sphi 0, %s215
      %s217 = sphi 0, %s215
      %s218 = sphi 0, %s217
      %s232 = sphi 0, %s218
      %s236 = sphi 0, %s236
      %s238 = sphi 0, %s236
      %s239 = sphi 0, %s238
      %s253 = sphi 0, %s239
      %s257 = sphi 0, %s257
      %s259 = sphi 0, %s257
      %s260 = sphi 0, %s259
      %s274 = sphi 0, %s260
      %s278 = sphi 0, %s278
      %s280 = sphi 0, %s278
      %s281 = sphi 0, %s280
      %s295 = sphi 0, %s281
      %s299 = sphi 0, %s299
      %s301 = sphi 0, %s299
      %s302 = sphi 0, %s301
      %s316 = sphi 0, %s302
      %s320 = sphi 0, %s320
      %s322 = sphi 0, %s320
      %s323 = sphi 0, %s322
      %s337 = sphi 0, %s323
      %s341 = sphi 0, %s341
      %s343 = sphi 0, %s341
      %s344 = sphi 0, %s343
      %s358 = sphi 0, %s344
      %s364 = sphi 0, %s366
      %s367 = sphi 0, %s364
      %s368 = sphi 0, %s367
      %s384 = sphi 0, %s368
      %s390 = sphi 0, %s392
      %s393 = sphi 0, %s390
      %s394 = sphi 0, %s393
      %s410 = sphi 0, %s394
    $region4: #{tpu_custom_call.1} parent=1 // loop_header_branch
      %37 = sbr.rel (%p35) target = $region8
    $region5: #{tpu_custom_call.1} parent=1 // loop_body
      %s39 = ssub.s32 %s34, 1
      %s40 = ssub.s32 %s34, 2
      %s41 = sadd.s32 %s34, 1
      %s42 = ssub.s32 %s34, %s41
      %p43 = scmp.eq.s32.totalorder %s42, 0
      %s45 = sadd.s32 %s44, 1
      %s46 = scalar_select %p43, %s44, %s45
      %p49 = pneg %p43
      %p50 = scmp.eq.s32.totalorder %s34, 1
      %p51 = por %p49, %p50
      %p52 = scmp.ne.s32.totalorder %s44, %s47
      %p53 = scmp.eq.s32.totalorder %s34, 0
      %p54 = por %p52, %p53
      %p55 = scmp.ne.s32.totalorder %s44, %s47
      %p56 = scmp.eq.s32.totalorder %s39, 1
      %p57 = por %p55, %p56
      %p58 = scmp.ne.s32.totalorder %s47, %s48
      %p59 = scmp.eq.s32.totalorder %s39, 0
      %p60 = por %p58, %p59
      %p61 = scmp.ne.s32.totalorder %s47, %s48
      %p62 = scmp.eq.s32.totalorder %s40, 1
      %p63 = por %p61, %p62
      %p65 = scmp.ne.s32.totalorder %s48, %s64
      %p66 = scmp.eq.s32.totalorder %s40, 0
      %p67 = por %p65, %p66
      %s69 = sadd.s32 %s68, 1
      %p72 = scmp.eq.s32.totalorder %s34, 1
      %p73 = scmp.ne.s32.totalorder %s68, %s70
      %p74 = scmp.eq.s32.totalorder %s34, 0
      %p75 = por %p73, %p74
      %p76 = scmp.ne.s32.totalorder %s68, %s70
      %p77 = scmp.eq.s32.totalorder %s39, 1
      %p78 = por %p76, %p77
      %p79 = scmp.ne.s32.totalorder %s70, %s71
      %p80 = scmp.eq.s32.totalorder %s39, 0
      %p81 = por %p79, %p80
      %p82 = scmp.ne.s32.totalorder %s70, %s71
      %p83 = scmp.eq.s32.totalorder %s40, 1
      %p84 = por %p82, %p83
      %p86 = scmp.ne.s32.totalorder %s71, %s85
      %p87 = scmp.eq.s32.totalorder %s40, 0
      %p88 = por %p86, %p87
      %s90 = sadd.s32 %s89, 1
      %p93 = scmp.eq.s32.totalorder %s34, 1
      %p94 = scmp.ne.s32.totalorder %s89, %s91
      %p95 = scmp.eq.s32.totalorder %s34, 0
      %p96 = por %p94, %p95
      %p97 = scmp.ne.s32.totalorder %s89, %s91
      %p98 = scmp.eq.s32.totalorder %s39, 1
      %p99 = por %p97, %p98
      %p100 = scmp.ne.s32.totalorder %s91, %s92
      %p101 = scmp.eq.s32.totalorder %s39, 0
      %p102 = por %p100, %p101
      %p103 = scmp.ne.s32.totalorder %s91, %s92
      %p104 = scmp.eq.s32.totalorder %s40, 1
      %p105 = por %p103, %p104
      %p107 = scmp.ne.s32.totalorder %s92, %s106
      %p108 = scmp.eq.s32.totalorder %s40, 0
      %p109 = por %p107, %p108
      %s111 = sadd.s32 %s110, 1
      %p114 = scmp.eq.s32.totalorder %s34, 1
      %p115 = scmp.ne.s32.totalorder %s110, %s112
      %p116 = scmp.eq.s32.totalorder %s34, 0
      %p117 = por %p115, %p116
      %p118 = scmp.ne.s32.totalorder %s110, %s112
      %p119 = scmp.eq.s32.totalorder %s39, 1
      %p120 = por %p118, %p119
      %p121 = scmp.ne.s32.totalorder %s112, %s113
      %p122 = scmp.eq.s32.totalorder %s39, 0
      %p123 = por %p121, %p122
      %p124 = scmp.ne.s32.totalorder %s112, %s113
      %p125 = scmp.eq.s32.totalorder %s40, 1
      %p126 = por %p124, %p125
      %p128 = scmp.ne.s32.totalorder %s113, %s127
      %p129 = scmp.eq.s32.totalorder %s40, 0
      %p130 = por %p128, %p129
      %s132 = sadd.s32 %s131, 1
      %p135 = scmp.eq.s32.totalorder %s34, 1
      %p136 = scmp.ne.s32.totalorder %s131, %s133
      %p137 = scmp.eq.s32.totalorder %s34, 0
      %p138 = por %p136, %p137
      %p139 = scmp.ne.s32.totalorder %s131, %s133
      %p140 = scmp.eq.s32.totalorder %s39, 1
      %p141 = por %p139, %p140
      %p142 = scmp.ne.s32.totalorder %s133, %s134
      %p143 = scmp.eq.s32.totalorder %s39, 0
      %p144 = por %p142, %p143
      %p145 = scmp.ne.s32.totalorder %s133, %s134
      %p146 = scmp.eq.s32.totalorder %s40, 1
      %p147 = por %p145, %p146
      %p149 = scmp.ne.s32.totalorder %s134, %s148
      %p150 = scmp.eq.s32.totalorder %s40, 0
      %p151 = por %p149, %p150
      %s153 = sadd.s32 %s152, 1
      %p156 = scmp.eq.s32.totalorder %s34, 1
      %p157 = scmp.ne.s32.totalorder %s152, %s154
      %p158 = scmp.eq.s32.totalorder %s34, 0
      %p159 = por %p157, %p158
      %p160 = scmp.ne.s32.totalorder %s152, %s154
      %p161 = scmp.eq.s32.totalorder %s39, 1
      %p162 = por %p160, %p161
      %p163 = scmp.ne.s32.totalorder %s154, %s155
      %p164 = scmp.eq.s32.totalorder %s39, 0
      %p165 = por %p163, %p164
      %p166 = scmp.ne.s32.totalorder %s154, %s155
      %p167 = scmp.eq.s32.totalorder %s40, 1
      %p168 = por %p166, %p167
      %p170 = scmp.ne.s32.totalorder %s155, %s169
      %p171 = scmp.eq.s32.totalorder %s40, 0
      %p172 = por %p170, %p171
      %s174 = sadd.s32 %s173, 1
      %p177 = scmp.eq.s32.totalorder %s34, 1
      %p178 = scmp.ne.s32.totalorder %s173, %s175
      %p179 = scmp.eq.s32.totalorder %s34, 0
      %p180 = por %p178, %p179
      %p181 = scmp.ne.s32.totalorder %s173, %s175
      %p182 = scmp.eq.s32.totalorder %s39, 1
      %p183 = por %p181, %p182
      %p184 = scmp.ne.s32.totalorder %s175, %s176
      %p185 = scmp.eq.s32.totalorder %s39, 0
      %p186 = por %p184, %p185
      %p187 = scmp.ne.s32.totalorder %s175, %s176
      %p188 = scmp.eq.s32.totalorder %s40, 1
      %p189 = por %p187, %p188
      %p191 = scmp.ne.s32.totalorder %s176, %s190
      %p192 = scmp.eq.s32.totalorder %s40, 0
      %p193 = por %p191, %p192
      %s195 = sadd.s32 %s194, 1
      %p198 = scmp.eq.s32.totalorder %s34, 1
      %p199 = scmp.ne.s32.totalorder %s194, %s196
      %p200 = scmp.eq.s32.totalorder %s34, 0
      %p201 = por %p199, %p200
      %p202 = scmp.ne.s32.totalorder %s194, %s196
      %p203 = scmp.eq.s32.totalorder %s39, 1
      %p204 = por %p202, %p203
      %p205 = scmp.ne.s32.totalorder %s196, %s197
      %p206 = scmp.eq.s32.totalorder %s39, 0
      %p207 = por %p205, %p206
      %p208 = scmp.ne.s32.totalorder %s196, %s197
      %p209 = scmp.eq.s32.totalorder %s40, 1
      %p210 = por %p208, %p209
      %p212 = scmp.ne.s32.totalorder %s197, %s211
      %p213 = scmp.eq.s32.totalorder %s40, 0
      %p214 = por %p212, %p213
      %s216 = sadd.s32 %s215, 1
      %p219 = scmp.eq.s32.totalorder %s34, 1
      %p220 = scmp.ne.s32.totalorder %s215, %s217
      %p221 = scmp.eq.s32.totalorder %s34, 0
      %p222 = por %p220, %p221
      %p223 = scmp.ne.s32.totalorder %s215, %s217
      %p224 = scmp.eq.s32.totalorder %s39, 1
      %p225 = por %p223, %p224
      %p226 = scmp.ne.s32.totalorder %s217, %s218
      %p227 = scmp.eq.s32.totalorder %s39, 0
      %p228 = por %p226, %p227
      %p229 = scmp.ne.s32.totalorder %s217, %s218
      %p230 = scmp.eq.s32.totalorder %s40, 1
      %p231 = por %p229, %p230
      %p233 = scmp.ne.s32.totalorder %s218, %s232
      %p234 = scmp.eq.s32.totalorder %s40, 0
      %p235 = por %p233, %p234
      %s237 = sadd.s32 %s236, 1
      %p240 = scmp.eq.s32.totalorder %s34, 1
      %p241 = scmp.ne.s32.totalorder %s236, %s238
      %p242 = scmp.eq.s32.totalorder %s34, 0
      %p243 = por %p241, %p242
      %p244 = scmp.ne.s32.totalorder %s236, %s238
      %p245 = scmp.eq.s32.totalorder %s39, 1
      %p246 = por %p244, %p245
      %p247 = scmp.ne.s32.totalorder %s238, %s239
      %p248 = scmp.eq.s32.totalorder %s39, 0
      %p249 = por %p247, %p248
      %p250 = scmp.ne.s32.totalorder %s238, %s239
      %p251 = scmp.eq.s32.totalorder %s40, 1
      %p252 = por %p250, %p251
      %p254 = scmp.ne.s32.totalorder %s239, %s253
      %p255 = scmp.eq.s32.totalorder %s40, 0
      %p256 = por %p254, %p255
      %s258 = sadd.s32 %s257, 1
      %p261 = scmp.eq.s32.totalorder %s34, 1
      %p262 = scmp.ne.s32.totalorder %s257, %s259
      %p263 = scmp.eq.s32.totalorder %s34, 0
      %p264 = por %p262, %p263
      %p265 = scmp.ne.s32.totalorder %s257, %s259
      %p266 = scmp.eq.s32.totalorder %s39, 1
      %p267 = por %p265, %p266
      %p268 = scmp.ne.s32.totalorder %s259, %s260
      %p269 = scmp.eq.s32.totalorder %s39, 0
      %p270 = por %p268, %p269
      %p271 = scmp.ne.s32.totalorder %s259, %s260
      %p272 = scmp.eq.s32.totalorder %s40, 1
      %p273 = por %p271, %p272
      %p275 = scmp.ne.s32.totalorder %s260, %s274
      %p276 = scmp.eq.s32.totalorder %s40, 0
      %p277 = por %p275, %p276
      %s279 = sadd.s32 %s278, 1
      %p282 = scmp.eq.s32.totalorder %s34, 1
      %p283 = scmp.ne.s32.totalorder %s278, %s280
      %p284 = scmp.eq.s32.totalorder %s34, 0
      %p285 = por %p283, %p284
      %p286 = scmp.ne.s32.totalorder %s278, %s280
      %p287 = scmp.eq.s32.totalorder %s39, 1
      %p288 = por %p286, %p287
      %p289 = scmp.ne.s32.totalorder %s280, %s281
      %p290 = scmp.eq.s32.totalorder %s39, 0
      %p291 = por %p289, %p290
      %p292 = scmp.ne.s32.totalorder %s280, %s281
      %p293 = scmp.eq.s32.totalorder %s40, 1
      %p294 = por %p292, %p293
      %p296 = scmp.ne.s32.totalorder %s281, %s295
      %p297 = scmp.eq.s32.totalorder %s40, 0
      %p298 = por %p296, %p297
      %s300 = sadd.s32 %s299, 1
      %p303 = scmp.eq.s32.totalorder %s34, 1
      %p304 = scmp.ne.s32.totalorder %s299, %s301
      %p305 = scmp.eq.s32.totalorder %s34, 0
      %p306 = por %p304, %p305
      %p307 = scmp.ne.s32.totalorder %s299, %s301
      %p308 = scmp.eq.s32.totalorder %s39, 1
      %p309 = por %p307, %p308
      %p310 = scmp.ne.s32.totalorder %s301, %s302
      %p311 = scmp.eq.s32.totalorder %s39, 0
      %p312 = por %p310, %p311
      %p313 = scmp.ne.s32.totalorder %s301, %s302
      %p314 = scmp.eq.s32.totalorder %s40, 1
      %p315 = por %p313, %p314
      %p317 = scmp.ne.s32.totalorder %s302, %s316
      %p318 = scmp.eq.s32.totalorder %s40, 0
      %p319 = por %p317, %p318
      %s321 = sadd.s32 %s320, 1
      %p324 = scmp.eq.s32.totalorder %s34, 1
      %p325 = scmp.ne.s32.totalorder %s320, %s322
      %p326 = scmp.eq.s32.totalorder %s34, 0
      %p327 = por %p325, %p326
      %p328 = scmp.ne.s32.totalorder %s320, %s322
      %p329 = scmp.eq.s32.totalorder %s39, 1
      %p330 = por %p328, %p329
      %p331 = scmp.ne.s32.totalorder %s322, %s323
      %p332 = scmp.eq.s32.totalorder %s39, 0
      %p333 = por %p331, %p332
      %p334 = scmp.ne.s32.totalorder %s322, %s323
      %p335 = scmp.eq.s32.totalorder %s40, 1
      %p336 = por %p334, %p335
      %p338 = scmp.ne.s32.totalorder %s323, %s337
      %p339 = scmp.eq.s32.totalorder %s40, 0
      %p340 = por %p338, %p339
      %s342 = sadd.s32 %s341, 1
      %p345 = scmp.eq.s32.totalorder %s34, 1
      %p346 = scmp.ne.s32.totalorder %s341, %s343
      %p347 = scmp.eq.s32.totalorder %s34, 0
      %p348 = por %p346, %p347
      %p349 = scmp.ne.s32.totalorder %s341, %s343
      %p350 = scmp.eq.s32.totalorder %s39, 1
      %p351 = por %p349, %p350
      %p352 = scmp.ne.s32.totalorder %s343, %s344
      %p353 = scmp.eq.s32.totalorder %s39, 0
      %p354 = por %p352, %p353
      %p355 = scmp.ne.s32.totalorder %s343, %s344
      %p356 = scmp.eq.s32.totalorder %s40, 1
      %p357 = por %p355, %p356
      %p359 = scmp.ne.s32.totalorder %s344, %s358
      %p360 = scmp.eq.s32.totalorder %s40, 0
      %p361 = por %p359, %p360
      %s362 = ssub.s32 %s34, %s41
      %p363 = scmp.eq.s32.totalorder %s362, 0
      %s365 = sadd.s32 %s364, 1
      %s366 = scalar_select %p363, %s364, %s365
      %p369 = pneg %p363
      %p370 = scmp.eq.s32.totalorder %s34, 1
      %p371 = por %p369, %p370
      %p372 = scmp.ne.s32.totalorder %s364, %s367
      %p373 = scmp.eq.s32.totalorder %s34, 0
      %p374 = por %p372, %p373
      %p375 = scmp.ne.s32.totalorder %s364, %s367
      %p376 = scmp.eq.s32.totalorder %s39, 1
      %p377 = por %p375, %p376
      %p378 = scmp.ne.s32.totalorder %s367, %s368
      %p379 = scmp.eq.s32.totalorder %s39, 0
      %p380 = por %p378, %p379
      %p381 = scmp.ne.s32.totalorder %s367, %s368
      %p382 = scmp.eq.s32.totalorder %s40, 1
      %p383 = por %p381, %p382
      %p385 = scmp.ne.s32.totalorder %s368, %s384
      %p386 = scmp.eq.s32.totalorder %s40, 0
      %p387 = por %p385, %p386
      %s388 = ssub.s32 %s34, %s41
      %p389 = scmp.eq.s32.totalorder %s388, 0
      %s391 = sadd.s32 %s390, 1
      %s392 = scalar_select %p389, %s390, %s391
      %p395 = pneg %p389
      %p396 = scmp.eq.s32.totalorder %s34, 1
      %p397 = por %p395, %p396
      %p398 = scmp.ne.s32.totalorder %s390, %s393
      %p399 = scmp.eq.s32.totalorder %s34, 0
      %p400 = por %p398, %p399
      %p401 = scmp.ne.s32.totalorder %s390, %s393
      %p402 = scmp.eq.s32.totalorder %s39, 1
      %p403 = por %p401, %p402
      %p404 = scmp.ne.s32.totalorder %s393, %s394
      %p405 = scmp.eq.s32.totalorder %s39, 0
      %p406 = por %p404, %p405
      %p407 = scmp.ne.s32.totalorder %s393, %s394
      %p408 = scmp.eq.s32.totalorder %s40, 1
      %p409 = por %p407, %p408
      %p411 = scmp.ne.s32.totalorder %s394, %s410
      %p412 = scmp.eq.s32.totalorder %s40, 0
      %p413 = por %p411, %p412
      %p414 = scmp.le.s32.totalorder 1, %s34
      %p415 = scmp.lt.s32.totalorder %s34, 3
      %p416 = pnand %p414, %p415
      %p417 = pneg %p416
      // Predicated region
      $region9: #{tpu_custom_call.1} parent=5 // pred_check
        _
      $region10: #{tpu_custom_call.1} parent=5 // pred_check_branch
        %419 = sbr.rel (%p416) target = $region12
      $region11: #{tpu_custom_call.1} parent=5 // pred_region
        %s420 = ssub.s32 %s34, 1
        // Predicated region
        $region13: #{tpu_custom_call.1} parent=11 // pred_check
          %p421 = pneg %p81
        $region14: #{tpu_custom_call.1} parent=11 // pred_check_branch
          %423 = sbr.rel (%p421) target = $region16
        $region15: #{tpu_custom_call.1} parent=11 // pred_region
          %s425 = ssub.s32 64, 64
          %426 = vsyncadd [#allocation3], %s425
          %s428 = sshll.u32 [#allocation2], 4
          %s429 = int_to_ptr.vmem [resolvable:$true] %s428
          %431 = dma.hbm_to_vmem [thread:$0]  %s1, 64, %s429, [#allocation3]
        $region16: #{tpu_custom_call.1} parent=11 // pred_fallthru
          _
        // Predicated region
        $region17: #{tpu_custom_call.1} parent=11 // pred_check
          %p432 = pneg %p102
        $region18: #{tpu_custom_call.1} parent=11 // pred_check_branch
          %434 = sbr.rel (%p432) target = $region20
        $region19: #{tpu_custom_call.1} parent=11 // pred_region
          %s436 = ssub.s32 32, 32
          %437 = vsyncadd [#allocation6], %s436
          %s439 = sshll.u32 [#allocation5], 4
          %s440 = int_to_ptr.vmem [resolvable:$true] %s439
          %442 = dma.hbm_to_vmem [thread:$0]  %s2, 32, %s440, [#allocation6]
        $region20: #{tpu_custom_call.1} parent=11 // pred_fallthru
          _
        // Predicated region
        $region21: #{tpu_custom_call.1} parent=11 // pred_check
          %p443 = pneg %p123
        $region22: #{tpu_custom_call.1} parent=11 // pred_check_branch
          %445 = sbr.rel (%p443) target = $region24
        $region23: #{tpu_custom_call.1} parent=11 // pred_region
          %s447 = ssub.s32 10240, 10240
          %448 = vsyncadd [#allocation6], %s447
          %s449 = sshll.u32 [#allocation7], 4
          %s450 = int_to_ptr.vmem [resolvable:$true] %s449
          %455 = dma.hbm_to_vmem [thread:$0]  %s3, 10240, %s450, [#allocation6], 320, 320, 20
        $region24: #{tpu_custom_call.1} parent=11 // pred_fallthru
          _
        // Predicated region
        $region25: #{tpu_custom_call.1} parent=11 // pred_check
          %p456 = pneg %p144
        $region26: #{tpu_custom_call.1} parent=11 // pred_check_branch
          %458 = sbr.rel (%p456) target = $region28
        $region27: #{tpu_custom_call.1} parent=11 // pred_region
          %s460 = ssub.s32 80, 80
          %461 = vsyncadd [#allocation9], %s460
          %s463 = sshll.u32 [#allocation8], 4
          %s464 = int_to_ptr.vmem [resolvable:$true] %s463
          %466 = dma.hbm_to_vmem [thread:$0]  %s4, 80, %s464, [#allocation9]
        $region28: #{tpu_custom_call.1} parent=11 // pred_fallthru
          _
        // Predicated region
        $region29: #{tpu_custom_call.1} parent=11 // pred_check
          %p467 = pneg %p165
        $region30: #{tpu_custom_call.1} parent=11 // pred_check_branch
          %469 = sbr.rel (%p467) target = $region32
        $region31: #{tpu_custom_call.1} parent=11 // pred_region
          _
        $region32: #{tpu_custom_call.1} parent=11 // pred_fallthru
          _
        // Predicated region
        $region33: #{tpu_custom_call.1} parent=11 // pred_check
          %p470 = pneg %p186
        $region34: #{tpu_custom_call.1} parent=11 // pred_check_branch
          %472 = sbr.rel (%p470) target = $region36
        $region35: #{tpu_custom_call.1} parent=11 // pred_region
          _
        $region36: #{tpu_custom_call.1} parent=11 // pred_fallthru
          _
        // Predicated region
        $region37: #{tpu_custom_call.1} parent=11 // pred_check
          %p473 = pneg %p207
        $region38: #{tpu_custom_call.1} parent=11 // pred_check_branch
          %475 = sbr.rel (%p473) target = $region40
        $region39: #{tpu_custom_call.1} parent=11 // pred_region
          _
        $region40: #{tpu_custom_call.1} parent=11 // pred_fallthru
          _
        // Predicated region
        $region41: #{tpu_custom_call.1} parent=11 // pred_check
          %p476 = pneg %p228
        $region42: #{tpu_custom_call.1} parent=11 // pred_check_branch
          %478 = sbr.rel (%p476) target = $region44
        $region43: #{tpu_custom_call.1} parent=11 // pred_region
          %s480 = ssub.s32 16, 16
          %481 = vsyncadd [#allocation9], %s480
          %s483 = sshll.u32 [#allocation10], 4
          %s484 = int_to_ptr.vmem [resolvable:$true] %s483
          %486 = dma.hbm_to_vmem [thread:$0]  %s8, 16, %s484, [#allocation9]
        $region44: #{tpu_custom_call.1} parent=11 // pred_fallthru
          _
        // Predicated region
        $region45: #{tpu_custom_call.1} parent=11 // pred_check
          %p487 = pneg %p249
        $region46: #{tpu_custom_call.1} parent=11 // pred_check_branch
          %489 = sbr.rel (%p487) target = $region48
        $region47: #{tpu_custom_call.1} parent=11 // pred_region
          _
        $region48: #{tpu_custom_call.1} parent=11 // pred_fallthru
          _
        // Predicated region
        $region49: #{tpu_custom_call.1} parent=11 // pred_check
          %p490 = pneg %p270
        $region50: #{tpu_custom_call.1} parent=11 // pred_check_branch
          %492 = sbr.rel (%p490) target = $region52
        $region51: #{tpu_custom_call.1} parent=11 // pred_region
          %s494 = ssub.s32 16, 16
          %495 = vsyncadd [#allocation12], %s494
          %s497 = sshll.u32 [#allocation11], 4
          %s498 = int_to_ptr.vmem [resolvable:$true] %s497
          %500 = dma.hbm_to_vmem [thread:$0]  %s10, 16, %s498, [#allocation12]
        $region52: #{tpu_custom_call.1} parent=11 // pred_fallthru
          _
        // Predicated region
        $region53: #{tpu_custom_call.1} parent=11 // pred_check
          %p501 = pneg %p291
        $region54: #{tpu_custom_call.1} parent=11 // pred_check_branch
          %503 = sbr.rel (%p501) target = $region56
        $region55: #{tpu_custom_call.1} parent=11 // pred_region
          %s505 = ssub.s32 16384, 16384
          %506 = vsyncadd [#allocation12], %s505
          %s507 = sshll.u32 [#allocation13], 4
          %s508 = int_to_ptr.vmem [resolvable:$true] %s507
          %513 = dma.hbm_to_vmem [thread:$0]  %s11, 16384, %s508, [#allocation12], 256, 256, 16
        $region56: #{tpu_custom_call.1} parent=11 // pred_fallthru
          _
        // Predicated region
        $region57: #{tpu_custom_call.1} parent=11 // pred_check
          %p514 = pneg %p312
        $region58: #{tpu_custom_call.1} parent=11 // pred_check_branch
          %516 = sbr.rel (%p514) target = $region60
        $region59: #{tpu_custom_call.1} parent=11 // pred_region
          _
        $region60: #{tpu_custom_call.1} parent=11 // pred_fallthru
          _
        // Predicated region
        $region61: #{tpu_custom_call.1} parent=11 // pred_check
          %p517 = pneg %p333
        $region62: #{tpu_custom_call.1} parent=11 // pred_check_branch
          %519 = sbr.rel (%p517) target = $region64
        $region63: #{tpu_custom_call.1} parent=11 // pred_region
          %s521 = ssub.s32 4096, 4096
          %522 = vsyncadd [#allocation15], %s521
          %s523 = sshll.u32 [#allocation14], 4
          %s524 = int_to_ptr.vmem [resolvable:$true] %s523
          %529 = dma.hbm_to_vmem [thread:$0]  %s13, 4096, %s524, [#allocation15], 64, 64, 4
        $region64: #{tpu_custom_call.1} parent=11 // pred_fallthru
          _
        // Predicated region
        $region65: #{tpu_custom_call.1} parent=11 // pred_check
          %p530 = pneg %p354
        $region66: #{tpu_custom_call.1} parent=11 // pred_check_branch
          %532 = sbr.rel (%p530) target = $region68
        $region67: #{tpu_custom_call.1} parent=11 // pred_region
          _
        $region68: #{tpu_custom_call.1} parent=11 // pred_fallthru
          _
      $region12: #{tpu_custom_call.1} parent=5 // pred_fallthru
        _
      %p533 = scmp.lt.s32.totalorder %s34, 2
      // Predicated region
      $region69: #{tpu_custom_call.1} parent=5 // pred_check
        %p534 = pneg %p533
      $region70: #{tpu_custom_call.1} parent=5 // pred_check_branch
        %536 = sbr.rel (%p534) target = $region72
      $region71: #{tpu_custom_call.1} parent=5 // pred_region
        // Predicated region
        $region73: #{tpu_custom_call.1} parent=71 // pred_check
          %p537 = pneg %p54
        $region74: #{tpu_custom_call.1} parent=71 // pred_check_branch
          %539 = sbr.rel (%p537) target = $region76
        $region75: #{tpu_custom_call.1} parent=71 // pred_region
          %s540 = smul.u32 8, %s34
          %p541 = scmp.lt.s32.totalorder %s540, 15
          %s542 = scalar_select %p541, %s540, 15
          %s543 = smul.addr %s542, 4
          %s544 = smul.addr %s543, 2
          %s545 = scalar_lea.vmem %s0, %s544
          %s546 = smul.u32 8, %s34
        $region76: #{tpu_custom_call.1} parent=71 // pred_fallthru
          _
      $region72: #{tpu_custom_call.1} parent=5 // pred_fallthru
        _
      %p547 = scmp.le.s32.totalorder 1, %s34
      %p548 = scmp.lt.s32.totalorder %s34, 3
      %p549 = pnand %p547, %p548
      %p550 = pneg %p549
      // Predicated region
      $region77: #{tpu_custom_call.1} parent=5 // pred_check
        _
      $region78: #{tpu_custom_call.1} parent=5 // pred_check_branch
        %552 = sbr.rel (%p549) target = $region80
      $region79: #{tpu_custom_call.1} parent=5 // pred_region
        %s553 = ssub.s32 %s34, 1
        // Predicated region
        $region81: #{tpu_custom_call.1} parent=79 // pred_check
          %p554 = pneg %p81
        $region82: #{tpu_custom_call.1} parent=79 // pred_check_branch
          %556 = sbr.rel (%p554) target = $region84
        $region83: #{tpu_custom_call.1} parent=79 // pred_region
          %557 = dma.done [#allocation3], 64
        $region84: #{tpu_custom_call.1} parent=79 // pred_fallthru
          _
        // Predicated region
        $region85: #{tpu_custom_call.1} parent=79 // pred_check
          %p558 = pneg %p102
        $region86: #{tpu_custom_call.1} parent=79 // pred_check_branch
          %560 = sbr.rel (%p558) target = $region88
        $region87: #{tpu_custom_call.1} parent=79 // pred_region
          %561 = dma.done [#allocation6], 32
        $region88: #{tpu_custom_call.1} parent=79 // pred_fallthru
          _
        // Predicated region
        $region89: #{tpu_custom_call.1} parent=79 // pred_check
          %p562 = pneg %p123
        $region90: #{tpu_custom_call.1} parent=79 // pred_check_branch
          %564 = sbr.rel (%p562) target = $region92
        $region91: #{tpu_custom_call.1} parent=79 // pred_region
          %565 = dma.done [#allocation6], 10240
        $region92: #{tpu_custom_call.1} parent=79 // pred_fallthru
          _
        // Predicated region
        $region93: #{tpu_custom_call.1} parent=79 // pred_check
          %p566 = pneg %p144
        $region94: #{tpu_custom_call.1} parent=79 // pred_check_branch
          %568 = sbr.rel (%p566) target = $region96
        $region95: #{tpu_custom_call.1} parent=79 // pred_region
          %569 = dma.done [#allocation9], 80
        $region96: #{tpu_custom_call.1} parent=79 // pred_fallthru
          _
        // Predicated region
        $region97: #{tpu_custom_call.1} parent=79 // pred_check
          %p570 = pneg %p228
        $region98: #{tpu_custom_call.1} parent=79 // pred_check_branch
          %572 = sbr.rel (%p570) target = $region100
        $region99: #{tpu_custom_call.1} parent=79 // pred_region
          %573 = dma.done [#allocation9], 16
        $region100: #{tpu_custom_call.1} parent=79 // pred_fallthru
          _
        // Predicated region
        $region101: #{tpu_custom_call.1} parent=79 // pred_check
          %p574 = pneg %p270
        $region102: #{tpu_custom_call.1} parent=79 // pred_check_branch
          %576 = sbr.rel (%p574) target = $region104
        $region103: #{tpu_custom_call.1} parent=79 // pred_region
          %577 = dma.done [#allocation12], 16
        $region104: #{tpu_custom_call.1} parent=79 // pred_fallthru
          _
        // Predicated region
        $region105: #{tpu_custom_call.1} parent=79 // pred_check
          %p578 = pneg %p291
        $region106: #{tpu_custom_call.1} parent=79 // pred_check_branch
          %580 = sbr.rel (%p578) target = $region108
        $region107: #{tpu_custom_call.1} parent=79 // pred_region
          %581 = dma.done [#allocation12], 16384
        $region108: #{tpu_custom_call.1} parent=79 // pred_fallthru
          _
        // Predicated region
        $region109: #{tpu_custom_call.1} parent=79 // pred_check
          %p582 = pneg %p333
        $region110: #{tpu_custom_call.1} parent=79 // pred_check_branch
          %584 = sbr.rel (%p582) target = $region112
        $region111: #{tpu_custom_call.1} parent=79 // pred_region
          %585 = dma.done [#allocation15], 4096
        $region112: #{tpu_custom_call.1} parent=79 // pred_fallthru
          _
        %s586 = smul.u32 8, %s39
        %p587 = scmp.lt.s32.totalorder %s586, 15
        %s588 = scalar_select %p587, %s586, 15
        %s589 = smul.addr %s588, 4
        %s590 = smul.addr %s589, 2
        %s591 = scalar_lea.vmem %s0, %s590
        %p592 = pneg %p60
        %p593 = pneg %p57
        %p594 = pneg %p81
        %p595 = pneg %p78
        %p596 = pneg %p102
        %p597 = pneg %p99
        %p598 = pneg %p123
        %p599 = pneg %p120
        %p600 = pneg %p144
        %p601 = pneg %p141
        %p602 = pneg %p165
        %p603 = pneg %p162
        %p604 = pneg %p186
        %p605 = pneg %p183
        %p606 = pneg %p207
        %p607 = pneg %p204
        %p608 = pneg %p228
        %p609 = pneg %p225
        %p610 = pneg %p249
        %p611 = pneg %p246
        %p612 = pneg %p270
        %p613 = pneg %p267
        %p614 = pneg %p291
        %p615 = pneg %p288
        %p616 = pneg %p312
        %p617 = pneg %p309
        %p618 = pneg %p333
        %p619 = pneg %p330
        %p620 = pneg %p354
        %p621 = pneg %p351
        %p622 = pneg %p380
        %p623 = pneg %p377
        %s624 = sand.u32 %s367, 1
        %s625 = scalar_lea.sflag [#allocation4], %s624
        %s626 = sand.u32 %s367, 1
        %s627 = smul.addr %s626, 8
        %s628 = scalar_lea.vmem [#allocation16], %s627
        %p629 = pneg %p406
        %p630 = pneg %p403
        %s631 = sand.u32 %s393, 1
        %s632 = scalar_lea.sflag [#allocation18], %s631
        %s633 = sand.u32 %s393, 1
        %s634 = smul.addr %s633, 8
        %s635 = scalar_lea.vmem [#allocation17], %s634
        %s636 = smul.u32 8, %s39
        %p637 = scmp.lt.s32.totalorder %s636, 15
        %s638 = scalar_select %p637, %s636, 15
        %s639 = smul.addr %s638, 4
        %s640 = smul.addr %s639, 2
        %s641 = scalar_lea.vmem %s0, %s640
        %s642 = smul.u32 8, %s39
        %v644 = vld [vmem:[%s641] sm:$0x3]
        %v645 = vld [vmem:[%s641 + $0x2] sm:$0x3]
        %v646 = vld [vmem:[%s641 + $0x4] sm:$0x3]
        %v647 = vld [vmem:[%s641 + $0x6] sm:$0x3]
        %v648 = vld [vmem:[%s641 + $0x8] sm:$0x3]
        %v649 = vld [vmem:[%s641 + $0xa] sm:$0x3]
        %v650 = vld [vmem:[%s641 + $0xc] sm:$0x3]
        %v651 = vld [vmem:[%s641 + $0xe] sm:$0x3]
        %v652 = vld [vmem:[%s641 + $0x10] sm:$0x3]
        %v653 = vld [vmem:[%s641 + $0x12] sm:$0x3]
        %v654 = vld [vmem:[%s641 + $0x14] sm:$0x3]
        %v655 = vld [vmem:[%s641 + $0x16] sm:$0x3]
        %v656 = vld [vmem:[%s641 + $0x18] sm:$0x3]
        %v657 = vld [vmem:[%s641 + $0x1a] sm:$0x3]
        %v658 = vld [vmem:[%s641 + $0x1c] sm:$0x3]
        %v659 = vld [vmem:[%s641 + $0x1e] sm:$0x3]
        %v660 = vld [vmem:[%s641 + $0x20] sm:$0x3]
        %v661 = vld [vmem:[%s641 + $0x22] sm:$0x3]
        %v662 = vld [vmem:[%s641 + $0x24] sm:$0x3]
        %v663 = vld [vmem:[%s641 + $0x26] sm:$0x3]
        %v664 = vld [vmem:[%s641 + $0x28] sm:$0x3]
        %v665 = vld [vmem:[%s641 + $0x2a] sm:$0x3]
        %v666 = vld [vmem:[%s641 + $0x2c] sm:$0x3]
        %v667 = vld [vmem:[%s641 + $0x2e] sm:$0x3]
        %v668 = vld [vmem:[%s641 + $0x30] sm:$0x3]
        %v669 = vld [vmem:[%s641 + $0x32] sm:$0x3]
        %v670 = vld [vmem:[%s641 + $0x34] sm:$0x3]
        %v671 = vld [vmem:[%s641 + $0x36] sm:$0x3]
        %v672 = vld [vmem:[%s641 + $0x38] sm:$0x3]
        %v673 = vld [vmem:[%s641 + $0x3a] sm:$0x3]
        %v674 = vld [vmem:[%s641 + $0x3c] sm:$0x3]
        %v675 = vld [vmem:[%s641 + $0x3e] sm:$0x3]
        %vm676 = vcmask 1041408
        %v677 = vsel %vm676, %v644, 0.0
        %v678 = vrot.slane %v677, 4
        %v679 = vadd.f32 %v677, %v678
        %v680 = vrot.slane %v679, 2
        %v681 = vadd.f32 %v679, %v680
        %v682 = vrot.slane %v681, 1
        %v683 = vadd.f32 %v681, %v682
        %v684 = vsel %vm676, %v645, 0.0
        %v685 = vrot.slane %v684, 4
        %v686 = vadd.f32 %v684, %v685
        %v687 = vrot.slane %v686, 2
        %v688 = vadd.f32 %v686, %v687
        %v689 = vrot.slane %v688, 1
        %v690 = vadd.f32 %v688, %v689
        %v691 = vsel %vm676, %v646, 0.0
        %v692 = vrot.slane %v691, 4
        %v693 = vadd.f32 %v691, %v692
        %v694 = vrot.slane %v693, 2
        %v695 = vadd.f32 %v693, %v694
        %v696 = vrot.slane %v695, 1
        %v697 = vadd.f32 %v695, %v696
        %v698 = vsel %vm676, %v647, 0.0
        %v699 = vrot.slane %v698, 4
        %v700 = vadd.f32 %v698, %v699
        %v701 = vrot.slane %v700, 2
        %v702 = vadd.f32 %v700, %v701
        %v703 = vrot.slane %v702, 1
        %v704 = vadd.f32 %v702, %v703
        %v705 = vsel %vm676, %v648, 0.0
        %v706 = vrot.slane %v705, 4
        %v707 = vadd.f32 %v705, %v706
        %v708 = vrot.slane %v707, 2
        %v709 = vadd.f32 %v707, %v708
        %v710 = vrot.slane %v709, 1
        %v711 = vadd.f32 %v709, %v710
        %v712 = vsel %vm676, %v649, 0.0
        %v713 = vrot.slane %v712, 4
        %v714 = vadd.f32 %v712, %v713
        %v715 = vrot.slane %v714, 2
        %v716 = vadd.f32 %v714, %v715
        %v717 = vrot.slane %v716, 1
        %v718 = vadd.f32 %v716, %v717
        %v719 = vsel %vm676, %v650, 0.0
        %v720 = vrot.slane %v719, 4
        %v721 = vadd.f32 %v719, %v720
        %v722 = vrot.slane %v721, 2
        %v723 = vadd.f32 %v721, %v722
        %v724 = vrot.slane %v723, 1
        %v725 = vadd.f32 %v723, %v724
        %v726 = vsel %vm676, %v651, 0.0
        %v727 = vrot.slane %v726, 4
        %v728 = vadd.f32 %v726, %v727
        %v729 = vrot.slane %v728, 2
        %v730 = vadd.f32 %v728, %v729
        %v731 = vrot.slane %v730, 1
        %v732 = vadd.f32 %v730, %v731
        %v733 = vsel %vm676, %v652, 0.0
        %v734 = vrot.slane %v733, 4
        %v735 = vadd.f32 %v733, %v734
        %v736 = vrot.slane %v735, 2
        %v737 = vadd.f32 %v735, %v736
        %v738 = vrot.slane %v737, 1
        %v739 = vadd.f32 %v737, %v738
        %v740 = vsel %vm676, %v653, 0.0
        %v741 = vrot.slane %v740, 4
        %v742 = vadd.f32 %v740, %v741
        %v743 = vrot.slane %v742, 2
        %v744 = vadd.f32 %v742, %v743
        %v745 = vrot.slane %v744, 1
        %v746 = vadd.f32 %v744, %v745
        %v747 = vsel %vm676, %v654, 0.0
        %v748 = vrot.slane %v747, 4
        %v749 = vadd.f32 %v747, %v748
        %v750 = vrot.slane %v749, 2
        %v751 = vadd.f32 %v749, %v750
        %v752 = vrot.slane %v751, 1
        %v753 = vadd.f32 %v751, %v752
        %v754 = vsel %vm676, %v655, 0.0
        %v755 = vrot.slane %v754, 4
        %v756 = vadd.f32 %v754, %v755
        %v757 = vrot.slane %v756, 2
        %v758 = vadd.f32 %v756, %v757
        %v759 = vrot.slane %v758, 1
        %v760 = vadd.f32 %v758, %v759
        %v761 = vsel %vm676, %v656, 0.0
        %v762 = vrot.slane %v761, 4
        %v763 = vadd.f32 %v761, %v762
        %v764 = vrot.slane %v763, 2
        %v765 = vadd.f32 %v763, %v764
        %v766 = vrot.slane %v765, 1
        %v767 = vadd.f32 %v765, %v766
        %v768 = vsel %vm676, %v657, 0.0
        %v769 = vrot.slane %v768, 4
        %v770 = vadd.f32 %v768, %v769
        %v771 = vrot.slane %v770, 2
        %v772 = vadd.f32 %v770, %v771
        %v773 = vrot.slane %v772, 1
        %v774 = vadd.f32 %v772, %v773
        %v775 = vsel %vm676, %v658, 0.0
        %v776 = vrot.slane %v775, 4
        %v777 = vadd.f32 %v775, %v776
        %v778 = vrot.slane %v777, 2
        %v779 = vadd.f32 %v777, %v778
        %v780 = vrot.slane %v779, 1
        %v781 = vadd.f32 %v779, %v780
        %v782 = vsel %vm676, %v659, 0.0
        %v783 = vrot.slane %v782, 4
        %v784 = vadd.f32 %v782, %v783
        %v785 = vrot.slane %v784, 2
        %v786 = vadd.f32 %v784, %v785
        %v787 = vrot.slane %v786, 1
        %v788 = vadd.f32 %v786, %v787
        %v789 = vsel %vm676, %v660, 0.0
        %v790 = vrot.slane %v789, 4
        %v791 = vadd.f32 %v789, %v790
        %v792 = vrot.slane %v791, 2
        %v793 = vadd.f32 %v791, %v792
        %v794 = vrot.slane %v793, 1
        %v795 = vadd.f32 %v793, %v794
        %v796 = vsel %vm676, %v661, 0.0
        %v797 = vrot.slane %v796, 4
        %v798 = vadd.f32 %v796, %v797
        %v799 = vrot.slane %v798, 2
        %v800 = vadd.f32 %v798, %v799
        %v801 = vrot.slane %v800, 1
        %v802 = vadd.f32 %v800, %v801
        %v803 = vsel %vm676, %v662, 0.0
        %v804 = vrot.slane %v803, 4
        %v805 = vadd.f32 %v803, %v804
        %v806 = vrot.slane %v805, 2
        %v807 = vadd.f32 %v805, %v806
        %v808 = vrot.slane %v807, 1
        %v809 = vadd.f32 %v807, %v808
        %v810 = vsel %vm676, %v663, 0.0
        %v811 = vrot.slane %v810, 4
        %v812 = vadd.f32 %v810, %v811
        %v813 = vrot.slane %v812, 2
        %v814 = vadd.f32 %v812, %v813
        %v815 = vrot.slane %v814, 1
        %v816 = vadd.f32 %v814, %v815
        %v817 = vsel %vm676, %v664, 0.0
        %v818 = vrot.slane %v817, 4
        %v819 = vadd.f32 %v817, %v818
        %v820 = vrot.slane %v819, 2
        %v821 = vadd.f32 %v819, %v820
        %v822 = vrot.slane %v821, 1
        %v823 = vadd.f32 %v821, %v822
        %v824 = vsel %vm676, %v665, 0.0
        %v825 = vrot.slane %v824, 4
        %v826 = vadd.f32 %v824, %v825
        %v827 = vrot.slane %v826, 2
        %v828 = vadd.f32 %v826, %v827
        %v829 = vrot.slane %v828, 1
        %v830 = vadd.f32 %v828, %v829
        %v831 = vsel %vm676, %v666, 0.0
        %v832 = vrot.slane %v831, 4
        %v833 = vadd.f32 %v831, %v832
        %v834 = vrot.slane %v833, 2
        %v835 = vadd.f32 %v833, %v834
        %v836 = vrot.slane %v835, 1
        %v837 = vadd.f32 %v835, %v836
        %v838 = vsel %vm676, %v667, 0.0
        %v839 = vrot.slane %v838, 4
        %v840 = vadd.f32 %v838, %v839
        %v841 = vrot.slane %v840, 2
        %v842 = vadd.f32 %v840, %v841
        %v843 = vrot.slane %v842, 1
        %v844 = vadd.f32 %v842, %v843
        %v845 = vsel %vm676, %v668, 0.0
        %v846 = vrot.slane %v845, 4
        %v847 = vadd.f32 %v845, %v846
        %v848 = vrot.slane %v847, 2
        %v849 = vadd.f32 %v847, %v848
        %v850 = vrot.slane %v849, 1
        %v851 = vadd.f32 %v849, %v850
        %v852 = vsel %vm676, %v669, 0.0
        %v853 = vrot.slane %v852, 4
        %v854 = vadd.f32 %v852, %v853
        %v855 = vrot.slane %v854, 2
        %v856 = vadd.f32 %v854, %v855
        %v857 = vrot.slane %v856, 1
        %v858 = vadd.f32 %v856, %v857
        %v859 = vsel %vm676, %v670, 0.0
        %v860 = vrot.slane %v859, 4
        %v861 = vadd.f32 %v859, %v860
        %v862 = vrot.slane %v861, 2
        %v863 = vadd.f32 %v861, %v862
        %v864 = vrot.slane %v863, 1
        %v865 = vadd.f32 %v863, %v864
        %v866 = vsel %vm676, %v671, 0.0
        %v867 = vrot.slane %v866, 4
        %v868 = vadd.f32 %v866, %v867
        %v869 = vrot.slane %v868, 2
        %v870 = vadd.f32 %v868, %v869
        %v871 = vrot.slane %v870, 1
        %v872 = vadd.f32 %v870, %v871
        %v873 = vsel %vm676, %v672, 0.0
        %v874 = vrot.slane %v873, 4
        %v875 = vadd.f32 %v873, %v874
        %v876 = vrot.slane %v875, 2
        %v877 = vadd.f32 %v875, %v876
        %v878 = vrot.slane %v877, 1
        %v879 = vadd.f32 %v877, %v878
        %v880 = vsel %vm676, %v673, 0.0
        %v881 = vrot.slane %v880, 4
        %v882 = vadd.f32 %v880, %v881
        %v883 = vrot.slane %v882, 2
        %v884 = vadd.f32 %v882, %v883
        %v885 = vrot.slane %v884, 1
        %v886 = vadd.f32 %v884, %v885
        %v887 = vsel %vm676, %v674, 0.0
        %v888 = vrot.slane %v887, 4
        %v889 = vadd.f32 %v887, %v888
        %v890 = vrot.slane %v889, 2
        %v891 = vadd.f32 %v889, %v890
        %v892 = vrot.slane %v891, 1
        %v893 = vadd.f32 %v891, %v892
        %v894 = vsel %vm676, %v675, 0.0
        %v895 = vrot.slane %v894, 4
        %v896 = vadd.f32 %v894, %v895
        %v897 = vrot.slane %v896, 2
        %v898 = vadd.f32 %v896, %v897
        %v899 = vrot.slane %v898, 1
        %v900 = vadd.f32 %v898, %v899
        %vm933 = vcmask 1041409
        %v934 = vsel %vm933, %v690, %v683
        %vm935 = vcmask 1042434
        %v936 = vsel %vm935, %v697, %v934
        %vm937 = vcmask 1043459
        %v938 = vsel %vm937, %v704, %v936
        %v939 = vsel %vm933, %v718, %v711
        %v940 = vsel %vm935, %v725, %v939
        %v941 = vsel %vm937, %v732, %v940
        %v942 = vsel %vm933, %v746, %v739
        %v943 = vsel %vm935, %v753, %v942
        %v944 = vsel %vm937, %v760, %v943
        %v945 = vsel %vm933, %v774, %v767
        %v946 = vsel %vm935, %v781, %v945
        %v947 = vsel %vm937, %v788, %v946
        %v948 = vsel %vm933, %v802, %v795
        %v949 = vsel %vm935, %v809, %v948
        %v950 = vsel %vm937, %v816, %v949
        %v951 = vsel %vm933, %v830, %v823
        %v952 = vsel %vm935, %v837, %v951
        %v953 = vsel %vm937, %v844, %v952
        %v954 = vsel %vm933, %v858, %v851
        %v955 = vsel %vm935, %v865, %v954
        %v956 = vsel %vm937, %v872, %v955
        %v957 = vsel %vm933, %v886, %v879
        %v958 = vsel %vm935, %v893, %v957
        %v959 = vsel %vm937, %v900, %v958
        %vm968 = vcmask 1043456
        %v969 = vsel %vm968, %v938, 0.0
        %970 = vadd.xlane.f32.xlu0 %v969
        %v971 = vpop.xlane.xlu0 %970
        %v972 = vsel %vm968, %v941, 0.0
        %973 = vadd.xlane.f32.xlu0 %v972
        %v974 = vpop.xlane.xlu0 %973
        %v975 = vsel %vm968, %v944, 0.0
        %976 = vadd.xlane.f32.xlu0 %v975
        %v977 = vpop.xlane.xlu0 %976
        %v978 = vsel %vm968, %v947, 0.0
        %979 = vadd.xlane.f32.xlu0 %v978
        %v980 = vpop.xlane.xlu0 %979
        %v981 = vsel %vm968, %v950, 0.0
        %982 = vadd.xlane.f32.xlu0 %v981
        %v983 = vpop.xlane.xlu0 %982
        %v984 = vsel %vm968, %v953, 0.0
        %985 = vadd.xlane.f32.xlu0 %v984
        %v986 = vpop.xlane.xlu0 %985
        %v987 = vsel %vm968, %v956, 0.0
        %988 = vadd.xlane.f32.xlu0 %v987
        %v989 = vpop.xlane.xlu0 %988
        %v990 = vsel %vm968, %v959, 0.0
        %991 = vadd.xlane.f32.xlu0 %v990
        %v992 = vpop.xlane.xlu0 %991
        %v993 = vpack.c.bf16 %v971, %v971
        %v994 = vpack.c.bf16 %v974, %v974
        %v995 = vpack.c.bf16 %v977, %v977
        %v996 = vpack.c.bf16 %v980, %v980
        %v997 = vpack.c.bf16 %v983, %v983
        %v998 = vpack.c.bf16 %v986, %v986
        %v999 = vpack.c.bf16 %v989, %v989
        %v1000 = vpack.c.bf16 %v992, %v992
        %v1001 = vld [vmem:[#allocation2] sm:$0xf]
        %v1002 = vld [vmem:[#allocation5] sm:$0x3]
        %v1004 = vlaneseq
        %v1005 = vshrl.u32 %v1004, 7
        %v1006 = vsub.s32 0, %v1005
        %v1007 = vrot.slane %v1002, %v1006
        %v1008 = vlaneseq
        %v1009 = vshrl.u32 %v1008, 7
        %v1010 = vsub.s32 1, %v1009
        %v1011 = vrot.slane %v1002, %v1010
        %v1022 = vunpack.c.l.b16 %v993
        %v1023 = vunpack.c.l.b16 %v994
        %v1024 = vunpack.c.l.b16 %v995
        %v1025 = vunpack.c.l.b16 %v996
        %v1026 = vunpack.c.l.b16 %v997
        %v1027 = vunpack.c.l.b16 %v998
        %v1028 = vunpack.c.l.b16 %v999
        %v1029 = vunpack.c.l.b16 %v1000
        %v1030 = vlaneseq
        %v1031 = vand.u32 %v1030, 127
        %v1032 = vlaneseq
        %v1033 = vshrl.u32 %v1032, 7
        %v1034 = vsub.s32 %v1031, %v1033
        %v1035 = vrot.slane %v1022, %v1034
        %v1036 = vlaneseq
        %v1037 = vshrl.u32 %v1036, 7
        %v1038 = vsub.s32 %v1031, %v1037
        %v1039 = vrot.slane %v1023, %v1038
        %v1040 = vlaneseq
        %v1041 = vshrl.u32 %v1040, 7
        %v1042 = vsub.s32 %v1031, %v1041
        %v1043 = vrot.slane %v1024, %v1042
        %v1044 = vlaneseq
        %v1045 = vshrl.u32 %v1044, 7
        %v1046 = vsub.s32 %v1031, %v1045
        %v1047 = vrot.slane %v1025, %v1046
        %v1048 = vlaneseq
        %v1049 = vshrl.u32 %v1048, 7
        %v1050 = vsub.s32 %v1031, %v1049
        %v1051 = vrot.slane %v1026, %v1050
        %v1052 = vlaneseq
        %v1053 = vshrl.u32 %v1052, 7
        %v1054 = vsub.s32 %v1031, %v1053
        %v1055 = vrot.slane %v1027, %v1054
        %v1056 = vlaneseq
        %v1057 = vshrl.u32 %v1056, 7
        %v1058 = vsub.s32 %v1031, %v1057
        %v1059 = vrot.slane %v1028, %v1058
        %v1060 = vlaneseq
        %v1061 = vshrl.u32 %v1060, 7
        %v1062 = vsub.s32 %v1031, %v1061
        %v1063 = vrot.slane %v1029, %v1062
        %v1064 = vsel %vm933, %v1039, %v1035
        %v1065 = vsel %vm935, %v1043, %v1064
        %v1066 = vsel %vm937, %v1047, %v1065
        %vm1067 = vcmask 1044484
        %v1068 = vsel %vm1067, %v1051, %v1066
        %vm1069 = vcmask 1045509
        %v1070 = vsel %vm1069, %v1055, %v1068
        %vm1071 = vcmask 1046534
        %v1072 = vsel %vm1071, %v1059, %v1070
        %vm1073 = vcmask 1047559
        %v1074 = vsel %vm1073, %v1063, %v1072
        %v1075 = vpack.c.b16 %v1074, %v1074
        %v1078 = vunpack.c.l.s4 1983009808
        %v1079 = vunpack.c.0.s8 %v1078
        %v1080 = vlaneseq
        %v1081 = vshrl.u32 %v1080, 7
        %v1082 = vsub.s32 %v1079, %v1081
        %v1083 = vrot.slane %v1001, %v1082
        %v1084 = vcombine.high %v1083, %v1083
        %vm1085 = vcmask 31744
        %v1087 = vsel %vm1085, %v1075, 0
        %v1090 = vsel %vm676, %v1083, 0
        %v1093 = vsel %vm676, %v1084, 0
        %1095 = vmatprep.subr.bf16.mxu0 %v1093
        %1096 = vmatpush1.bf16.msra.mxu0 %v1090
        %1097 = vmatprep.subr.bf16.mxu0 0
        %1098 = vmatpush1.bf16.msra.mxu0 0
        %1099 = vmatprep.subr.bf16.mxu0 0
        %1100 = vmatpush1.bf16.msra.mxu0 0
        %1101 = vmatprep.subr.bf16.mxu0 0
        %1102 = vmatpush1.bf16.msra.mxu0 0
        %1103 = vmatprep.subr.bf16.mxu0 0
        %1104 = vmatpush1.bf16.msra.mxu0 0
        %1105 = vmatprep.subr.bf16.mxu0 0
        %1106 = vmatpush1.bf16.msra.mxu0 0
        %1107 = vmatprep.subr.bf16.mxu0 0
        %1108 = vmatpush1.bf16.msra.mxu0 0
        %1109 = vmatprep.subr.bf16.mxu0 0
        %1110 = vmatpush1.bf16.msra.mxu0 0
        %1111 = vmatprep.subr.bf16.mxu0 0
        %1112 = vmatpush1.bf16.msra.mxu0 0
        %1113 = vmatprep.subr.bf16.mxu0 0
        %1114 = vmatpush1.bf16.msra.mxu0 0
        %1115 = vmatprep.subr.bf16.mxu0 0
        %1116 = vmatpush1.bf16.msra.mxu0 0
        %1117 = vmatprep.subr.bf16.mxu0 0
        %1118 = vmatpush1.bf16.msra.mxu0 0
        %1119 = vmatprep.subr.bf16.mxu0 0
        %1120 = vmatpush1.bf16.msra.mxu0 0
        %1121 = vmatprep.subr.bf16.mxu0 0
        %1122 = vmatpush1.bf16.msra.mxu0 0
        %1123 = vmatprep.subr.bf16.mxu0 0
        %1124 = vmatpush1.bf16.msra.mxu0 0
        %1125 = vmatprep.subr.bf16.mxu0 0
        %1126 = vmatpush1.bf16.msra.mxu0 0
        %1127 = vmatprep.mubr.bf16.mxu0 0
        %1128 = vmatmul.mubr.bf16.gmra.mrb[0].mxu0 %v1087
        %v1129 = vpop.f32.mrb[0].mxu0
        %v1130 = vadd.f32 %v1007, %v1129
        %v1131 = vpop.f32.mrb[0].mxu0
        %v1132 = vadd.f32 %v1011, %v1131
        %v1133 = vpop.f32.mrb[0].mxu0
        %v1134 = vpop.f32.mrb[0].mxu0
        %1135 = vdwg.mxu0
        %v1136 = vmax.f32 %v1130, 0.0
        %v1137 = vmax.f32 %v1132, 0.0
        %v1138 = vpack.c.bf16 %v1136, %v1136
        %v1139 = vpack.c.bf16 %v1137, %v1137
        %v1140 = vld [vmem:[#allocation7] sm:$0xff]
        %v1141 = vld [vmem:[#allocation7 + $0x8] sm:$0xff]
        %v1142 = vld [vmem:[#allocation7 + $0x10] sm:$0xf]
        %v1143 = vld [vmem:[#allocation7 + $0x14] sm:$0xff]
        %v1144 = vld [vmem:[#allocation7 + $0x1c] sm:$0xff]
        %v1145 = vld [vmem:[#allocation7 + $0x24] sm:$0xf]
        %v1146 = vld [vmem:[#allocation7 + $0x28] sm:$0xff]
        %v1147 = vld [vmem:[#allocation7 + $0x30] sm:$0xff]
        %v1148 = vld [vmem:[#allocation7 + $0x38] sm:$0xf]
        %v1149 = vld [vmem:[#allocation7 + $0x3c] sm:$0xff]
        %v1150 = vld [vmem:[#allocation7 + $0x44] sm:$0xff]
        %v1151 = vld [vmem:[#allocation7 + $0x4c] sm:$0xf]
        %v1152 = vld [vmem:[#allocation7 + $0x50] sm:$0xff]
        %v1153 = vld [vmem:[#allocation7 + $0x58] sm:$0xff]
        %v1154 = vld [vmem:[#allocation7 + $0x60] sm:$0xf]
        %v1155 = vld [vmem:[#allocation7 + $0x64] sm:$0xff]
        %v1156 = vld [vmem:[#allocation7 + $0x6c] sm:$0xff]
        %v1157 = vld [vmem:[#allocation7 + $0x74] sm:$0xf]
        %v1158 = vld [vmem:[#allocation7 + $0x78] sm:$0xff]
        %v1159 = vld [vmem:[#allocation7 + $0x80] sm:$0xff]
        %v1160 = vld [vmem:[#allocation7 + $0x88] sm:$0xf]
        %v1161 = vld [vmem:[#allocation7 + $0x8c] sm:$0xff]
        %v1162 = vld [vmem:[#allocation7 + $0x94] sm:$0xff]
        %v1163 = vld [vmem:[#allocation7 + $0x9c] sm:$0xf]
        %v1164 = vld [vmem:[#allocation7 + $0xa0] sm:$0xff]
        %v1165 = vld [vmem:[#allocation7 + $0xa8] sm:$0xff]
        %v1166 = vld [vmem:[#allocation7 + $0xb0] sm:$0xf]
        %v1167 = vld [vmem:[#allocation7 + $0xb4] sm:$0xff]
        %v1168 = vld [vmem:[#allocation7 + $0xbc] sm:$0xff]
        %v1169 = vld [vmem:[#allocation7 + $0xc4] sm:$0xf]
        %v1170 = vld [vmem:[#allocation7 + $0xc8] sm:$0xff]
        %v1171 = vld [vmem:[#allocation7 + $0xd0] sm:$0xff]
        %v1172 = vld [vmem:[#allocation7 + $0xd8] sm:$0xf]
        %v1173 = vld [vmem:[#allocation7 + $0xdc] sm:$0xff]
        %v1174 = vld [vmem:[#allocation7 + $0xe4] sm:$0xff]
        %v1175 = vld [vmem:[#allocation7 + $0xec] sm:$0xf]
        %v1176 = vld [vmem:[#allocation7 + $0xf0] sm:$0xff]
        %v1177 = vld [vmem:[#allocation7 + $0xf8] sm:$0xff]
        %v1178 = vld [vmem:[#allocation7 + $0x100] sm:$0xf]
        %v1179 = vld [vmem:[#allocation7 + $0x104] sm:$0xff]
        %v1180 = vld [vmem:[#allocation7 + $0x10c] sm:$0xff]
        %v1181 = vld [vmem:[#allocation7 + $0x114] sm:$0xf]
        %v1182 = vld [vmem:[#allocation7 + $0x118] sm:$0xff]
        %v1183 = vld [vmem:[#allocation7 + $0x120] sm:$0xff]
        %v1184 = vld [vmem:[#allocation7 + $0x128] sm:$0xf]
        %v1185 = vld [vmem:[#allocation7 + $0x12c] sm:$0xff]
        %v1186 = vld [vmem:[#allocation7 + $0x134] sm:$0xff]
        %v1187 = vld [vmem:[#allocation7 + $0x13c] sm:$0xf]
        %v1188 = vld [vmem:[#allocation7 + $0x140] sm:$0xff]
        %v1189 = vld [vmem:[#allocation7 + $0x148] sm:$0xff]
        %v1190 = vld [vmem:[#allocation7 + $0x150] sm:$0xf]
        %v1191 = vld [vmem:[#allocation7 + $0x154] sm:$0xff]
        %v1192 = vld [vmem:[#allocation7 + $0x15c] sm:$0xff]
        %v1193 = vld [vmem:[#allocation7 + $0x164] sm:$0xf]
        %v1194 = vld [vmem:[#allocation7 + $0x168] sm:$0xff]
        %v1195 = vld [vmem:[#allocation7 + $0x170] sm:$0xff]
        %v1196 = vld [vmem:[#allocation7 + $0x178] sm:$0xf]
        %v1197 = vld [vmem:[#allocation7 + $0x17c] sm:$0xff]
        %v1198 = vld [vmem:[#allocation7 + $0x184] sm:$0xff]
        %v1199 = vld [vmem:[#allocation7 + $0x18c] sm:$0xf]
        %v1200 = vld [vmem:[#allocation7 + $0x190] sm:$0xff]
        %v1201 = vld [vmem:[#allocation7 + $0x198] sm:$0xff]
        %v1202 = vld [vmem:[#allocation7 + $0x1a0] sm:$0xf]
        %v1203 = vld [vmem:[#allocation7 + $0x1a4] sm:$0xff]
        %v1204 = vld [vmem:[#allocation7 + $0x1ac] sm:$0xff]
        %v1205 = vld [vmem:[#allocation7 + $0x1b4] sm:$0xf]
        %v1206 = vld [vmem:[#allocation7 + $0x1b8] sm:$0xff]
        %v1207 = vld [vmem:[#allocation7 + $0x1c0] sm:$0xff]
        %v1208 = vld [vmem:[#allocation7 + $0x1c8] sm:$0xf]
        %v1209 = vld [vmem:[#allocation7 + $0x1cc] sm:$0xff]
        %v1210 = vld [vmem:[#allocation7 + $0x1d4] sm:$0xff]
        %v1211 = vld [vmem:[#allocation7 + $0x1dc] sm:$0xf]
        %v1212 = vld [vmem:[#allocation7 + $0x1e0] sm:$0xff]
        %v1213 = vld [vmem:[#allocation7 + $0x1e8] sm:$0xff]
        %v1214 = vld [vmem:[#allocation7 + $0x1f0] sm:$0xf]
        %v1215 = vld [vmem:[#allocation7 + $0x1f4] sm:$0xff]
        %v1216 = vld [vmem:[#allocation7 + $0x1fc] sm:$0xff]
        %v1217 = vld [vmem:[#allocation7 + $0x204] sm:$0xf]
        %v1218 = vld [vmem:[#allocation7 + $0x208] sm:$0xff]
        %v1219 = vld [vmem:[#allocation7 + $0x210] sm:$0xff]
        %v1220 = vld [vmem:[#allocation7 + $0x218] sm:$0xf]
        %v1221 = vld [vmem:[#allocation7 + $0x21c] sm:$0xff]
        %v1222 = vld [vmem:[#allocation7 + $0x224] sm:$0xff]
        %v1223 = vld [vmem:[#allocation7 + $0x22c] sm:$0xf]
        %v1224 = vld [vmem:[#allocation7 + $0x230] sm:$0xff]
        %v1225 = vld [vmem:[#allocation7 + $0x238] sm:$0xff]
        %v1226 = vld [vmem:[#allocation7 + $0x240] sm:$0xf]
        %v1227 = vld [vmem:[#allocation7 + $0x244] sm:$0xff]
        %v1228 = vld [vmem:[#allocation7 + $0x24c] sm:$0xff]
        %v1229 = vld [vmem:[#allocation7 + $0x254] sm:$0xf]
        %v1230 = vld [vmem:[#allocation7 + $0x258] sm:$0xff]
        %v1231 = vld [vmem:[#allocation7 + $0x260] sm:$0xff]
        %v1232 = vld [vmem:[#allocation7 + $0x268] sm:$0xf]
        %v1233 = vld [vmem:[#allocation7 + $0x26c] sm:$0xff]
        %v1234 = vld [vmem:[#allocation7 + $0x274] sm:$0xff]
        %v1235 = vld [vmem:[#allocation7 + $0x27c] sm:$0xf]
        %v1236 = vld [vmem:[#allocation8] sm:$0x1f]
        %v1238 = vlaneseq
        %v1239 = vshrl.u32 %v1238, 7
        %v1240 = vsub.s32 0, %v1239
        %v1241 = vrot.slane %v1236, %v1240
        %v1242 = vlaneseq
        %v1243 = vshrl.u32 %v1242, 7
        %v1244 = vsub.s32 1, %v1243
        %v1245 = vrot.slane %v1236, %v1244
        %v1246 = vlaneseq
        %v1247 = vshrl.u32 %v1246, 7
        %v1248 = vsub.s32 2, %v1247
        %v1249 = vrot.slane %v1236, %v1248
        %v1250 = vlaneseq
        %v1251 = vshrl.u32 %v1250, 7
        %v1252 = vsub.s32 3, %v1251
        %v1253 = vrot.slane %v1236, %v1252
        %v1254 = vlaneseq
        %v1255 = vshrl.u32 %v1254, 7
        %v1256 = vsub.s32 4, %v1255
        %v1257 = vrot.slane %v1236, %v1256
        %v1359 = vunpack.c.l.b16 %v1140
        %v1360 = vunpack.c.h.b16 %v1140
        %v1361 = vunpack.c.l.b16 %v1141
        %v1362 = vunpack.c.h.b16 %v1141
        %v1363 = vunpack.c.l.b16 %v1142
        %v1364 = vunpack.c.l.b16 %v1143
        %v1365 = vunpack.c.h.b16 %v1143
        %v1366 = vunpack.c.l.b16 %v1144
        %v1367 = vunpack.c.h.b16 %v1144
        %v1368 = vunpack.c.l.b16 %v1145
        %v1369 = vunpack.c.l.b16 %v1146
        %v1370 = vunpack.c.h.b16 %v1146
        %v1371 = vunpack.c.l.b16 %v1147
        %v1372 = vunpack.c.h.b16 %v1147
        %v1373 = vunpack.c.l.b16 %v1148
        %v1374 = vunpack.c.l.b16 %v1149
        %v1375 = vunpack.c.h.b16 %v1149
        %v1376 = vunpack.c.l.b16 %v1150
        %v1377 = vunpack.c.h.b16 %v1150
        %v1378 = vunpack.c.l.b16 %v1151
        %v1379 = vunpack.c.l.b16 %v1152
        %v1380 = vunpack.c.h.b16 %v1152
        %v1381 = vunpack.c.l.b16 %v1153
        %v1382 = vunpack.c.h.b16 %v1153
        %v1383 = vunpack.c.l.b16 %v1154
        %v1384 = vunpack.c.l.b16 %v1155
        %v1385 = vunpack.c.h.b16 %v1155
        %v1386 = vunpack.c.l.b16 %v1156
        %v1387 = vunpack.c.h.b16 %v1156
        %v1388 = vunpack.c.l.b16 %v1157
        %v1389 = vunpack.c.l.b16 %v1158
        %v1390 = vunpack.c.h.b16 %v1158
        %v1391 = vunpack.c.l.b16 %v1159
        %v1392 = vunpack.c.h.b16 %v1159
        %v1393 = vunpack.c.l.b16 %v1160
        %v1394 = vunpack.c.l.b16 %v1161
        %v1395 = vunpack.c.h.b16 %v1161
        %v1396 = vunpack.c.l.b16 %v1162
        %v1397 = vunpack.c.h.b16 %v1162
        %v1398 = vunpack.c.l.b16 %v1163
        %v1399 = vunpack.c.l.b16 %v1164
        %v1400 = vunpack.c.h.b16 %v1164
        %v1401 = vunpack.c.l.b16 %v1165
        %v1402 = vunpack.c.h.b16 %v1165
        %v1403 = vunpack.c.l.b16 %v1166
        %v1404 = vunpack.c.l.b16 %v1167
        %v1405 = vunpack.c.h.b16 %v1167
        %v1406 = vunpack.c.l.b16 %v1168
        %v1407 = vunpack.c.h.b16 %v1168
        %v1408 = vunpack.c.l.b16 %v1169
        %v1409 = vunpack.c.l.b16 %v1170
        %v1410 = vunpack.c.h.b16 %v1170
        %v1411 = vunpack.c.l.b16 %v1171
        %v1412 = vunpack.c.h.b16 %v1171
        %v1413 = vunpack.c.l.b16 %v1172
        %v1414 = vunpack.c.l.b16 %v1173
        %v1415 = vunpack.c.h.b16 %v1173
        %v1416 = vunpack.c.l.b16 %v1174
        %v1417 = vunpack.c.h.b16 %v1174
        %v1418 = vunpack.c.l.b16 %v1175
        %v1419 = vunpack.c.l.b16 %v1176
        %v1420 = vunpack.c.h.b16 %v1176
        %v1421 = vunpack.c.l.b16 %v1177
        %v1422 = vunpack.c.h.b16 %v1177
        %v1423 = vunpack.c.l.b16 %v1178
        %v1424 = vunpack.c.l.b16 %v1179
        %v1425 = vunpack.c.h.b16 %v1179
        %v1426 = vunpack.c.l.b16 %v1180
        %v1427 = vunpack.c.h.b16 %v1180
        %v1428 = vunpack.c.l.b16 %v1181
        %v1429 = vunpack.c.l.b16 %v1182
        %v1430 = vunpack.c.h.b16 %v1182
        %v1431 = vunpack.c.l.b16 %v1183
        %v1432 = vunpack.c.h.b16 %v1183
        %v1433 = vunpack.c.l.b16 %v1184
        %v1434 = vunpack.c.l.b16 %v1185
        %v1435 = vunpack.c.h.b16 %v1185
        %v1436 = vunpack.c.l.b16 %v1186
        %v1437 = vunpack.c.h.b16 %v1186
        %v1438 = vunpack.c.l.b16 %v1187
        %v1439 = vunpack.c.l.b16 %v1188
        %v1440 = vunpack.c.h.b16 %v1188
        %v1441 = vunpack.c.l.b16 %v1189
        %v1442 = vunpack.c.h.b16 %v1189
        %v1443 = vunpack.c.l.b16 %v1190
        %v1444 = vunpack.c.l.b16 %v1191
        %v1445 = vunpack.c.h.b16 %v1191
        %v1446 = vunpack.c.l.b16 %v1192
        %v1447 = vunpack.c.h.b16 %v1192
        %v1448 = vunpack.c.l.b16 %v1193
        %v1449 = vunpack.c.l.b16 %v1194
        %v1450 = vunpack.c.h.b16 %v1194
        %v1451 = vunpack.c.l.b16 %v1195
        %v1452 = vunpack.c.h.b16 %v1195
        %v1453 = vunpack.c.l.b16 %v1196
        %v1454 = vunpack.c.l.b16 %v1197
        %v1455 = vunpack.c.h.b16 %v1197
        %v1456 = vunpack.c.l.b16 %v1198
        %v1457 = vunpack.c.h.b16 %v1198
        %v1458 = vunpack.c.l.b16 %v1199
        %v1459 = vunpack.c.l.b16 %v1200
        %v1460 = vunpack.c.h.b16 %v1200
        %v1461 = vunpack.c.l.b16 %v1201
        %v1462 = vunpack.c.h.b16 %v1201
        %v1463 = vunpack.c.l.b16 %v1202
        %v1464 = vunpack.c.l.b16 %v1203
        %v1465 = vunpack.c.h.b16 %v1203
        %v1466 = vunpack.c.l.b16 %v1204
        %v1467 = vunpack.c.h.b16 %v1204
        %v1468 = vunpack.c.l.b16 %v1205
        %v1469 = vunpack.c.l.b16 %v1206
        %v1470 = vunpack.c.h.b16 %v1206
        %v1471 = vunpack.c.l.b16 %v1207
        %v1472 = vunpack.c.h.b16 %v1207
        %v1473 = vunpack.c.l.b16 %v1208
        %v1474 = vunpack.c.l.b16 %v1209
        %v1475 = vunpack.c.h.b16 %v1209
        %v1476 = vunpack.c.l.b16 %v1210
        %v1477 = vunpack.c.h.b16 %v1210
        %v1478 = vunpack.c.l.b16 %v1211
        %v1479 = vunpack.c.l.b16 %v1212
        %v1480 = vunpack.c.h.b16 %v1212
        %v1481 = vunpack.c.l.b16 %v1213
        %v1482 = vunpack.c.h.b16 %v1213
        %v1483 = vunpack.c.l.b16 %v1214
        %v1484 = vunpack.c.l.b16 %v1215
        %v1485 = vunpack.c.h.b16 %v1215
        %v1486 = vunpack.c.l.b16 %v1216
        %v1487 = vunpack.c.h.b16 %v1216
        %v1488 = vunpack.c.l.b16 %v1217
        %v1489 = vunpack.c.l.b16 %v1218
        %v1490 = vunpack.c.h.b16 %v1218
        %v1491 = vunpack.c.l.b16 %v1219
        %v1492 = vunpack.c.h.b16 %v1219
        %v1493 = vunpack.c.l.b16 %v1220
        %v1494 = vunpack.c.l.b16 %v1221
        %v1495 = vunpack.c.h.b16 %v1221
        %v1496 = vunpack.c.l.b16 %v1222
        %v1497 = vunpack.c.h.b16 %v1222
        %v1498 = vunpack.c.l.b16 %v1223
        %v1499 = vunpack.c.l.b16 %v1224
        %v1500 = vunpack.c.h.b16 %v1224
        %v1501 = vunpack.c.l.b16 %v1225
        %v1502 = vunpack.c.h.b16 %v1225
        %v1503 = vunpack.c.l.b16 %v1226
        %v1504 = vunpack.c.l.b16 %v1227
        %v1505 = vunpack.c.h.b16 %v1227
        %v1506 = vunpack.c.l.b16 %v1228
        %v1507 = vunpack.c.h.b16 %v1228
        %v1508 = vunpack.c.l.b16 %v1229
        %v1509 = vunpack.c.l.b16 %v1230
        %v1510 = vunpack.c.h.b16 %v1230
        %v1511 = vunpack.c.l.b16 %v1231
        %v1512 = vunpack.c.h.b16 %v1231
        %v1513 = vunpack.c.l.b16 %v1232
        %v1514 = vunpack.c.l.b16 %v1233
        %v1515 = vunpack.c.h.b16 %v1233
        %v1516 = vunpack.c.l.b16 %v1234
        %v1517 = vunpack.c.h.b16 %v1234
        %v1518 = vunpack.c.l.b16 %v1235
        %v1519 = vpack.c.b16 %v1364, %v1359
        %v1520 = vpack.c.b16 %v1365, %v1360
        %v1521 = vpack.c.b16 %v1366, %v1361
        %v1522 = vpack.c.b16 %v1367, %v1362
        %v1523 = vpack.c.b16 %v1368, %v1363
        %v1524 = vpack.c.b16 %v1374, %v1369
        %v1525 = vpack.c.b16 %v1375, %v1370
        %v1526 = vpack.c.b16 %v1376, %v1371
        %v1527 = vpack.c.b16 %v1377, %v1372
        %v1528 = vpack.c.b16 %v1378, %v1373
        %v1529 = vpack.c.b16 %v1384, %v1379
        %v1530 = vpack.c.b16 %v1385, %v1380
        %v1531 = vpack.c.b16 %v1386, %v1381
        %v1532 = vpack.c.b16 %v1387, %v1382
        %v1533 = vpack.c.b16 %v1388, %v1383
        %v1534 = vpack.c.b16 %v1394, %v1389
        %v1535 = vpack.c.b16 %v1395, %v1390
        %v1536 = vpack.c.b16 %v1396, %v1391
        %v1537 = vpack.c.b16 %v1397, %v1392
        %v1538 = vpack.c.b16 %v1398, %v1393
        %v1539 = vpack.c.b16 %v1404, %v1399
        %v1540 = vpack.c.b16 %v1405, %v1400
        %v1541 = vpack.c.b16 %v1406, %v1401
        %v1542 = vpack.c.b16 %v1407, %v1402
        %v1543 = vpack.c.b16 %v1408, %v1403
        %v1544 = vpack.c.b16 %v1414, %v1409
        %v1545 = vpack.c.b16 %v1415, %v1410
        %v1546 = vpack.c.b16 %v1416, %v1411
        %v1547 = vpack.c.b16 %v1417, %v1412
        %v1548 = vpack.c.b16 %v1418, %v1413
        %v1549 = vpack.c.b16 %v1424, %v1419
        %v1550 = vpack.c.b16 %v1425, %v1420
        %v1551 = vpack.c.b16 %v1426, %v1421
        %v1552 = vpack.c.b16 %v1427, %v1422
        %v1553 = vpack.c.b16 %v1428, %v1423
        %v1554 = vpack.c.b16 %v1434, %v1429
        %v1555 = vpack.c.b16 %v1435, %v1430
        %v1556 = vpack.c.b16 %v1436, %v1431
        %v1557 = vpack.c.b16 %v1437, %v1432
        %v1558 = vpack.c.b16 %v1438, %v1433
        %v1559 = vpack.c.b16 %v1444, %v1439
        %v1560 = vpack.c.b16 %v1445, %v1440
        %v1561 = vpack.c.b16 %v1446, %v1441
        %v1562 = vpack.c.b16 %v1447, %v1442
        %v1563 = vpack.c.b16 %v1448, %v1443
        %v1564 = vpack.c.b16 %v1454, %v1449
        %v1565 = vpack.c.b16 %v1455, %v1450
        %v1566 = vpack.c.b16 %v1456, %v1451
        %v1567 = vpack.c.b16 %v1457, %v1452
        %v1568 = vpack.c.b16 %v1458, %v1453
        %v1569 = vpack.c.b16 %v1464, %v1459
        %v1570 = vpack.c.b16 %v1465, %v1460
        %v1571 = vpack.c.b16 %v1466, %v1461
        %v1572 = vpack.c.b16 %v1467, %v1462
        %v1573 = vpack.c.b16 %v1468, %v1463
        %v1574 = vpack.c.b16 %v1474, %v1469
        %v1575 = vpack.c.b16 %v1475, %v1470
        %v1576 = vpack.c.b16 %v1476, %v1471
        %v1577 = vpack.c.b16 %v1477, %v1472
        %v1578 = vpack.c.b16 %v1478, %v1473
        %v1579 = vpack.c.b16 %v1484, %v1479
        %v1580 = vpack.c.b16 %v1485, %v1480
        %v1581 = vpack.c.b16 %v1486, %v1481
        %v1582 = vpack.c.b16 %v1487, %v1482
        %v1583 = vpack.c.b16 %v1488, %v1483
        %v1584 = vpack.c.b16 %v1494, %v1489
        %v1585 = vpack.c.b16 %v1495, %v1490
        %v1586 = vpack.c.b16 %v1496, %v1491
        %v1587 = vpack.c.b16 %v1497, %v1492
        %v1588 = vpack.c.b16 %v1498, %v1493
        %v1589 = vpack.c.b16 %v1504, %v1499
        %v1590 = vpack.c.b16 %v1505, %v1500
        %v1591 = vpack.c.b16 %v1506, %v1501
        %v1592 = vpack.c.b16 %v1507, %v1502
        %v1593 = vpack.c.b16 %v1508, %v1503
        %v1594 = vpack.c.b16 %v1514, %v1509
        %v1595 = vpack.c.b16 %v1515, %v1510
        %v1596 = vpack.c.b16 %v1516, %v1511
        %v1597 = vpack.c.b16 %v1517, %v1512
        %v1598 = vpack.c.b16 %v1518, %v1513
        %1679 = vmatprep.subr.bf16.mxu0 %v1520
        %1680 = vmatpush1.bf16.msra.mxu0 %v1519
        %1681 = vmatprep.subr.bf16.mxu0 %v1525
        %1682 = vmatpush1.bf16.msra.mxu0 %v1524
        %1683 = vmatprep.subr.bf16.mxu0 %v1530
        %1684 = vmatpush1.bf16.msra.mxu0 %v1529
        %1685 = vmatprep.subr.bf16.mxu0 %v1535
        %1686 = vmatpush1.bf16.msra.mxu0 %v1534
        %1687 = vmatprep.subr.bf16.mxu0 %v1540
        %1688 = vmatpush1.bf16.msra.mxu0 %v1539
        %1689 = vmatprep.subr.bf16.mxu0 %v1545
        %1690 = vmatpush1.bf16.msra.mxu0 %v1544
        %1691 = vmatprep.subr.bf16.mxu0 %v1550
        %1692 = vmatpush1.bf16.msra.mxu0 %v1549
        %1693 = vmatprep.subr.bf16.mxu0 %v1555
        %1694 = vmatpush1.bf16.msra.mxu0 %v1554
        %1695 = vmatprep.subr.bf16.mxu0 %v1560
        %1696 = vmatpush1.bf16.msra.mxu0 %v1559
        %1697 = vmatprep.subr.bf16.mxu0 %v1565
        %1698 = vmatpush1.bf16.msra.mxu0 %v1564
        %1699 = vmatprep.subr.bf16.mxu0 %v1570
        %1700 = vmatpush1.bf16.msra.mxu0 %v1569
        %1701 = vmatprep.subr.bf16.mxu0 %v1575
        %1702 = vmatpush1.bf16.msra.mxu0 %v1574
        %1703 = vmatprep.subr.bf16.mxu0 %v1580
        %1704 = vmatpush1.bf16.msra.mxu0 %v1579
        %1705 = vmatprep.subr.bf16.mxu0 %v1585
        %1706 = vmatpush1.bf16.msra.mxu0 %v1584
        %1707 = vmatprep.subr.bf16.mxu0 %v1590
        %1708 = vmatpush1.bf16.msra.mxu0 %v1589
        %1709 = vmatprep.subr.bf16.mxu0 %v1595
        %1710 = vmatpush1.bf16.msra.mxu0 %v1594
        %1711 = vmatprep.mubr.bf16.mxu0 %v1139
        %1712 = vmatmul.mubr.bf16.gmra.mrb[0].mxu0 %v1138
        %v1713 = vpop.f32.mrb[0].mxu0
        %v1714 = vadd.f32 %v1241, %v1713
        %v1715 = vpop.f32.mrb[0].mxu0
        %v1716 = vadd.f32 %v1245, %v1715
        %v1717 = vpop.f32.mrb[0].mxu0
        %v1718 = vpop.f32.mrb[0].mxu0
        %1719 = vdwg.mxu0
        %1720 = vmatprep.subr.bf16.mxu0 %v1522
        %1721 = vmatpush1.bf16.msra.mxu0 %v1521
        %1722 = vmatprep.subr.bf16.mxu0 %v1527
        %1723 = vmatpush1.bf16.msra.mxu0 %v1526
        %1724 = vmatprep.subr.bf16.mxu0 %v1532
        %1725 = vmatpush1.bf16.msra.mxu0 %v1531
        %1726 = vmatprep.subr.bf16.mxu0 %v1537
        %1727 = vmatpush1.bf16.msra.mxu0 %v1536
        %1728 = vmatprep.subr.bf16.mxu0 %v1542
        %1729 = vmatpush1.bf16.msra.mxu0 %v1541
        %1730 = vmatprep.subr.bf16.mxu0 %v1547
        %1731 = vmatpush1.bf16.msra.mxu0 %v1546
        %1732 = vmatprep.subr.bf16.mxu0 %v1552
        %1733 = vmatpush1.bf16.msra.mxu0 %v1551
        %1734 = vmatprep.subr.bf16.mxu0 %v1557
        %1735 = vmatpush1.bf16.msra.mxu0 %v1556
        %1736 = vmatprep.subr.bf16.mxu0 %v1562
        %1737 = vmatpush1.bf16.msra.mxu0 %v1561
        %1738 = vmatprep.subr.bf16.mxu0 %v1567
        %1739 = vmatpush1.bf16.msra.mxu0 %v1566
        %1740 = vmatprep.subr.bf16.mxu0 %v1572
        %1741 = vmatpush1.bf16.msra.mxu0 %v1571
        %1742 = vmatprep.subr.bf16.mxu0 %v1577
        %1743 = vmatpush1.bf16.msra.mxu0 %v1576
        %1744 = vmatprep.subr.bf16.mxu0 %v1582
        %1745 = vmatpush1.bf16.msra.mxu0 %v1581
        %1746 = vmatprep.subr.bf16.mxu0 %v1587
        %1747 = vmatpush1.bf16.msra.mxu0 %v1586
        %1748 = vmatprep.subr.bf16.mxu0 %v1592
        %1749 = vmatpush1.bf16.msra.mxu0 %v1591
        %1750 = vmatprep.subr.bf16.mxu0 %v1597
        %1751 = vmatpush1.bf16.msra.mxu0 %v1596
        %1752 = vmatprep.mubr.bf16.mxu0 %v1139
        %1753 = vmatmul.mubr.bf16.gmra.mrb[0].mxu0 %v1138
        %v1754 = vpop.f32.mrb[0].mxu0
        %v1755 = vadd.f32 %v1249, %v1754
        %v1756 = vpop.f32.mrb[0].mxu0
        %v1757 = vadd.f32 %v1253, %v1756
        %v1758 = vpop.f32.mrb[0].mxu0
        %v1759 = vpop.f32.mrb[0].mxu0
        %1760 = vdwg.mxu0
        %1761 = vmatprep.subr.bf16.mxu0 0
        %1762 = vmatpush1.bf16.msra.mxu0 %v1523
        %1763 = vmatprep.subr.bf16.mxu0 0
        %1764 = vmatpush1.bf16.msra.mxu0 %v1528
        %1765 = vmatprep.subr.bf16.mxu0 0
        %1766 = vmatpush1.bf16.msra.mxu0 %v1533
        %1767 = vmatprep.subr.bf16.mxu0 0
        %1768 = vmatpush1.bf16.msra.mxu0 %v1538
        %1769 = vmatprep.subr.bf16.mxu0 0
        %1770 = vmatpush1.bf16.msra.mxu0 %v1543
        %1771 = vmatprep.subr.bf16.mxu0 0
        %1772 = vmatpush1.bf16.msra.mxu0 %v1548
        %1773 = vmatprep.subr.bf16.mxu0 0
        %1774 = vmatpush1.bf16.msra.mxu0 %v1553
        %1775 = vmatprep.subr.bf16.mxu0 0
        %1776 = vmatpush1.bf16.msra.mxu0 %v1558
        %1777 = vmatprep.subr.bf16.mxu0 0
        %1778 = vmatpush1.bf16.msra.mxu0 %v1563
        %1779 = vmatprep.subr.bf16.mxu0 0
        %1780 = vmatpush1.bf16.msra.mxu0 %v1568
        %1781 = vmatprep.subr.bf16.mxu0 0
        %1782 = vmatpush1.bf16.msra.mxu0 %v1573
        %1783 = vmatprep.subr.bf16.mxu0 0
        %1784 = vmatpush1.bf16.msra.mxu0 %v1578
        %1785 = vmatprep.subr.bf16.mxu0 0
        %1786 = vmatpush1.bf16.msra.mxu0 %v1583
        %1787 = vmatprep.subr.bf16.mxu0 0
        %1788 = vmatpush1.bf16.msra.mxu0 %v1588
        %1789 = vmatprep.subr.bf16.mxu0 0
        %1790 = vmatpush1.bf16.msra.mxu0 %v1593
        %1791 = vmatprep.subr.bf16.mxu0 0
        %1792 = vmatpush1.bf16.msra.mxu0 %v1598
        %1793 = vmatprep.mubr.bf16.mxu0 %v1139
        %1794 = vmatmul.mubr.bf16.gmra.mrb[0].mxu0 %v1138
        %v1795 = vpop.f32.mrb[0].mxu0
        %v1796 = vadd.f32 %v1257, %v1795
        %v1797 = vpop.f32.mrb[0].mxu0
        %v1798 = vpop.f32.mrb[0].mxu0
        %v1799 = vpop.f32.mrb[0].mxu0
        %1800 = vdwg.mxu0
        %v1801 = vmax.f32 %v1714, 0.0
        %v1802 = vmax.f32 %v1716, 0.0
        %v1803 = vmax.f32 %v1755, 0.0
        %v1804 = vmax.f32 %v1757, 0.0
        %v1805 = vmax.f32 %v1796, 0.0
        %v1806 = vpack.c.bf16 %v1801, %v1801
        %v1807 = vld [vmem:[%s5] sm:$0xf]
        %v1808 = vld [vmem:[%s5 + $0x4] sm:$0xf]
        %v1809 = vld [vmem:[%s5 + $0x8] sm:$0xf]
        %v1810 = vld [vmem:[%s5 + $0xc] sm:$0xf]
        %v1811 = vld [vmem:[%s5 + $0x10] sm:$0xf]
        %v1812 = vld [vmem:[%s5 + $0x14] sm:$0xf]
        %v1813 = vld [vmem:[%s5 + $0x18] sm:$0xf]
        %v1814 = vld [vmem:[%s5 + $0x1c] sm:$0xf]
        %v1815 = vld [vmem:[%s5 + $0x20] sm:$0xf]
        %v1816 = vld [vmem:[%s5 + $0x24] sm:$0xf]
        %v1817 = vld [vmem:[%s5 + $0x28] sm:$0xf]
        %v1818 = vld [vmem:[%s5 + $0x2c] sm:$0xf]
        %v1819 = vld [vmem:[%s5 + $0x30] sm:$0xf]
        %v1820 = vld [vmem:[%s5 + $0x34] sm:$0xf]
        %v1821 = vld [vmem:[%s5 + $0x38] sm:$0xf]
        %v1822 = vld [vmem:[%s5 + $0x3c] sm:$0xf]
        %v1823 = vld [vmem:[%s6] sm:$0x1]
        %v1825 = vlaneseq
        %v1826 = vshrl.u32 %v1825, 7
        %v1827 = vsub.s32 0, %v1826
        %v1828 = vrot.slane %v1823, %v1827
        %v1846 = vunpack.c.l.b16 %v1807
        %v1847 = vunpack.c.l.b16 %v1808
        %v1848 = vunpack.c.l.b16 %v1809
        %v1849 = vunpack.c.l.b16 %v1810
        %v1850 = vunpack.c.l.b16 %v1811
        %v1851 = vunpack.c.l.b16 %v1812
        %v1852 = vunpack.c.l.b16 %v1813
        %v1853 = vunpack.c.l.b16 %v1814
        %v1854 = vunpack.c.l.b16 %v1815
        %v1855 = vunpack.c.l.b16 %v1816
        %v1856 = vunpack.c.l.b16 %v1817
        %v1857 = vunpack.c.l.b16 %v1818
        %v1858 = vunpack.c.l.b16 %v1819
        %v1859 = vunpack.c.l.b16 %v1820
        %v1860 = vunpack.c.l.b16 %v1821
        %v1861 = vunpack.c.l.b16 %v1822
        %v1862 = vpack.c.b16 %v1847, %v1846
        %v1863 = vpack.c.b16 %v1849, %v1848
        %v1864 = vpack.c.b16 %v1851, %v1850
        %v1865 = vpack.c.b16 %v1853, %v1852
        %v1866 = vpack.c.b16 %v1855, %v1854
        %v1867 = vpack.c.b16 %v1857, %v1856
        %v1868 = vpack.c.b16 %v1859, %v1858
        %v1869 = vpack.c.b16 %v1861, %v1860
        %1878 = vmatprep.subr.bf16.mxu0 0
        %1879 = vmatpush1.bf16.msra.mxu0 %v1862
        %1880 = vmatprep.subr.bf16.mxu0 0
        %1881 = vmatpush1.bf16.msra.mxu0 %v1863
        %1882 = vmatprep.subr.bf16.mxu0 0
        %1883 = vmatpush1.bf16.msra.mxu0 %v1864
        %1884 = vmatprep.subr.bf16.mxu0 0
        %1885 = vmatpush1.bf16.msra.mxu0 %v1865
        %1886 = vmatprep.subr.bf16.mxu0 0
        %1887 = vmatpush1.bf16.msra.mxu0 %v1866
        %1888 = vmatprep.subr.bf16.mxu0 0
        %1889 = vmatpush1.bf16.msra.mxu0 %v1867
        %1890 = vmatprep.subr.bf16.mxu0 0
        %1891 = vmatpush1.bf16.msra.mxu0 %v1868
        %1892 = vmatprep.subr.bf16.mxu0 0
        %1893 = vmatpush1.bf16.msra.mxu0 %v1869
        %1894 = vmatprep.subr.bf16.mxu0 0
        %1895 = vmatpush1.bf16.msra.mxu0 0
        %1896 = vmatprep.subr.bf16.mxu0 0
        %1897 = vmatpush1.bf16.msra.mxu0 0
        %1898 = vmatprep.subr.bf16.mxu0 0
        %1899 = vmatpush1.bf16.msra.mxu0 0
        %1900 = vmatprep.subr.bf16.mxu0 0
        %1901 = vmatpush1.bf16.msra.mxu0 0
        %1902 = vmatprep.subr.bf16.mxu0 0
        %1903 = vmatpush1.bf16.msra.mxu0 0
        %1904 = vmatprep.subr.bf16.mxu0 0
        %1905 = vmatpush1.bf16.msra.mxu0 0
        %1906 = vmatprep.subr.bf16.mxu0 0
        %1907 = vmatpush1.bf16.msra.mxu0 0
        %1908 = vmatprep.subr.bf16.mxu0 0
        %1909 = vmatpush1.bf16.msra.mxu0 0
        %1910 = vmatprep.mubr.bf16.mxu0 0
        %1911 = vmatmul.mubr.bf16.gmra.mrb[0].mxu0 %v1806
        %v1912 = vpop.f32.mrb[0].mxu0
        %v1913 = vadd.f32 %v1828, %v1912
        %v1914 = vpop.f32.mrb[0].mxu0
        %v1915 = vpop.f32.mrb[0].mxu0
        %v1916 = vpop.f32.mrb[0].mxu0
        %1917 = vdwg.mxu0
        %v1918 = vmax.f32 %v1913, 0.0
        %v1919 = vpack.c.bf16 %v1918, %v1918
        %v1920 = vld [vmem:[%s7] sm:$0xf]
        %v1921 = vld [vmem:[%s7 + $0x4] sm:$0xf]
        %v1922 = vld [vmem:[%s7 + $0x8] sm:$0xf]
        %v1923 = vld [vmem:[%s7 + $0xc] sm:$0xf]
        %v1924 = vld [vmem:[%s7 + $0x10] sm:$0xf]
        %v1925 = vld [vmem:[%s7 + $0x14] sm:$0xf]
        %v1926 = vld [vmem:[%s7 + $0x18] sm:$0xf]
        %v1927 = vld [vmem:[%s7 + $0x1c] sm:$0xf]
        %v1928 = vld [vmem:[#allocation10] sm:$0x1]
        %v1930 = vlaneseq
        %v1931 = vshrl.u32 %v1930, 7
        %v1932 = vsub.s32 0, %v1931
        %v1933 = vrot.slane %v1928, %v1932
        %v1943 = vunpack.c.l.b16 %v1920
        %v1944 = vunpack.c.l.b16 %v1921
        %v1945 = vunpack.c.l.b16 %v1922
        %v1946 = vunpack.c.l.b16 %v1923
        %v1947 = vunpack.c.l.b16 %v1924
        %v1948 = vunpack.c.l.b16 %v1925
        %v1949 = vunpack.c.l.b16 %v1926
        %v1950 = vunpack.c.l.b16 %v1927
        %v1951 = vpack.c.b16 %v1944, %v1943
        %v1952 = vpack.c.b16 %v1946, %v1945
        %v1953 = vpack.c.b16 %v1948, %v1947
        %v1954 = vpack.c.b16 %v1950, %v1949
        %vm1959 = vcmask 523264
        %v1961 = vsel %vm1959, %v1919, 0
        %1963 = vmatprep.subr.bf16.mxu0 0
        %1964 = vmatpush1.bf16.msra.mxu0 %v1951
        %1965 = vmatprep.subr.bf16.mxu0 0
        %1966 = vmatpush1.bf16.msra.mxu0 %v1952
        %1967 = vmatprep.subr.bf16.mxu0 0
        %1968 = vmatpush1.bf16.msra.mxu0 %v1953
        %1969 = vmatprep.subr.bf16.mxu0 0
        %1970 = vmatpush1.bf16.msra.mxu0 %v1954
        %1971 = vmatprep.subr.bf16.mxu0 0
        %1972 = vmatpush1.bf16.msra.mxu0 0
        %1973 = vmatprep.subr.bf16.mxu0 0
        %1974 = vmatpush1.bf16.msra.mxu0 0
        %1975 = vmatprep.subr.bf16.mxu0 0
        %1976 = vmatpush1.bf16.msra.mxu0 0
        %1977 = vmatprep.subr.bf16.mxu0 0
        %1978 = vmatpush1.bf16.msra.mxu0 0
        %1979 = vmatprep.subr.bf16.mxu0 0
        %1980 = vmatpush1.bf16.msra.mxu0 0
        %1981 = vmatprep.subr.bf16.mxu0 0
        %1982 = vmatpush1.bf16.msra.mxu0 0
        %1983 = vmatprep.subr.bf16.mxu0 0
        %1984 = vmatpush1.bf16.msra.mxu0 0
        %1985 = vmatprep.subr.bf16.mxu0 0
        %1986 = vmatpush1.bf16.msra.mxu0 0
        %1987 = vmatprep.subr.bf16.mxu0 0
        %1988 = vmatpush1.bf16.msra.mxu0 0
        %1989 = vmatprep.subr.bf16.mxu0 0
        %1990 = vmatpush1.bf16.msra.mxu0 0
        %1991 = vmatprep.subr.bf16.mxu0 0
        %1992 = vmatpush1.bf16.msra.mxu0 0
        %1993 = vmatprep.subr.bf16.mxu0 0
        %1994 = vmatpush1.bf16.msra.mxu0 0
        %1995 = vmatprep.mubr.bf16.mxu0 0
        %1996 = vmatmul.mubr.bf16.gmra.mrb[0].mxu0 %v1961
        %v1997 = vpop.f32.mrb[0].mxu0
        %v1998 = vadd.f32 %v1933, %v1997
        %v1999 = vpop.f32.mrb[0].mxu0
        %v2000 = vpop.f32.mrb[0].mxu0
        %v2001 = vpop.f32.mrb[0].mxu0
        %2002 = vdwg.mxu0
        %v2003 = vmax.f32 %v1998, 0.0
        %v2004 = vpack.c.bf16 %v2003, %v2003
        %v2005 = vld [vmem:[%s9] sm:$0xf]
        %v2006 = vld [vmem:[%s9 + $0x4] sm:$0xf]
        %v2007 = vld [vmem:[%s9 + $0x8] sm:$0xf]
        %v2008 = vld [vmem:[%s9 + $0xc] sm:$0xf]
        %v2009 = vld [vmem:[#allocation11] sm:$0x1]
        %v2011 = vlaneseq
        %v2012 = vshrl.u32 %v2011, 7
        %v2013 = vsub.s32 0, %v2012
        %v2014 = vrot.slane %v2009, %v2013
        %v2020 = vunpack.c.l.b16 %v2005
        %v2021 = vunpack.c.l.b16 %v2006
        %v2022 = vunpack.c.l.b16 %v2007
        %v2023 = vunpack.c.l.b16 %v2008
        %v2024 = vpack.c.b16 %v2021, %v2020
        %v2025 = vpack.c.b16 %v2023, %v2022
        %vm2028 = vcmask 261120
        %v2030 = vsel %vm2028, %v2004, 0
        %2032 = vmatprep.subr.bf16.mxu0 0
        %2033 = vmatpush1.bf16.msra.mxu0 %v2024
        %2034 = vmatprep.subr.bf16.mxu0 0
        %2035 = vmatpush1.bf16.msra.mxu0 %v2025
        %2036 = vmatprep.subr.bf16.mxu0 0
        %2037 = vmatpush1.bf16.msra.mxu0 0
        %2038 = vmatprep.subr.bf16.mxu0 0
        %2039 = vmatpush1.bf16.msra.mxu0 0
        %2040 = vmatprep.subr.bf16.mxu0 0
        %2041 = vmatpush1.bf16.msra.mxu0 0
        %2042 = vmatprep.subr.bf16.mxu0 0
        %2043 = vmatpush1.bf16.msra.mxu0 0
        %2044 = vmatprep.subr.bf16.mxu0 0
        %2045 = vmatpush1.bf16.msra.mxu0 0
        %2046 = vmatprep.subr.bf16.mxu0 0
        %2047 = vmatpush1.bf16.msra.mxu0 0
        %2048 = vmatprep.subr.bf16.mxu0 0
        %2049 = vmatpush1.bf16.msra.mxu0 0
        %2050 = vmatprep.subr.bf16.mxu0 0
        %2051 = vmatpush1.bf16.msra.mxu0 0
        %2052 = vmatprep.subr.bf16.mxu0 0
        %2053 = vmatpush1.bf16.msra.mxu0 0
        %2054 = vmatprep.subr.bf16.mxu0 0
        %2055 = vmatpush1.bf16.msra.mxu0 0
        %2056 = vmatprep.subr.bf16.mxu0 0
        %2057 = vmatpush1.bf16.msra.mxu0 0
        %2058 = vmatprep.subr.bf16.mxu0 0
        %2059 = vmatpush1.bf16.msra.mxu0 0
        %2060 = vmatprep.subr.bf16.mxu0 0
        %2061 = vmatpush1.bf16.msra.mxu0 0
        %2062 = vmatprep.subr.bf16.mxu0 0
        %2063 = vmatpush1.bf16.msra.mxu0 0
        %2064 = vmatprep.mubr.bf16.mxu0 0
        %2065 = vmatmul.mubr.bf16.gmra.mrb[0].mxu0 %v2030
        %v2066 = vpop.f32.mrb[0].mxu0
        %v2067 = vadd.f32 %v2014, %v2066
        %v2068 = vpop.f32.mrb[0].mxu0
        %v2069 = vpop.f32.mrb[0].mxu0
        %v2070 = vpop.f32.mrb[0].mxu0
        %2071 = vdwg.mxu0
        %v2072 = vxor.u32 %v2067, 2147483648
        %v2073 = vmul.f32 %v2072, 1.442695
        %v2074 = vpow.pop %v2073
        %v2075 = vadd.f32 %v2074, 1.0
        %v2076 = vrcp.pop %v2075
        %v2077 = vmul.f32 1.0, %v2076
        %2078 = vst [vmem:[%s628] sm:$0xff] %v2077
        %v2079 = vpack.c.bf16 %v1802, %v1802
        %v2080 = vpack.c.bf16 %v1803, %v1803
        %v2081 = vpack.c.bf16 %v1804, %v1804
        %v2082 = vpack.c.bf16 %v1805, %v1805
        %v2083 = vld [vmem:[#allocation13] sm:$0xff]
        %v2084 = vld [vmem:[#allocation13 + $0x8] sm:$0xff]
        %v2085 = vld [vmem:[#allocation13 + $0x10] sm:$0xff]
        %v2086 = vld [vmem:[#allocation13 + $0x18] sm:$0xff]
        %v2087 = vld [vmem:[#allocation13 + $0x20] sm:$0xff]
        %v2088 = vld [vmem:[#allocation13 + $0x28] sm:$0xff]
        %v2089 = vld [vmem:[#allocation13 + $0x30] sm:$0xff]
        %v2090 = vld [vmem:[#allocation13 + $0x38] sm:$0xff]
        %v2091 = vld [vmem:[#allocation13 + $0x40] sm:$0xff]
        %v2092 = vld [vmem:[#allocation13 + $0x48] sm:$0xff]
        %v2093 = vld [vmem:[#allocation13 + $0x50] sm:$0xff]
        %v2094 = vld [vmem:[#allocation13 + $0x58] sm:$0xff]
        %v2095 = vld [vmem:[#allocation13 + $0x60] sm:$0xff]
        %v2096 = vld [vmem:[#allocation13 + $0x68] sm:$0xff]
        %v2097 = vld [vmem:[#allocation13 + $0x70] sm:$0xff]
        %v2098 = vld [vmem:[#allocation13 + $0x78] sm:$0xff]
        %v2099 = vld [vmem:[#allocation13 + $0x80] sm:$0xff]
        %v2100 = vld [vmem:[#allocation13 + $0x88] sm:$0xff]
        %v2101 = vld [vmem:[#allocation13 + $0x90] sm:$0xff]
        %v2102 = vld [vmem:[#allocation13 + $0x98] sm:$0xff]
        %v2103 = vld [vmem:[#allocation13 + $0xa0] sm:$0xff]
        %v2104 = vld [vmem:[#allocation13 + $0xa8] sm:$0xff]
        %v2105 = vld [vmem:[#allocation13 + $0xb0] sm:$0xff]
        %v2106 = vld [vmem:[#allocation13 + $0xb8] sm:$0xff]
        %v2107 = vld [vmem:[#allocation13 + $0xc0] sm:$0xff]
        %v2108 = vld [vmem:[#allocation13 + $0xc8] sm:$0xff]
        %v2109 = vld [vmem:[#allocation13 + $0xd0] sm:$0xff]
        %v2110 = vld [vmem:[#allocation13 + $0xd8] sm:$0xff]
        %v2111 = vld [vmem:[#allocation13 + $0xe0] sm:$0xff]
        %v2112 = vld [vmem:[#allocation13 + $0xe8] sm:$0xff]
        %v2113 = vld [vmem:[#allocation13 + $0xf0] sm:$0xff]
        %v2114 = vld [vmem:[#allocation13 + $0xf8] sm:$0xff]
        %v2115 = vld [vmem:[#allocation13 + $0x100] sm:$0xff]
        %v2116 = vld [vmem:[#allocation13 + $0x108] sm:$0xff]
        %v2117 = vld [vmem:[#allocation13 + $0x110] sm:$0xff]
        %v2118 = vld [vmem:[#allocation13 + $0x118] sm:$0xff]
        %v2119 = vld [vmem:[#allocation13 + $0x120] sm:$0xff]
        %v2120 = vld [vmem:[#allocation13 + $0x128] sm:$0xff]
        %v2121 = vld [vmem:[#allocation13 + $0x130] sm:$0xff]
        %v2122 = vld [vmem:[#allocation13 + $0x138] sm:$0xff]
        %v2123 = vld [vmem:[#allocation13 + $0x140] sm:$0xff]
        %v2124 = vld [vmem:[#allocation13 + $0x148] sm:$0xff]
        %v2125 = vld [vmem:[#allocation13 + $0x150] sm:$0xff]
        %v2126 = vld [vmem:[#allocation13 + $0x158] sm:$0xff]
        %v2127 = vld [vmem:[#allocation13 + $0x160] sm:$0xff]
        %v2128 = vld [vmem:[#allocation13 + $0x168] sm:$0xff]
        %v2129 = vld [vmem:[#allocation13 + $0x170] sm:$0xff]
        %v2130 = vld [vmem:[#allocation13 + $0x178] sm:$0xff]
        %v2131 = vld [vmem:[#allocation13 + $0x180] sm:$0xff]
        %v2132 = vld [vmem:[#allocation13 + $0x188] sm:$0xff]
        %v2133 = vld [vmem:[#allocation13 + $0x190] sm:$0xff]
        %v2134 = vld [vmem:[#allocation13 + $0x198] sm:$0xff]
        %v2135 = vld [vmem:[#allocation13 + $0x1a0] sm:$0xff]
        %v2136 = vld [vmem:[#allocation13 + $0x1a8] sm:$0xff]
        %v2137 = vld [vmem:[#allocation13 + $0x1b0] sm:$0xff]
        %v2138 = vld [vmem:[#allocation13 + $0x1b8] sm:$0xff]
        %v2139 = vld [vmem:[#allocation13 + $0x1c0] sm:$0xff]
        %v2140 = vld [vmem:[#allocation13 + $0x1c8] sm:$0xff]
        %v2141 = vld [vmem:[#allocation13 + $0x1d0] sm:$0xff]
        %v2142 = vld [vmem:[#allocation13 + $0x1d8] sm:$0xff]
        %v2143 = vld [vmem:[#allocation13 + $0x1e0] sm:$0xff]
        %v2144 = vld [vmem:[#allocation13 + $0x1e8] sm:$0xff]
        %v2145 = vld [vmem:[#allocation13 + $0x1f0] sm:$0xff]
        %v2146 = vld [vmem:[#allocation13 + $0x1f8] sm:$0xff]
        %v2147 = vld [vmem:[#allocation13 + $0x200] sm:$0xff]
        %v2148 = vld [vmem:[#allocation13 + $0x208] sm:$0xff]
        %v2149 = vld [vmem:[#allocation13 + $0x210] sm:$0xff]
        %v2150 = vld [vmem:[#allocation13 + $0x218] sm:$0xff]
        %v2151 = vld [vmem:[#allocation13 + $0x220] sm:$0xff]
        %v2152 = vld [vmem:[#allocation13 + $0x228] sm:$0xff]
        %v2153 = vld [vmem:[#allocation13 + $0x230] sm:$0xff]
        %v2154 = vld [vmem:[#allocation13 + $0x238] sm:$0xff]
        %v2155 = vld [vmem:[#allocation13 + $0x240] sm:$0xff]
        %v2156 = vld [vmem:[#allocation13 + $0x248] sm:$0xff]
        %v2157 = vld [vmem:[#allocation13 + $0x250] sm:$0xff]
        %v2158 = vld [vmem:[#allocation13 + $0x258] sm:$0xff]
        %v2159 = vld [vmem:[#allocation13 + $0x260] sm:$0xff]
        %v2160 = vld [vmem:[#allocation13 + $0x268] sm:$0xff]
        %v2161 = vld [vmem:[#allocation13 + $0x270] sm:$0xff]
        %v2162 = vld [vmem:[#allocation13 + $0x278] sm:$0xff]
        %v2163 = vld [vmem:[#allocation13 + $0x280] sm:$0xff]
        %v2164 = vld [vmem:[#allocation13 + $0x288] sm:$0xff]
        %v2165 = vld [vmem:[#allocation13 + $0x290] sm:$0xff]
        %v2166 = vld [vmem:[#allocation13 + $0x298] sm:$0xff]
        %v2167 = vld [vmem:[#allocation13 + $0x2a0] sm:$0xff]
        %v2168 = vld [vmem:[#allocation13 + $0x2a8] sm:$0xff]
        %v2169 = vld [vmem:[#allocation13 + $0x2b0] sm:$0xff]
        %v2170 = vld [vmem:[#allocation13 + $0x2b8] sm:$0xff]
        %v2171 = vld [vmem:[#allocation13 + $0x2c0] sm:$0xff]
        %v2172 = vld [vmem:[#allocation13 + $0x2c8] sm:$0xff]
        %v2173 = vld [vmem:[#allocation13 + $0x2d0] sm:$0xff]
        %v2174 = vld [vmem:[#allocation13 + $0x2d8] sm:$0xff]
        %v2175 = vld [vmem:[#allocation13 + $0x2e0] sm:$0xff]
        %v2176 = vld [vmem:[#allocation13 + $0x2e8] sm:$0xff]
        %v2177 = vld [vmem:[#allocation13 + $0x2f0] sm:$0xff]
        %v2178 = vld [vmem:[#allocation13 + $0x2f8] sm:$0xff]
        %v2179 = vld [vmem:[#allocation13 + $0x300] sm:$0xff]
        %v2180 = vld [vmem:[#allocation13 + $0x308] sm:$0xff]
        %v2181 = vld [vmem:[#allocation13 + $0x310] sm:$0xff]
        %v2182 = vld [vmem:[#allocation13 + $0x318] sm:$0xff]
        %v2183 = vld [vmem:[#allocation13 + $0x320] sm:$0xff]
        %v2184 = vld [vmem:[#allocation13 + $0x328] sm:$0xff]
        %v2185 = vld [vmem:[#allocation13 + $0x330] sm:$0xff]
        %v2186 = vld [vmem:[#allocation13 + $0x338] sm:$0xff]
        %v2187 = vld [vmem:[#allocation13 + $0x340] sm:$0xff]
        %v2188 = vld [vmem:[#allocation13 + $0x348] sm:$0xff]
        %v2189 = vld [vmem:[#allocation13 + $0x350] sm:$0xff]
        %v2190 = vld [vmem:[#allocation13 + $0x358] sm:$0xff]
        %v2191 = vld [vmem:[#allocation13 + $0x360] sm:$0xff]
        %v2192 = vld [vmem:[#allocation13 + $0x368] sm:$0xff]
        %v2193 = vld [vmem:[#allocation13 + $0x370] sm:$0xff]
        %v2194 = vld [vmem:[#allocation13 + $0x378] sm:$0xff]
        %v2195 = vld [vmem:[#allocation13 + $0x380] sm:$0xff]
        %v2196 = vld [vmem:[#allocation13 + $0x388] sm:$0xff]
        %v2197 = vld [vmem:[#allocation13 + $0x390] sm:$0xff]
        %v2198 = vld [vmem:[#allocation13 + $0x398] sm:$0xff]
        %v2199 = vld [vmem:[#allocation13 + $0x3a0] sm:$0xff]
        %v2200 = vld [vmem:[#allocation13 + $0x3a8] sm:$0xff]
        %v2201 = vld [vmem:[#allocation13 + $0x3b0] sm:$0xff]
        %v2202 = vld [vmem:[#allocation13 + $0x3b8] sm:$0xff]
        %v2203 = vld [vmem:[#allocation13 + $0x3c0] sm:$0xff]
        %v2204 = vld [vmem:[#allocation13 + $0x3c8] sm:$0xff]
        %v2205 = vld [vmem:[#allocation13 + $0x3d0] sm:$0xff]
        %v2206 = vld [vmem:[#allocation13 + $0x3d8] sm:$0xff]
        %v2207 = vld [vmem:[#allocation13 + $0x3e0] sm:$0xff]
        %v2208 = vld [vmem:[#allocation13 + $0x3e8] sm:$0xff]
        %v2209 = vld [vmem:[#allocation13 + $0x3f0] sm:$0xff]
        %v2210 = vld [vmem:[#allocation13 + $0x3f8] sm:$0xff]
        %v2211 = vld [vmem:[%s12] sm:$0xf]
        %v2213 = vlaneseq
        %v2214 = vshrl.u32 %v2213, 7
        %v2215 = vsub.s32 0, %v2214
        %v2216 = vrot.slane %v2211, %v2215
        %v2217 = vlaneseq
        %v2218 = vshrl.u32 %v2217, 7
        %v2219 = vsub.s32 1, %v2218
        %v2220 = vrot.slane %v2211, %v2219
        %v2221 = vlaneseq
        %v2222 = vshrl.u32 %v2221, 7
        %v2223 = vsub.s32 2, %v2222
        %v2224 = vrot.slane %v2211, %v2223
        %v2225 = vlaneseq
        %v2226 = vshrl.u32 %v2225, 7
        %v2227 = vsub.s32 3, %v2226
        %v2228 = vrot.slane %v2211, %v2227
        %v2361 = vunpack.c.l.b16 %v2083
        %v2362 = vunpack.c.h.b16 %v2083
        %v2363 = vunpack.c.l.b16 %v2084
        %v2364 = vunpack.c.h.b16 %v2084
        %v2365 = vunpack.c.l.b16 %v2085
        %v2366 = vunpack.c.h.b16 %v2085
        %v2367 = vunpack.c.l.b16 %v2086
        %v2368 = vunpack.c.h.b16 %v2086
        %v2369 = vunpack.c.l.b16 %v2087
        %v2370 = vunpack.c.h.b16 %v2087
        %v2371 = vunpack.c.l.b16 %v2088
        %v2372 = vunpack.c.h.b16 %v2088
        %v2373 = vunpack.c.l.b16 %v2089
        %v2374 = vunpack.c.h.b16 %v2089
        %v2375 = vunpack.c.l.b16 %v2090
        %v2376 = vunpack.c.h.b16 %v2090
        %v2377 = vunpack.c.l.b16 %v2091
        %v2378 = vunpack.c.h.b16 %v2091
        %v2379 = vunpack.c.l.b16 %v2092
        %v2380 = vunpack.c.h.b16 %v2092
        %v2381 = vunpack.c.l.b16 %v2093
        %v2382 = vunpack.c.h.b16 %v2093
        %v2383 = vunpack.c.l.b16 %v2094
        %v2384 = vunpack.c.h.b16 %v2094
        %v2385 = vunpack.c.l.b16 %v2095
        %v2386 = vunpack.c.h.b16 %v2095
        %v2387 = vunpack.c.l.b16 %v2096
        %v2388 = vunpack.c.h.b16 %v2096
        %v2389 = vunpack.c.l.b16 %v2097
        %v2390 = vunpack.c.h.b16 %v2097
        %v2391 = vunpack.c.l.b16 %v2098
        %v2392 = vunpack.c.h.b16 %v2098
        %v2393 = vunpack.c.l.b16 %v2099
        %v2394 = vunpack.c.h.b16 %v2099
        %v2395 = vunpack.c.l.b16 %v2100
        %v2396 = vunpack.c.h.b16 %v2100
        %v2397 = vunpack.c.l.b16 %v2101
        %v2398 = vunpack.c.h.b16 %v2101
        %v2399 = vunpack.c.l.b16 %v2102
        %v2400 = vunpack.c.h.b16 %v2102
        %v2401 = vunpack.c.l.b16 %v2103
        %v2402 = vunpack.c.h.b16 %v2103
        %v2403 = vunpack.c.l.b16 %v2104
        %v2404 = vunpack.c.h.b16 %v2104
        %v2405 = vunpack.c.l.b16 %v2105
        %v2406 = vunpack.c.h.b16 %v2105
        %v2407 = vunpack.c.l.b16 %v2106
        %v2408 = vunpack.c.h.b16 %v2106
        %v2409 = vunpack.c.l.b16 %v2107
        %v2410 = vunpack.c.h.b16 %v2107
        %v2411 = vunpack.c.l.b16 %v2108
        %v2412 = vunpack.c.h.b16 %v2108
        %v2413 = vunpack.c.l.b16 %v2109
        %v2414 = vunpack.c.h.b16 %v2109
        %v2415 = vunpack.c.l.b16 %v2110
        %v2416 = vunpack.c.h.b16 %v2110
        %v2417 = vunpack.c.l.b16 %v2111
        %v2418 = vunpack.c.h.b16 %v2111
        %v2419 = vunpack.c.l.b16 %v2112
        %v2420 = vunpack.c.h.b16 %v2112
        %v2421 = vunpack.c.l.b16 %v2113
        %v2422 = vunpack.c.h.b16 %v2113
        %v2423 = vunpack.c.l.b16 %v2114
        %v2424 = vunpack.c.h.b16 %v2114
        %v2425 = vunpack.c.l.b16 %v2115
        %v2426 = vunpack.c.h.b16 %v2115
        %v2427 = vunpack.c.l.b16 %v2116
        %v2428 = vunpack.c.h.b16 %v2116
        %v2429 = vunpack.c.l.b16 %v2117
        %v2430 = vunpack.c.h.b16 %v2117
        %v2431 = vunpack.c.l.b16 %v2118
        %v2432 = vunpack.c.h.b16 %v2118
        %v2433 = vunpack.c.l.b16 %v2119
        %v2434 = vunpack.c.h.b16 %v2119
        %v2435 = vunpack.c.l.b16 %v2120
        %v2436 = vunpack.c.h.b16 %v2120
        %v2437 = vunpack.c.l.b16 %v2121
        %v2438 = vunpack.c.h.b16 %v2121
        %v2439 = vunpack.c.l.b16 %v2122
        %v2440 = vunpack.c.h.b16 %v2122
        %v2441 = vunpack.c.l.b16 %v2123
        %v2442 = vunpack.c.h.b16 %v2123
        %v2443 = vunpack.c.l.b16 %v2124
        %v2444 = vunpack.c.h.b16 %v2124
        %v2445 = vunpack.c.l.b16 %v2125
        %v2446 = vunpack.c.h.b16 %v2125
        %v2447 = vunpack.c.l.b16 %v2126
        %v2448 = vunpack.c.h.b16 %v2126
        %v2449 = vunpack.c.l.b16 %v2127
        %v2450 = vunpack.c.h.b16 %v2127
        %v2451 = vunpack.c.l.b16 %v2128
        %v2452 = vunpack.c.h.b16 %v2128
        %v2453 = vunpack.c.l.b16 %v2129
        %v2454 = vunpack.c.h.b16 %v2129
        %v2455 = vunpack.c.l.b16 %v2130
        %v2456 = vunpack.c.h.b16 %v2130
        %v2457 = vunpack.c.l.b16 %v2131
        %v2458 = vunpack.c.h.b16 %v2131
        %v2459 = vunpack.c.l.b16 %v2132
        %v2460 = vunpack.c.h.b16 %v2132
        %v2461 = vunpack.c.l.b16 %v2133
        %v2462 = vunpack.c.h.b16 %v2133
        %v2463 = vunpack.c.l.b16 %v2134
        %v2464 = vunpack.c.h.b16 %v2134
        %v2465 = vunpack.c.l.b16 %v2135
        %v2466 = vunpack.c.h.b16 %v2135
        %v2467 = vunpack.c.l.b16 %v2136
        %v2468 = vunpack.c.h.b16 %v2136
        %v2469 = vunpack.c.l.b16 %v2137
        %v2470 = vunpack.c.h.b16 %v2137
        %v2471 = vunpack.c.l.b16 %v2138
        %v2472 = vunpack.c.h.b16 %v2138
        %v2473 = vunpack.c.l.b16 %v2139
        %v2474 = vunpack.c.h.b16 %v2139
        %v2475 = vunpack.c.l.b16 %v2140
        %v2476 = vunpack.c.h.b16 %v2140
        %v2477 = vunpack.c.l.b16 %v2141
        %v2478 = vunpack.c.h.b16 %v2141
        %v2479 = vunpack.c.l.b16 %v2142
        %v2480 = vunpack.c.h.b16 %v2142
        %v2481 = vunpack.c.l.b16 %v2143
        %v2482 = vunpack.c.h.b16 %v2143
        %v2483 = vunpack.c.l.b16 %v2144
        %v2484 = vunpack.c.h.b16 %v2144
        %v2485 = vunpack.c.l.b16 %v2145
        %v2486 = vunpack.c.h.b16 %v2145
        %v2487 = vunpack.c.l.b16 %v2146
        %v2488 = vunpack.c.h.b16 %v2146
        %v2489 = vunpack.c.l.b16 %v2147
        %v2490 = vunpack.c.h.b16 %v2147
        %v2491 = vunpack.c.l.b16 %v2148
        %v2492 = vunpack.c.h.b16 %v2148
        %v2493 = vunpack.c.l.b16 %v2149
        %v2494 = vunpack.c.h.b16 %v2149
        %v2495 = vunpack.c.l.b16 %v2150
        %v2496 = vunpack.c.h.b16 %v2150
        %v2497 = vunpack.c.l.b16 %v2151
        %v2498 = vunpack.c.h.b16 %v2151
        %v2499 = vunpack.c.l.b16 %v2152
        %v2500 = vunpack.c.h.b16 %v2152
        %v2501 = vunpack.c.l.b16 %v2153
        %v2502 = vunpack.c.h.b16 %v2153
        %v2503 = vunpack.c.l.b16 %v2154
        %v2504 = vunpack.c.h.b16 %v2154
        %v2505 = vunpack.c.l.b16 %v2155
        %v2506 = vunpack.c.h.b16 %v2155
        %v2507 = vunpack.c.l.b16 %v2156
        %v2508 = vunpack.c.h.b16 %v2156
        %v2509 = vunpack.c.l.b16 %v2157
        %v2510 = vunpack.c.h.b16 %v2157
        %v2511 = vunpack.c.l.b16 %v2158
        %v2512 = vunpack.c.h.b16 %v2158
        %v2513 = vunpack.c.l.b16 %v2159
        %v2514 = vunpack.c.h.b16 %v2159
        %v2515 = vunpack.c.l.b16 %v2160
        %v2516 = vunpack.c.h.b16 %v2160
        %v2517 = vunpack.c.l.b16 %v2161
        %v2518 = vunpack.c.h.b16 %v2161
        %v2519 = vunpack.c.l.b16 %v2162
        %v2520 = vunpack.c.h.b16 %v2162
        %v2521 = vunpack.c.l.b16 %v2163
        %v2522 = vunpack.c.h.b16 %v2163
        %v2523 = vunpack.c.l.b16 %v2164
        %v2524 = vunpack.c.h.b16 %v2164
        %v2525 = vunpack.c.l.b16 %v2165
        %v2526 = vunpack.c.h.b16 %v2165
        %v2527 = vunpack.c.l.b16 %v2166
        %v2528 = vunpack.c.h.b16 %v2166
        %v2529 = vunpack.c.l.b16 %v2167
        %v2530 = vunpack.c.h.b16 %v2167
        %v2531 = vunpack.c.l.b16 %v2168
        %v2532 = vunpack.c.h.b16 %v2168
        %v2533 = vunpack.c.l.b16 %v2169
        %v2534 = vunpack.c.h.b16 %v2169
        %v2535 = vunpack.c.l.b16 %v2170
        %v2536 = vunpack.c.h.b16 %v2170
        %v2537 = vunpack.c.l.b16 %v2171
        %v2538 = vunpack.c.h.b16 %v2171
        %v2539 = vunpack.c.l.b16 %v2172
        %v2540 = vunpack.c.h.b16 %v2172
        %v2541 = vunpack.c.l.b16 %v2173
        %v2542 = vunpack.c.h.b16 %v2173
        %v2543 = vunpack.c.l.b16 %v2174
        %v2544 = vunpack.c.h.b16 %v2174
        %v2545 = vunpack.c.l.b16 %v2175
        %v2546 = vunpack.c.h.b16 %v2175
        %v2547 = vunpack.c.l.b16 %v2176
        %v2548 = vunpack.c.h.b16 %v2176
        %v2549 = vunpack.c.l.b16 %v2177
        %v2550 = vunpack.c.h.b16 %v2177
        %v2551 = vunpack.c.l.b16 %v2178
        %v2552 = vunpack.c.h.b16 %v2178
        %v2553 = vunpack.c.l.b16 %v2179
        %v2554 = vunpack.c.h.b16 %v2179
        %v2555 = vunpack.c.l.b16 %v2180
        %v2556 = vunpack.c.h.b16 %v2180
        %v2557 = vunpack.c.l.b16 %v2181
        %v2558 = vunpack.c.h.b16 %v2181
        %v2559 = vunpack.c.l.b16 %v2182
        %v2560 = vunpack.c.h.b16 %v2182
        %v2561 = vunpack.c.l.b16 %v2183
        %v2562 = vunpack.c.h.b16 %v2183
        %v2563 = vunpack.c.l.b16 %v2184
        %v2564 = vunpack.c.h.b16 %v2184
        %v2565 = vunpack.c.l.b16 %v2185
        %v2566 = vunpack.c.h.b16 %v2185
        %v2567 = vunpack.c.l.b16 %v2186
        %v2568 = vunpack.c.h.b16 %v2186
        %v2569 = vunpack.c.l.b16 %v2187
        %v2570 = vunpack.c.h.b16 %v2187
        %v2571 = vunpack.c.l.b16 %v2188
        %v2572 = vunpack.c.h.b16 %v2188
        %v2573 = vunpack.c.l.b16 %v2189
        %v2574 = vunpack.c.h.b16 %v2189
        %v2575 = vunpack.c.l.b16 %v2190
        %v2576 = vunpack.c.h.b16 %v2190
        %v2577 = vunpack.c.l.b16 %v2191
        %v2578 = vunpack.c.h.b16 %v2191
        %v2579 = vunpack.c.l.b16 %v2192
        %v2580 = vunpack.c.h.b16 %v2192
        %v2581 = vunpack.c.l.b16 %v2193
        %v2582 = vunpack.c.h.b16 %v2193
        %v2583 = vunpack.c.l.b16 %v2194
        %v2584 = vunpack.c.h.b16 %v2194
        %v2585 = vunpack.c.l.b16 %v2195
        %v2586 = vunpack.c.h.b16 %v2195
        %v2587 = vunpack.c.l.b16 %v2196
        %v2588 = vunpack.c.h.b16 %v2196
        %v2589 = vunpack.c.l.b16 %v2197
        %v2590 = vunpack.c.h.b16 %v2197
        %v2591 = vunpack.c.l.b16 %v2198
        %v2592 = vunpack.c.h.b16 %v2198
        %v2593 = vunpack.c.l.b16 %v2199
        %v2594 = vunpack.c.h.b16 %v2199
        %v2595 = vunpack.c.l.b16 %v2200
        %v2596 = vunpack.c.h.b16 %v2200
        %v2597 = vunpack.c.l.b16 %v2201
        %v2598 = vunpack.c.h.b16 %v2201
        %v2599 = vunpack.c.l.b16 %v2202
        %v2600 = vunpack.c.h.b16 %v2202
        %v2601 = vunpack.c.l.b16 %v2203
        %v2602 = vunpack.c.h.b16 %v2203
        %v2603 = vunpack.c.l.b16 %v2204
        %v2604 = vunpack.c.h.b16 %v2204
        %v2605 = vunpack.c.l.b16 %v2205
        %v2606 = vunpack.c.h.b16 %v2205
        %v2607 = vunpack.c.l.b16 %v2206
        %v2608 = vunpack.c.h.b16 %v2206
        %v2609 = vunpack.c.l.b16 %v2207
        %v2610 = vunpack.c.h.b16 %v2207
        %v2611 = vunpack.c.l.b16 %v2208
        %v2612 = vunpack.c.h.b16 %v2208
        %v2613 = vunpack.c.l.b16 %v2209
        %v2614 = vunpack.c.h.b16 %v2209
        %v2615 = vunpack.c.l.b16 %v2210
        %v2616 = vunpack.c.h.b16 %v2210
        %v2617 = vpack.c.b16 %v2365, %v2361
        %v2618 = vpack.c.b16 %v2366, %v2362
        %v2619 = vpack.c.b16 %v2367, %v2363
        %v2620 = vpack.c.b16 %v2368, %v2364
        %v2621 = vpack.c.b16 %v2373, %v2369
        %v2622 = vpack.c.b16 %v2374, %v2370
        %v2623 = vpack.c.b16 %v2375, %v2371
        %v2624 = vpack.c.b16 %v2376, %v2372
        %v2625 = vpack.c.b16 %v2381, %v2377
        %v2626 = vpack.c.b16 %v2382, %v2378
        %v2627 = vpack.c.b16 %v2383, %v2379
        %v2628 = vpack.c.b16 %v2384, %v2380
        %v2629 = vpack.c.b16 %v2389, %v2385
        %v2630 = vpack.c.b16 %v2390, %v2386
        %v2631 = vpack.c.b16 %v2391, %v2387
        %v2632 = vpack.c.b16 %v2392, %v2388
        %v2633 = vpack.c.b16 %v2397, %v2393
        %v2634 = vpack.c.b16 %v2398, %v2394
        %v2635 = vpack.c.b16 %v2399, %v2395
        %v2636 = vpack.c.b16 %v2400, %v2396
        %v2637 = vpack.c.b16 %v2405, %v2401
        %v2638 = vpack.c.b16 %v2406, %v2402
        %v2639 = vpack.c.b16 %v2407, %v2403
        %v2640 = vpack.c.b16 %v2408, %v2404
        %v2641 = vpack.c.b16 %v2413, %v2409
        %v2642 = vpack.c.b16 %v2414, %v2410
        %v2643 = vpack.c.b16 %v2415, %v2411
        %v2644 = vpack.c.b16 %v2416, %v2412
        %v2645 = vpack.c.b16 %v2421, %v2417
        %v2646 = vpack.c.b16 %v2422, %v2418
        %v2647 = vpack.c.b16 %v2423, %v2419
        %v2648 = vpack.c.b16 %v2424, %v2420
        %v2649 = vpack.c.b16 %v2429, %v2425
        %v2650 = vpack.c.b16 %v2430, %v2426
        %v2651 = vpack.c.b16 %v2431, %v2427
        %v2652 = vpack.c.b16 %v2432, %v2428
        %v2653 = vpack.c.b16 %v2437, %v2433
        %v2654 = vpack.c.b16 %v2438, %v2434
        %v2655 = vpack.c.b16 %v2439, %v2435
        %v2656 = vpack.c.b16 %v2440, %v2436
        %v2657 = vpack.c.b16 %v2445, %v2441
        %v2658 = vpack.c.b16 %v2446, %v2442
        %v2659 = vpack.c.b16 %v2447, %v2443
        %v2660 = vpack.c.b16 %v2448, %v2444
        %v2661 = vpack.c.b16 %v2453, %v2449
        %v2662 = vpack.c.b16 %v2454, %v2450
        %v2663 = vpack.c.b16 %v2455, %v2451
        %v2664 = vpack.c.b16 %v2456, %v2452
        %v2665 = vpack.c.b16 %v2461, %v2457
        %v2666 = vpack.c.b16 %v2462, %v2458
        %v2667 = vpack.c.b16 %v2463, %v2459
        %v2668 = vpack.c.b16 %v2464, %v2460
        %v2669 = vpack.c.b16 %v2469, %v2465
        %v2670 = vpack.c.b16 %v2470, %v2466
        %v2671 = vpack.c.b16 %v2471, %v2467
        %v2672 = vpack.c.b16 %v2472, %v2468
        %v2673 = vpack.c.b16 %v2477, %v2473
        %v2674 = vpack.c.b16 %v2478, %v2474
        %v2675 = vpack.c.b16 %v2479, %v2475
        %v2676 = vpack.c.b16 %v2480, %v2476
        %v2677 = vpack.c.b16 %v2485, %v2481
        %v2678 = vpack.c.b16 %v2486, %v2482
        %v2679 = vpack.c.b16 %v2487, %v2483
        %v2680 = vpack.c.b16 %v2488, %v2484
        %v2681 = vpack.c.b16 %v2493, %v2489
        %v2682 = vpack.c.b16 %v2494, %v2490
        %v2683 = vpack.c.b16 %v2495, %v2491
        %v2684 = vpack.c.b16 %v2496, %v2492
        %v2685 = vpack.c.b16 %v2501, %v2497
        %v2686 = vpack.c.b16 %v2502, %v2498
        %v2687 = vpack.c.b16 %v2503, %v2499
        %v2688 = vpack.c.b16 %v2504, %v2500
        %v2689 = vpack.c.b16 %v2509, %v2505
        %v2690 = vpack.c.b16 %v2510, %v2506
        %v2691 = vpack.c.b16 %v2511, %v2507
        %v2692 = vpack.c.b16 %v2512, %v2508
        %v2693 = vpack.c.b16 %v2517, %v2513
        %v2694 = vpack.c.b16 %v2518, %v2514
        %v2695 = vpack.c.b16 %v2519, %v2515
        %v2696 = vpack.c.b16 %v2520, %v2516
        %v2697 = vpack.c.b16 %v2525, %v2521
        %v2698 = vpack.c.b16 %v2526, %v2522
        %v2699 = vpack.c.b16 %v2527, %v2523
        %v2700 = vpack.c.b16 %v2528, %v2524
        %v2701 = vpack.c.b16 %v2533, %v2529
        %v2702 = vpack.c.b16 %v2534, %v2530
        %v2703 = vpack.c.b16 %v2535, %v2531
        %v2704 = vpack.c.b16 %v2536, %v2532
        %v2705 = vpack.c.b16 %v2541, %v2537
        %v2706 = vpack.c.b16 %v2542, %v2538
        %v2707 = vpack.c.b16 %v2543, %v2539
        %v2708 = vpack.c.b16 %v2544, %v2540
        %v2709 = vpack.c.b16 %v2549, %v2545
        %v2710 = vpack.c.b16 %v2550, %v2546
        %v2711 = vpack.c.b16 %v2551, %v2547
        %v2712 = vpack.c.b16 %v2552, %v2548
        %v2713 = vpack.c.b16 %v2557, %v2553
        %v2714 = vpack.c.b16 %v2558, %v2554
        %v2715 = vpack.c.b16 %v2559, %v2555
        %v2716 = vpack.c.b16 %v2560, %v2556
        %v2717 = vpack.c.b16 %v2565, %v2561
        %v2718 = vpack.c.b16 %v2566, %v2562
        %v2719 = vpack.c.b16 %v2567, %v2563
        %v2720 = vpack.c.b16 %v2568, %v2564
        %v2721 = vpack.c.b16 %v2573, %v2569
        %v2722 = vpack.c.b16 %v2574, %v2570
        %v2723 = vpack.c.b16 %v2575, %v2571
        %v2724 = vpack.c.b16 %v2576, %v2572
        %v2725 = vpack.c.b16 %v2581, %v2577
        %v2726 = vpack.c.b16 %v2582, %v2578
        %v2727 = vpack.c.b16 %v2583, %v2579
        %v2728 = vpack.c.b16 %v2584, %v2580
        %v2729 = vpack.c.b16 %v2589, %v2585
        %v2730 = vpack.c.b16 %v2590, %v2586
        %v2731 = vpack.c.b16 %v2591, %v2587
        %v2732 = vpack.c.b16 %v2592, %v2588
        %v2733 = vpack.c.b16 %v2597, %v2593
        %v2734 = vpack.c.b16 %v2598, %v2594
        %v2735 = vpack.c.b16 %v2599, %v2595
        %v2736 = vpack.c.b16 %v2600, %v2596
        %v2737 = vpack.c.b16 %v2605, %v2601
        %v2738 = vpack.c.b16 %v2606, %v2602
        %v2739 = vpack.c.b16 %v2607, %v2603
        %v2740 = vpack.c.b16 %v2608, %v2604
        %v2741 = vpack.c.b16 %v2613, %v2609
        %v2742 = vpack.c.b16 %v2614, %v2610
        %v2743 = vpack.c.b16 %v2615, %v2611
        %v2744 = vpack.c.b16 %v2616, %v2612
        %2873 = vmatprep.subr.bf16.mxu0 %v2618
        %2874 = vmatpush1.bf16.msra.mxu0 %v2617
        %2875 = vmatprep.subr.bf16.mxu0 %v2622
        %2876 = vmatpush1.bf16.msra.mxu0 %v2621
        %2877 = vmatprep.subr.bf16.mxu0 %v2626
        %2878 = vmatpush1.bf16.msra.mxu0 %v2625
        %2879 = vmatprep.subr.bf16.mxu0 %v2630
        %2880 = vmatpush1.bf16.msra.mxu0 %v2629
        %2881 = vmatprep.subr.bf16.mxu0 %v2634
        %2882 = vmatpush1.bf16.msra.mxu0 %v2633
        %2883 = vmatprep.subr.bf16.mxu0 %v2638
        %2884 = vmatpush1.bf16.msra.mxu0 %v2637
        %2885 = vmatprep.subr.bf16.mxu0 %v2642
        %2886 = vmatpush1.bf16.msra.mxu0 %v2641
        %2887 = vmatprep.subr.bf16.mxu0 %v2646
        %2888 = vmatpush1.bf16.msra.mxu0 %v2645
        %2889 = vmatprep.subr.bf16.mxu0 %v2650
        %2890 = vmatpush1.bf16.msra.mxu0 %v2649
        %2891 = vmatprep.subr.bf16.mxu0 %v2654
        %2892 = vmatpush1.bf16.msra.mxu0 %v2653
        %2893 = vmatprep.subr.bf16.mxu0 %v2658
        %2894 = vmatpush1.bf16.msra.mxu0 %v2657
        %2895 = vmatprep.subr.bf16.mxu0 %v2662
        %2896 = vmatpush1.bf16.msra.mxu0 %v2661
        %2897 = vmatprep.subr.bf16.mxu0 %v2666
        %2898 = vmatpush1.bf16.msra.mxu0 %v2665
        %2899 = vmatprep.subr.bf16.mxu0 %v2670
        %2900 = vmatpush1.bf16.msra.mxu0 %v2669
        %2901 = vmatprep.subr.bf16.mxu0 %v2674
        %2902 = vmatpush1.bf16.msra.mxu0 %v2673
        %2903 = vmatprep.subr.bf16.mxu0 %v2678
        %2904 = vmatpush1.bf16.msra.mxu0 %v2677
        %2905 = vmatprep.mubr.bf16.mxu0 %v2080
        %2906 = vmatmul.mubr.bf16.gmra.mrb[0].mxu0 %v2079
        %v2907 = vpop.f32.mrb[0].mxu0
        %v2908 = vadd.f32 %v2216, %v2907
        %v2909 = vpop.f32.mrb[0].mxu0
        %v2910 = vadd.f32 %v2220, %v2909
        %v2911 = vpop.f32.mrb[0].mxu0
        %v2912 = vpop.f32.mrb[0].mxu0
        %2913 = vdwg.mxu0
        %2914 = vmatprep.subr.bf16.mxu0 %v2682
        %2915 = vmatpush1.bf16.msra.mxu0 %v2681
        %2916 = vmatprep.subr.bf16.mxu0 %v2686
        %2917 = vmatpush1.bf16.msra.mxu0 %v2685
        %2918 = vmatprep.subr.bf16.mxu0 %v2690
        %2919 = vmatpush1.bf16.msra.mxu0 %v2689
        %2920 = vmatprep.subr.bf16.mxu0 %v2694
        %2921 = vmatpush1.bf16.msra.mxu0 %v2693
        %2922 = vmatprep.subr.bf16.mxu0 %v2698
        %2923 = vmatpush1.bf16.msra.mxu0 %v2697
        %2924 = vmatprep.subr.bf16.mxu0 %v2702
        %2925 = vmatpush1.bf16.msra.mxu0 %v2701
        %2926 = vmatprep.subr.bf16.mxu0 %v2706
        %2927 = vmatpush1.bf16.msra.mxu0 %v2705
        %2928 = vmatprep.subr.bf16.mxu0 %v2710
        %2929 = vmatpush1.bf16.msra.mxu0 %v2709
        %2930 = vmatprep.subr.bf16.mxu0 %v2714
        %2931 = vmatpush1.bf16.msra.mxu0 %v2713
        %2932 = vmatprep.subr.bf16.mxu0 %v2718
        %2933 = vmatpush1.bf16.msra.mxu0 %v2717
        %2934 = vmatprep.subr.bf16.mxu0 %v2722
        %2935 = vmatpush1.bf16.msra.mxu0 %v2721
        %2936 = vmatprep.subr.bf16.mxu0 %v2726
        %2937 = vmatpush1.bf16.msra.mxu0 %v2725
        %2938 = vmatprep.subr.bf16.mxu0 %v2730
        %2939 = vmatpush1.bf16.msra.mxu0 %v2729
        %2940 = vmatprep.subr.bf16.mxu0 %v2734
        %2941 = vmatpush1.bf16.msra.mxu0 %v2733
        %2942 = vmatprep.subr.bf16.mxu0 %v2738
        %2943 = vmatpush1.bf16.msra.mxu0 %v2737
        %2944 = vmatprep.subr.bf16.mxu0 %v2742
        %2945 = vmatpush1.bf16.msra.mxu0 %v2741
        %2946 = vmatprep.mubr.bf16.mxu0 %v2082
        %2947 = vmatmul.mubr.bf16.gmra.mrb[0].mxu0 %v2081
        %v2948 = vpop.f32.mrb[0].mxu0
        %v2949 = vadd.f32 %v2908, %v2948
        %v2950 = vpop.f32.mrb[0].mxu0
        %v2951 = vadd.f32 %v2910, %v2950
        %v2952 = vpop.f32.mrb[0].mxu0
        %v2953 = vpop.f32.mrb[0].mxu0
        %2954 = vdwg.mxu0
        %2955 = vmatprep.subr.bf16.mxu0 %v2620
        %2956 = vmatpush1.bf16.msra.mxu0 %v2619
        %2957 = vmatprep.subr.bf16.mxu0 %v2624
        %2958 = vmatpush1.bf16.msra.mxu0 %v2623
        %2959 = vmatprep.subr.bf16.mxu0 %v2628
        %2960 = vmatpush1.bf16.msra.mxu0 %v2627
        %2961 = vmatprep.subr.bf16.mxu0 %v2632
        %2962 = vmatpush1.bf16.msra.mxu0 %v2631
        %2963 = vmatprep.subr.bf16.mxu0 %v2636
        %2964 = vmatpush1.bf16.msra.mxu0 %v2635
        %2965 = vmatprep.subr.bf16.mxu0 %v2640
        %2966 = vmatpush1.bf16.msra.mxu0 %v2639
        %2967 = vmatprep.subr.bf16.mxu0 %v2644
        %2968 = vmatpush1.bf16.msra.mxu0 %v2643
        %2969 = vmatprep.subr.bf16.mxu0 %v2648
        %2970 = vmatpush1.bf16.msra.mxu0 %v2647
        %2971 = vmatprep.subr.bf16.mxu0 %v2652
        %2972 = vmatpush1.bf16.msra.mxu0 %v2651
        %2973 = vmatprep.subr.bf16.mxu0 %v2656
        %2974 = vmatpush1.bf16.msra.mxu0 %v2655
        %2975 = vmatprep.subr.bf16.mxu0 %v2660
        %2976 = vmatpush1.bf16.msra.mxu0 %v2659
        %2977 = vmatprep.subr.bf16.mxu0 %v2664
        %2978 = vmatpush1.bf16.msra.mxu0 %v2663
        %2979 = vmatprep.subr.bf16.mxu0 %v2668
        %2980 = vmatpush1.bf16.msra.mxu0 %v2667
        %2981 = vmatprep.subr.bf16.mxu0 %v2672
        %2982 = vmatpush1.bf16.msra.mxu0 %v2671
        %2983 = vmatprep.subr.bf16.mxu0 %v2676
        %2984 = vmatpush1.bf16.msra.mxu0 %v2675
        %2985 = vmatprep.subr.bf16.mxu0 %v2680
        %2986 = vmatpush1.bf16.msra.mxu0 %v2679
        %2987 = vmatprep.mubr.bf16.mxu0 %v2080
        %2988 = vmatmul.mubr.bf16.gmra.mrb[0].mxu0 %v2079
        %v2989 = vpop.f32.mrb[0].mxu0
        %v2990 = vadd.f32 %v2224, %v2989
        %v2991 = vpop.f32.mrb[0].mxu0
        %v2992 = vadd.f32 %v2228, %v2991
        %v2993 = vpop.f32.mrb[0].mxu0
        %v2994 = vpop.f32.mrb[0].mxu0
        %2995 = vdwg.mxu0
        %2996 = vmatprep.subr.bf16.mxu0 %v2684
        %2997 = vmatpush1.bf16.msra.mxu0 %v2683
        %2998 = vmatprep.subr.bf16.mxu0 %v2688
        %2999 = vmatpush1.bf16.msra.mxu0 %v2687
        %3000 = vmatprep.subr.bf16.mxu0 %v2692
        %3001 = vmatpush1.bf16.msra.mxu0 %v2691
        %3002 = vmatprep.subr.bf16.mxu0 %v2696
        %3003 = vmatpush1.bf16.msra.mxu0 %v2695
        %3004 = vmatprep.subr.bf16.mxu0 %v2700
        %3005 = vmatpush1.bf16.msra.mxu0 %v2699
        %3006 = vmatprep.subr.bf16.mxu0 %v2704
        %3007 = vmatpush1.bf16.msra.mxu0 %v2703
        %3008 = vmatprep.subr.bf16.mxu0 %v2708
        %3009 = vmatpush1.bf16.msra.mxu0 %v2707
        %3010 = vmatprep.subr.bf16.mxu0 %v2712
        %3011 = vmatpush1.bf16.msra.mxu0 %v2711
        %3012 = vmatprep.subr.bf16.mxu0 %v2716
        %3013 = vmatpush1.bf16.msra.mxu0 %v2715
        %3014 = vmatprep.subr.bf16.mxu0 %v2720
        %3015 = vmatpush1.bf16.msra.mxu0 %v2719
        %3016 = vmatprep.subr.bf16.mxu0 %v2724
        %3017 = vmatpush1.bf16.msra.mxu0 %v2723
        %3018 = vmatprep.subr.bf16.mxu0 %v2728
        %3019 = vmatpush1.bf16.msra.mxu0 %v2727
        %3020 = vmatprep.subr.bf16.mxu0 %v2732
        %3021 = vmatpush1.bf16.msra.mxu0 %v2731
        %3022 = vmatprep.subr.bf16.mxu0 %v2736
        %3023 = vmatpush1.bf16.msra.mxu0 %v2735
        %3024 = vmatprep.subr.bf16.mxu0 %v2740
        %3025 = vmatpush1.bf16.msra.mxu0 %v2739
        %3026 = vmatprep.subr.bf16.mxu0 %v2744
        %3027 = vmatpush1.bf16.msra.mxu0 %v2743
        %3028 = vmatprep.mubr.bf16.mxu0 %v2082
        %3029 = vmatmul.mubr.bf16.gmra.mrb[0].mxu0 %v2081
        %v3030 = vpop.f32.mrb[0].mxu0
        %v3031 = vadd.f32 %v2990, %v3030
        %v3032 = vpop.f32.mrb[0].mxu0
        %v3033 = vadd.f32 %v2992, %v3032
        %v3034 = vpop.f32.mrb[0].mxu0
        %v3035 = vpop.f32.mrb[0].mxu0
        %3036 = vdwg.mxu0
        %v3037 = vmax.f32 %v2949, 0.0
        %v3038 = vmax.f32 %v2951, 0.0
        %v3039 = vmax.f32 %v3031, 0.0
        %v3040 = vmax.f32 %v3033, 0.0
        %v3041 = vpack.c.bf16 %v3037, %v3037
        %v3042 = vpack.c.bf16 %v3038, %v3038
        %v3043 = vpack.c.bf16 %v3039, %v3039
        %v3044 = vpack.c.bf16 %v3040, %v3040
        %v3045 = vld [vmem:[#allocation14] sm:$0xf]
        %v3046 = vld [vmem:[#allocation14 + $0x4] sm:$0xf]
        %v3047 = vld [vmem:[#allocation14 + $0x8] sm:$0xf]
        %v3048 = vld [vmem:[#allocation14 + $0xc] sm:$0xf]
        %v3049 = vld [vmem:[#allocation14 + $0x10] sm:$0xf]
        %v3050 = vld [vmem:[#allocation14 + $0x14] sm:$0xf]
        %v3051 = vld [vmem:[#allocation14 + $0x18] sm:$0xf]
        %v3052 = vld [vmem:[#allocation14 + $0x1c] sm:$0xf]
        %v3053 = vld [vmem:[#allocation14 + $0x20] sm:$0xf]
        %v3054 = vld [vmem:[#allocation14 + $0x24] sm:$0xf]
        %v3055 = vld [vmem:[#allocation14 + $0x28] sm:$0xf]
        %v3056 = vld [vmem:[#allocation14 + $0x2c] sm:$0xf]
        %v3057 = vld [vmem:[#allocation14 + $0x30] sm:$0xf]
        %v3058 = vld [vmem:[#allocation14 + $0x34] sm:$0xf]
        %v3059 = vld [vmem:[#allocation14 + $0x38] sm:$0xf]
        %v3060 = vld [vmem:[#allocation14 + $0x3c] sm:$0xf]
        %v3061 = vld [vmem:[#allocation14 + $0x40] sm:$0xf]
        %v3062 = vld [vmem:[#allocation14 + $0x44] sm:$0xf]
        %v3063 = vld [vmem:[#allocation14 + $0x48] sm:$0xf]
        %v3064 = vld [vmem:[#allocation14 + $0x4c] sm:$0xf]
        %v3065 = vld [vmem:[#allocation14 + $0x50] sm:$0xf]
        %v3066 = vld [vmem:[#allocation14 + $0x54] sm:$0xf]
        %v3067 = vld [vmem:[#allocation14 + $0x58] sm:$0xf]
        %v3068 = vld [vmem:[#allocation14 + $0x5c] sm:$0xf]
        %v3069 = vld [vmem:[#allocation14 + $0x60] sm:$0xf]
        %v3070 = vld [vmem:[#allocation14 + $0x64] sm:$0xf]
        %v3071 = vld [vmem:[#allocation14 + $0x68] sm:$0xf]
        %v3072 = vld [vmem:[#allocation14 + $0x6c] sm:$0xf]
        %v3073 = vld [vmem:[#allocation14 + $0x70] sm:$0xf]
        %v3074 = vld [vmem:[#allocation14 + $0x74] sm:$0xf]
        %v3075 = vld [vmem:[#allocation14 + $0x78] sm:$0xf]
        %v3076 = vld [vmem:[#allocation14 + $0x7c] sm:$0xf]
        %v3077 = vld [vmem:[#allocation14 + $0x80] sm:$0xf]
        %v3078 = vld [vmem:[#allocation14 + $0x84] sm:$0xf]
        %v3079 = vld [vmem:[#allocation14 + $0x88] sm:$0xf]
        %v3080 = vld [vmem:[#allocation14 + $0x8c] sm:$0xf]
        %v3081 = vld [vmem:[#allocation14 + $0x90] sm:$0xf]
        %v3082 = vld [vmem:[#allocation14 + $0x94] sm:$0xf]
        %v3083 = vld [vmem:[#allocation14 + $0x98] sm:$0xf]
        %v3084 = vld [vmem:[#allocation14 + $0x9c] sm:$0xf]
        %v3085 = vld [vmem:[#allocation14 + $0xa0] sm:$0xf]
        %v3086 = vld [vmem:[#allocation14 + $0xa4] sm:$0xf]
        %v3087 = vld [vmem:[#allocation14 + $0xa8] sm:$0xf]
        %v3088 = vld [vmem:[#allocation14 + $0xac] sm:$0xf]
        %v3089 = vld [vmem:[#allocation14 + $0xb0] sm:$0xf]
        %v3090 = vld [vmem:[#allocation14 + $0xb4] sm:$0xf]
        %v3091 = vld [vmem:[#allocation14 + $0xb8] sm:$0xf]
        %v3092 = vld [vmem:[#allocation14 + $0xbc] sm:$0xf]
        %v3093 = vld [vmem:[#allocation14 + $0xc0] sm:$0xf]
        %v3094 = vld [vmem:[#allocation14 + $0xc4] sm:$0xf]
        %v3095 = vld [vmem:[#allocation14 + $0xc8] sm:$0xf]
        %v3096 = vld [vmem:[#allocation14 + $0xcc] sm:$0xf]
        %v3097 = vld [vmem:[#allocation14 + $0xd0] sm:$0xf]
        %v3098 = vld [vmem:[#allocation14 + $0xd4] sm:$0xf]
        %v3099 = vld [vmem:[#allocation14 + $0xd8] sm:$0xf]
        %v3100 = vld [vmem:[#allocation14 + $0xdc] sm:$0xf]
        %v3101 = vld [vmem:[#allocation14 + $0xe0] sm:$0xf]
        %v3102 = vld [vmem:[#allocation14 + $0xe4] sm:$0xf]
        %v3103 = vld [vmem:[#allocation14 + $0xe8] sm:$0xf]
        %v3104 = vld [vmem:[#allocation14 + $0xec] sm:$0xf]
        %v3105 = vld [vmem:[#allocation14 + $0xf0] sm:$0xf]
        %v3106 = vld [vmem:[#allocation14 + $0xf4] sm:$0xf]
        %v3107 = vld [vmem:[#allocation14 + $0xf8] sm:$0xf]
        %v3108 = vld [vmem:[#allocation14 + $0xfc] sm:$0xf]
        %v3109 = vld [vmem:[%s14] sm:$0x1]
        %v3111 = vlaneseq
        %v3112 = vshrl.u32 %v3111, 7
        %v3113 = vsub.s32 0, %v3112
        %v3114 = vrot.slane %v3109, %v3113
        %v3180 = vunpack.c.l.b16 %v3045
        %v3181 = vunpack.c.l.b16 %v3046
        %v3182 = vunpack.c.l.b16 %v3047
        %v3183 = vunpack.c.l.b16 %v3048
        %v3184 = vunpack.c.l.b16 %v3049
        %v3185 = vunpack.c.l.b16 %v3050
        %v3186 = vunpack.c.l.b16 %v3051
        %v3187 = vunpack.c.l.b16 %v3052
        %v3188 = vunpack.c.l.b16 %v3053
        %v3189 = vunpack.c.l.b16 %v3054
        %v3190 = vunpack.c.l.b16 %v3055
        %v3191 = vunpack.c.l.b16 %v3056
        %v3192 = vunpack.c.l.b16 %v3057
        %v3193 = vunpack.c.l.b16 %v3058
        %v3194 = vunpack.c.l.b16 %v3059
        %v3195 = vunpack.c.l.b16 %v3060
        %v3196 = vunpack.c.l.b16 %v3061
        %v3197 = vunpack.c.l.b16 %v3062
        %v3198 = vunpack.c.l.b16 %v3063
        %v3199 = vunpack.c.l.b16 %v3064
        %v3200 = vunpack.c.l.b16 %v3065
        %v3201 = vunpack.c.l.b16 %v3066
        %v3202 = vunpack.c.l.b16 %v3067
        %v3203 = vunpack.c.l.b16 %v3068
        %v3204 = vunpack.c.l.b16 %v3069
        %v3205 = vunpack.c.l.b16 %v3070
        %v3206 = vunpack.c.l.b16 %v3071
        %v3207 = vunpack.c.l.b16 %v3072
        %v3208 = vunpack.c.l.b16 %v3073
        %v3209 = vunpack.c.l.b16 %v3074
        %v3210 = vunpack.c.l.b16 %v3075
        %v3211 = vunpack.c.l.b16 %v3076
        %v3212 = vunpack.c.l.b16 %v3077
        %v3213 = vunpack.c.l.b16 %v3078
        %v3214 = vunpack.c.l.b16 %v3079
        %v3215 = vunpack.c.l.b16 %v3080
        %v3216 = vunpack.c.l.b16 %v3081
        %v3217 = vunpack.c.l.b16 %v3082
        %v3218 = vunpack.c.l.b16 %v3083
        %v3219 = vunpack.c.l.b16 %v3084
        %v3220 = vunpack.c.l.b16 %v3085
        %v3221 = vunpack.c.l.b16 %v3086
        %v3222 = vunpack.c.l.b16 %v3087
        %v3223 = vunpack.c.l.b16 %v3088
        %v3224 = vunpack.c.l.b16 %v3089
        %v3225 = vunpack.c.l.b16 %v3090
        %v3226 = vunpack.c.l.b16 %v3091
        %v3227 = vunpack.c.l.b16 %v3092
        %v3228 = vunpack.c.l.b16 %v3093
        %v3229 = vunpack.c.l.b16 %v3094
        %v3230 = vunpack.c.l.b16 %v3095
        %v3231 = vunpack.c.l.b16 %v3096
        %v3232 = vunpack.c.l.b16 %v3097
        %v3233 = vunpack.c.l.b16 %v3098
        %v3234 = vunpack.c.l.b16 %v3099
        %v3235 = vunpack.c.l.b16 %v3100
        %v3236 = vunpack.c.l.b16 %v3101
        %v3237 = vunpack.c.l.b16 %v3102
        %v3238 = vunpack.c.l.b16 %v3103
        %v3239 = vunpack.c.l.b16 %v3104
        %v3240 = vunpack.c.l.b16 %v3105
        %v3241 = vunpack.c.l.b16 %v3106
        %v3242 = vunpack.c.l.b16 %v3107
        %v3243 = vunpack.c.l.b16 %v3108
        %v3244 = vpack.c.b16 %v3181, %v3180
        %v3245 = vpack.c.b16 %v3183, %v3182
        %v3246 = vpack.c.b16 %v3185, %v3184
        %v3247 = vpack.c.b16 %v3187, %v3186
        %v3248 = vpack.c.b16 %v3189, %v3188
        %v3249 = vpack.c.b16 %v3191, %v3190
        %v3250 = vpack.c.b16 %v3193, %v3192
        %v3251 = vpack.c.b16 %v3195, %v3194
        %v3252 = vpack.c.b16 %v3197, %v3196
        %v3253 = vpack.c.b16 %v3199, %v3198
        %v3254 = vpack.c.b16 %v3201, %v3200
        %v3255 = vpack.c.b16 %v3203, %v3202
        %v3256 = vpack.c.b16 %v3205, %v3204
        %v3257 = vpack.c.b16 %v3207, %v3206
        %v3258 = vpack.c.b16 %v3209, %v3208
        %v3259 = vpack.c.b16 %v3211, %v3210
        %v3260 = vpack.c.b16 %v3213, %v3212
        %v3261 = vpack.c.b16 %v3215, %v3214
        %v3262 = vpack.c.b16 %v3217, %v3216
        %v3263 = vpack.c.b16 %v3219, %v3218
        %v3264 = vpack.c.b16 %v3221, %v3220
        %v3265 = vpack.c.b16 %v3223, %v3222
        %v3266 = vpack.c.b16 %v3225, %v3224
        %v3267 = vpack.c.b16 %v3227, %v3226
        %v3268 = vpack.c.b16 %v3229, %v3228
        %v3269 = vpack.c.b16 %v3231, %v3230
        %v3270 = vpack.c.b16 %v3233, %v3232
        %v3271 = vpack.c.b16 %v3235, %v3234
        %v3272 = vpack.c.b16 %v3237, %v3236
        %v3273 = vpack.c.b16 %v3239, %v3238
        %v3274 = vpack.c.b16 %v3241, %v3240
        %v3275 = vpack.c.b16 %v3243, %v3242
        %3308 = vmatprep.subr.bf16.mxu0 0
        %3309 = vmatpush1.bf16.msra.mxu0 %v3244
        %3310 = vmatprep.subr.bf16.mxu0 0
        %3311 = vmatpush1.bf16.msra.mxu0 %v3245
        %3312 = vmatprep.subr.bf16.mxu0 0
        %3313 = vmatpush1.bf16.msra.mxu0 %v3246
        %3314 = vmatprep.subr.bf16.mxu0 0
        %3315 = vmatpush1.bf16.msra.mxu0 %v3247
        %3316 = vmatprep.subr.bf16.mxu0 0
        %3317 = vmatpush1.bf16.msra.mxu0 %v3248
        %3318 = vmatprep.subr.bf16.mxu0 0
        %3319 = vmatpush1.bf16.msra.mxu0 %v3249
        %3320 = vmatprep.subr.bf16.mxu0 0
        %3321 = vmatpush1.bf16.msra.mxu0 %v3250
        %3322 = vmatprep.subr.bf16.mxu0 0
        %3323 = vmatpush1.bf16.msra.mxu0 %v3251
        %3324 = vmatprep.subr.bf16.mxu0 0
        %3325 = vmatpush1.bf16.msra.mxu0 %v3252
        %3326 = vmatprep.subr.bf16.mxu0 0
        %3327 = vmatpush1.bf16.msra.mxu0 %v3253
        %3328 = vmatprep.subr.bf16.mxu0 0
        %3329 = vmatpush1.bf16.msra.mxu0 %v3254
        %3330 = vmatprep.subr.bf16.mxu0 0
        %3331 = vmatpush1.bf16.msra.mxu0 %v3255
        %3332 = vmatprep.subr.bf16.mxu0 0
        %3333 = vmatpush1.bf16.msra.mxu0 %v3256
        %3334 = vmatprep.subr.bf16.mxu0 0
        %3335 = vmatpush1.bf16.msra.mxu0 %v3257
        %3336 = vmatprep.subr.bf16.mxu0 0
        %3337 = vmatpush1.bf16.msra.mxu0 %v3258
        %3338 = vmatprep.subr.bf16.mxu0 0
        %3339 = vmatpush1.bf16.msra.mxu0 %v3259
        %3340 = vmatprep.mubr.bf16.mxu0 %v3042
        %3341 = vmatmul.mubr.bf16.gmra.mrb[0].mxu0 %v3041
        %v3342 = vpop.f32.mrb[0].mxu0
        %v3343 = vadd.f32 %v3114, %v3342
        %v3344 = vpop.f32.mrb[0].mxu0
        %v3345 = vpop.f32.mrb[0].mxu0
        %v3346 = vpop.f32.mrb[0].mxu0
        %3347 = vdwg.mxu0
        %3348 = vmatprep.subr.bf16.mxu0 0
        %3349 = vmatpush1.bf16.msra.mxu0 %v3260
        %3350 = vmatprep.subr.bf16.mxu0 0
        %3351 = vmatpush1.bf16.msra.mxu0 %v3261
        %3352 = vmatprep.subr.bf16.mxu0 0
        %3353 = vmatpush1.bf16.msra.mxu0 %v3262
        %3354 = vmatprep.subr.bf16.mxu0 0
        %3355 = vmatpush1.bf16.msra.mxu0 %v3263
        %3356 = vmatprep.subr.bf16.mxu0 0
        %3357 = vmatpush1.bf16.msra.mxu0 %v3264
        %3358 = vmatprep.subr.bf16.mxu0 0
        %3359 = vmatpush1.bf16.msra.mxu0 %v3265
        %3360 = vmatprep.subr.bf16.mxu0 0
        %3361 = vmatpush1.bf16.msra.mxu0 %v3266
        %3362 = vmatprep.subr.bf16.mxu0 0
        %3363 = vmatpush1.bf16.msra.mxu0 %v3267
        %3364 = vmatprep.subr.bf16.mxu0 0
        %3365 = vmatpush1.bf16.msra.mxu0 %v3268
        %3366 = vmatprep.subr.bf16.mxu0 0
        %3367 = vmatpush1.bf16.msra.mxu0 %v3269
        %3368 = vmatprep.subr.bf16.mxu0 0
        %3369 = vmatpush1.bf16.msra.mxu0 %v3270
        %3370 = vmatprep.subr.bf16.mxu0 0
        %3371 = vmatpush1.bf16.msra.mxu0 %v3271
        %3372 = vmatprep.subr.bf16.mxu0 0
        %3373 = vmatpush1.bf16.msra.mxu0 %v3272
        %3374 = vmatprep.subr.bf16.mxu0 0
        %3375 = vmatpush1.bf16.msra.mxu0 %v3273
        %3376 = vmatprep.subr.bf16.mxu0 0
        %3377 = vmatpush1.bf16.msra.mxu0 %v3274
        %3378 = vmatprep.subr.bf16.mxu0 0
        %3379 = vmatpush1.bf16.msra.mxu0 %v3275
        %3380 = vmatprep.mubr.bf16.mxu0 %v3044
        %3381 = vmatmul.mubr.bf16.gmra.mrb[0].mxu0 %v3043
        %v3382 = vpop.f32.mrb[0].mxu0
        %v3383 = vadd.f32 %v3343, %v3382
        %v3384 = vpop.f32.mrb[0].mxu0
        %v3385 = vpop.f32.mrb[0].mxu0
        %v3386 = vpop.f32.mrb[0].mxu0
        %3387 = vdwg.mxu0
        %3388 = vst [vmem:[%s635] sm:$0xff] %v3383
        %s3389 = sand.u32 %s367, 1
        %s3390 = scalar_lea.sflag [#allocation4], %s3389
        %s3391 = sand.u32 %s367, 1
        %s3392 = smul.addr %s3391, 8
        %s3393 = scalar_lea.vmem [#allocation16], %s3392
        %s3394 = sand.u32 %s393, 1
        %s3395 = scalar_lea.sflag [#allocation18], %s3394
        %s3396 = sand.u32 %s393, 1
        %s3397 = smul.addr %s3396, 8
        %s3398 = scalar_lea.vmem [#allocation17], %s3397
        // Predicated region
        $region113: #{tpu_custom_call.1} parent=79 // pred_check
          %p3399 = pneg %p377
        $region114: #{tpu_custom_call.1} parent=79 // pred_check_branch
          %3401 = sbr.rel (%p3399) target = $region116
        $region115: #{tpu_custom_call.1} parent=79 // pred_region
          %s3403 = ssub.s32 128, 128
          %3404 = vsyncadd %s3390, %s3403
          %s3405 = smul.addr %s39, 128
          %s3406 = scalar_lea.hbm %s15, %s3405
          %s3408 = sshll.u32 %s3393, 4
          %s3409 = int_to_ptr.vmem [resolvable:$true] %s3408
          %3411 = dma.vmem_to_hbm [thread:$0]  %s3409, 128, %s3406, %s3390
        $region116: #{tpu_custom_call.1} parent=79 // pred_fallthru
          _
        // Predicated region
        $region117: #{tpu_custom_call.1} parent=79 // pred_check
          %p3412 = pneg %p403
        $region118: #{tpu_custom_call.1} parent=79 // pred_check_branch
          %3414 = sbr.rel (%p3412) target = $region120
        $region119: #{tpu_custom_call.1} parent=79 // pred_region
          %s3416 = ssub.s32 128, 128
          %3417 = vsyncadd %s3395, %s3416
          %s3418 = smul.addr %s39, 128
          %s3419 = scalar_lea.hbm %s16, %s3418
          %s3421 = sshll.u32 %s3398, 4
          %s3422 = int_to_ptr.vmem [resolvable:$true] %s3421
          %3424 = dma.vmem_to_hbm [thread:$0]  %s3422, 128, %s3419, %s3395
        $region120: #{tpu_custom_call.1} parent=79 // pred_fallthru
          _
      $region80: #{tpu_custom_call.1} parent=5 // pred_fallthru
        _
      %p3425 = scmp.le.s32.totalorder 2, %s34
      // Predicated region
      $region121: #{tpu_custom_call.1} parent=5 // pred_check
        %p3426 = pneg %p3425
      $region122: #{tpu_custom_call.1} parent=5 // pred_check_branch
        %3428 = sbr.rel (%p3426) target = $region124
      $region123: #{tpu_custom_call.1} parent=5 // pred_region
        %s3429 = ssub.s32 %s34, 2
        // Predicated region
        $region125: #{tpu_custom_call.1} parent=123 // pred_check
          %p3430 = pneg %p383
        $region126: #{tpu_custom_call.1} parent=123 // pred_check_branch
          %3432 = sbr.rel (%p3430) target = $region128
        $region127: #{tpu_custom_call.1} parent=123 // pred_region
          %s3433 = sand.u32 %s368, 1
          %s3434 = scalar_lea.sflag [#allocation4], %s3433
          %s3435 = sand.u32 %s368, 1
          %s3436 = smul.addr %s3435, 8
          %s3437 = scalar_lea.vmem [#allocation16], %s3436
          %3438 = dma.done %s3434, 128
        $region128: #{tpu_custom_call.1} parent=123 // pred_fallthru
          _
        // Predicated region
        $region129: #{tpu_custom_call.1} parent=123 // pred_check
          %p3439 = pneg %p409
        $region130: #{tpu_custom_call.1} parent=123 // pred_check_branch
          %3441 = sbr.rel (%p3439) target = $region132
        $region131: #{tpu_custom_call.1} parent=123 // pred_region
          %s3442 = sand.u32 %s394, 1
          %s3443 = scalar_lea.sflag [#allocation18], %s3442
          %s3444 = sand.u32 %s394, 1
          %s3445 = smul.addr %s3444, 8
          %s3446 = scalar_lea.vmem [#allocation17], %s3445
          %3447 = dma.done %s3443, 128
        $region132: #{tpu_custom_call.1} parent=123 // pred_fallthru
          _
      $region124: #{tpu_custom_call.1} parent=5 // pred_fallthru
        _
    $region6: #{tpu_custom_call.1} parent=1 // loop_footer
      %s38 = sadd.s32 1, %s34
    $region7: #{tpu_custom_call.1} parent=1 // loop_footer_branch
      %33 = sbr.rel target = $region3
    $region8: #{tpu_custom_call.1} parent=1 // loop_exit
      _
    %3448 = vsyncpa [#allocation3], 1
    %s3449 = scalar_lea.sflag [#allocation3], 1
    %3450 = vsyncpa %s3449, 1
    %3451 = vsyncpa [#allocation6], 1
    %3452 = vsyncpa [#allocation9], 1
    %3453 = vsyncpa [#allocation12], 1
    %3454 = vsyncpa [#allocation15], 1
    %3455 = vsyncpa [#allocation4], 1
    %s3456 = scalar_lea.sflag [#allocation4], 1
    %3457 = vsyncpa %s3456, 1
    %3458 = vsyncpa [#allocation18], 1
    %s3459 = scalar_lea.sflag [#allocation18], 1
    %3460 = vsyncpa %s3459, 1

</llo_original>
